<compile_context>
chip_gen: v7x
topology: tpu7x:2x2x1
jax: 0.10.0
libtpu: 0.0.40
codegen_flags: <defaults>
</compile_context>

<pallas_src>
import math
import jax
import jax.numpy as jnp
import numpy as np
from jax.experimental import pallas as pl
from jax.experimental.pallas import tpu as pltpu

# Small test sizes consistent with the module (module uses H=768, windows=7).
HIDDEN = 128
WINDOWS = 7
N_CLASSES = 16
BATCH = 2
SEQ = 8

# bf16 matmul operands (f32 accumulation): halves resident-weight VMEM & HBM
# and uses the MXU's native dtype on all generations.  Elementwise work in the
# kernel stays f32 (important on v5e, whose VPU/EUP have no bf16 datapath).
COMPUTE_DTYPE = jnp.bfloat16

_BUFFERED1_OK = True  # flipped off if this jax build rejects pipeline_mode=Buffered(1)


def get_subseq_idx_list(windows, t, T):
    """Exact replica of MRU.get_subseq_idx_list (static, trace-time)."""
    index_list = []
    for u in range(1, windows // 2 + 1):
        if t - u >= 0:
            index_list.append(t - u)
        if t + u <= T - 1:
            index_list.append(t + u)
    index_list.append(t)
    index_list.sort()
    return index_list


def _dot(a, b):
    return jnp.dot(a.astype(COMPUTE_DTYPE), b.astype(COMPUTE_DTYPE),
                   preferred_element_type=jnp.float32)


# --------------------------------------------------------------------------
# Pallas kernel: t=0 MRU step (fwd+bwd row-stacked) + gated fusion + classifier.
# --------------------------------------------------------------------------
def mutilabel_kernel(xw_ref,                       # [Bb, 2n, H] window slab
                     mru_w_ref, mru_b_ref,         # [n, H, 2H] / [1, 2H]
                     mgate_ns_ref,                 # [H, H] (new_state -> gate)
                     g_w_ref, g_b_ref,             # [3, H, 3H] / [1, 3H]
                     lin_w_ref, lin_b_ref,         # [H, C] / [1, C]
                     out_ref):                     # [Bb, C]
    Bb, two_n, H = xw_ref.shape
    n = two_n // 2
    W = WINDOWS

    # t=0 window features.  Forward sweep window index j reads x[:, j, :]
    # (slab row j); the backward (time-reversed) sweep reads x[:, T-1-j, :]
    # (slab row 2n-1-j).  Row-stack fwd/bwd so both share one matmul set.
    feats = [jnp.concatenate([xw_ref[:, j, :], xw_ref[:, two_n - 1 - j, :]],
                             axis=0)
             for j in range(n)]                    # n x [2Bb, H]  (f32)

    # prev_state == 0 at t=0  =>  all attention scores are 0  =>  softmax is
    # exactly uniform 1/W over all W slots (zero-padded slots included)
    # =>  new_state = sum(real window feats) / W.
    new_state = feats[0]
    for f in feats[1:]:
        new_state = new_state + f
    new_state = new_state * (1.0 / W)              # [2Bb, H]  (f32)

    # MLP_linear + MRU.gate column-fused per window slot; accumulate per-slot
    # partial matmuls instead of materializing concat(feats).  Zero-padded
    # window slots are dropped (they only ever multiply zero inputs), and
    # new_state feeds only the gate columns via its own [H, H] matmul (no
    # explicit zero weight block).
    y = _dot(feats[0], mru_w_ref[0])
    for j in range(1, n):
        y = y + _dot(feats[j], mru_w_ref[j])
    y = y + mru_b_ref[...]                         # [2Bb, 2H]  (f32)
    sub = y[:, :H]                                                 # MLP_linear
    gate = jax.nn.sigmoid(y[:, H:] + _dot(new_state, mgate_ns_ref[...]))
    out01 = sub + new_state * gate                 # [2Bb, H]
    fwd0 = out01[:Bb, :]
    bwd0 = out01[Bb:, :]

    # Gated fusion at the CLS position (gate/gate2/gate3 column-fused into one
    # [3, H, 3H] weight; per-input partial matmuls avoid the 3H-lane concat).
    # Fusion is per-position, so evaluating it only at t=0 is exact.
    cls_x = xw_ref[:, 0, :]
    g = jax.nn.sigmoid(_dot(cls_x, g_w_ref[0]) + _dot(fwd0, g_w_ref[1])
                       + _dot(bwd0, g_w_ref[2]) + g_b_ref[...])    # [Bb, 3H]
    cls = g[:, :H] * cls_x + g[:, H:2 * H] * fwd0 + g[:, 2 * H:] * bwd0
    out_ref[...] = _dot(cls, lin_w_ref[...]) + lin_b_ref[...]


# --------------------------------------------------------------------------
# One-time parameter prep (hoisted out of the forward path: at H=768 these
# concats would otherwise materialize tens of MiB of HBM traffic per call).
# --------------------------------------------------------------------------
def fuse_params(p, T):
    H = p["lin_w"].shape[0]
    W = WINDOWS
    n = len(get_subseq_idx_list(W, 0, T))
    wd = COMPUTE_DTYPE

    # Per-window-slot column fusion of MRU.MLP_linear and MRU.gate:
    #   mru_w[j] = [ mlp_w rows of slot j | mgate_w rows of slot j ] -> [H, 2H]
    # Only the n real t=0 slots are kept (padded slots multiply zero inputs).
    mlp_w = p["mlp_w"].reshape(W, H, H)[:n]
    mg_w = p["mgate_w"][:W * H].reshape(W, H, H)[:n]
    fused = {
        "mru_w": jnp.concatenate([mlp_w, mg_w], axis=-1).astype(wd),  # [n,H,2H]
        "mru_b": jnp.concatenate([p["mlp_b"], p["mgate_b"]], axis=-1),  # [1,2H]
        "mgate_ns": p["mgate_w"][W * H:].astype(wd),                  # [H, H]
        # gate/gate2/gate3 column-fused, split by input block (cls/fwd/bwd):
        "g_w": jnp.stack(
            [jnp.concatenate([p["g1_w"][k * H:(k + 1) * H],
                              p["g2_w"][k * H:(k + 1) * H],
                              p["g3_w"][k * H:(k + 1) * H]], axis=-1)
             for k in range(3)]).astype(wd),                          # [3,H,3H]
        "g_b": jnp.concatenate([p["g1_b"], p["g2_b"], p["g3_b"]], axis=-1),
        "lin_w": p["lin_w"].astype(wd),                               # [H, C]
        "lin_b": p["lin_b"],                                          # [1, C]
    }
    return fused


def mutilabel_forward(x, fused):
    B, T, H = x.shape
    W = WINDOWS
    C = fused["lin_w"].shape[-1]
    n = fused["mru_w"].shape[0]
    assert n == len(get_subseq_idx_list(W, 0, T)), "fused params built for a different T"

    # Only 2n time positions reach the CLS logits: the forward window at t=0
    # reads x[:, 0:n, :] and the backward (time-reversed) window reads
    # x[:, T-n:T, :].  Slice wrapper-side instead of DMAing [B, T, H].
    x_win = jnp.concatenate([x[:, :n, :], x[:, T - n:, :]], axis=1)   # [B,2n,H]

    # Batch tile: up to 128 rows (=> 256 MXU rows after fwd/bwd stacking).  If
    # that leaves a single grid step and the block is large, halve it once so
    # both TensorCores (v7x) get a "parallel" step.  NOTE: a ragged final
    # block only writes into the padded (discarded) output rows -- do not add
    # reductions over the batch axis without masking them.
    b_block = min(B, 128)
    if pl.cdiv(B, b_block) == 1 and b_block % 16 == 0:
        b_block //= 2
    grid = (pl.cdiv(B, b_block),)

    weights = (fused["mru_w"], fused["mru_b"], fused["mgate_ns"],
               fused["g_w"], fused["g_b"], fused["lin_w"], fused["lin_b"])

    def call(single_buffer_weights):
        def wspec(arr):
            kwargs = {}
            if single_buffer_weights:
                # Constant block index => never re-fetched; one buffer is
                # enough (double-buffering would double weight VMEM).
                kwargs["pipeline_mode"] = pl.Buffered(1)
            return pl.BlockSpec(arr.shape, lambda i, nd=arr.ndim: (0,) * nd,
                                **kwargs)

        return pl.pallas_call(
            mutilabel_kernel,
            out_shape=jax.ShapeDtypeStruct((B, C), jnp.float32),
            grid=grid,
            in_specs=[pl.BlockSpec((b_block, 2 * n, H), lambda i: (i, 0, 0))]
                     + [wspec(w) for w in weights],
            out_specs=pl.BlockSpec((b_block, C), lambda i: (i, 0)),
            # bf16 weights keep the resident footprint within the default
            # scoped-VMEM limit on all generations; no vmem_limit bump needed.
            compiler_params=pltpu.CompilerParams(
                dimension_semantics=("parallel",)),
        )(x_win, *weights)

    global _BUFFERED1_OK
    if _BUFFERED1_OK:
        try:
            return call(True)
        except Exception:   # this jax build rejects Buffered(1); fall back once
            _BUFFERED1_OK = False
    return call(False)


# --------------------------------------------------------------------------
# Parameter init (nn.Linear-style) and a faithful pure-JAX f32 reference that
# runs the FULL MRU loop (all T steps, real softmax) to validate the t=0
# algebraic shortcuts used by the kernel.
# --------------------------------------------------------------------------
def init_params(key, H, W, C):
    ks = jax.random.split(key, 12)

    def lin(kw, kb, fan_in, fan_out):
        bound = 1.0 / math.sqrt(fan_in)
        w = jax.random.uniform(kw, (fan_in, fan_out), jnp.float32, -bound, bound)
        b = jax.random.uniform(kb, (1, fan_out), jnp.float32, -bound, bound)
        return w, b

    p = {}
    p["mlp_w"], p["mlp_b"] = lin(ks[0], ks[1], W * H, H)            # MRU.MLP_linear
    p["mgate_w"], p["mgate_b"] = lin(ks[2], ks[3], (W + 1) * H, H)  # MRU.gate
    p["g1_w"], p["g1_b"] = lin(ks[4], ks[5], 3 * H, H)              # gate
    p["g2_w"], p["g2_b"] = lin(ks[6], ks[7], 3 * H, H)              # gate2
    p["g3_w"], p["g3_b"] = lin(ks[8], ks[9], 3 * H, H)              # gate3
    p["lin_w"], p["lin_b"] = lin(ks[10], ks[11], H, C)              # linear
    return p


def _mru_pass_ref(load, T, W, B, H, mlp_w, mlp_b, gate_w, gate_b):
    """Reference-only: full uni-directional MRU sweep (all T steps)."""
    inv_sqrt_d = 1.0 / math.sqrt(H)
    prev = jnp.zeros((B, H), jnp.float32)
    outs = []
    for t in range(T):
        idxs = get_subseq_idx_list(W, t, T)
        feats = [load(j) for j in idxs]
        feats = feats + [jnp.zeros((B, H), jnp.float32)] * (W - len(idxs))
        scores = jnp.concatenate(
            [jnp.sum(prev * f, axis=-1, keepdims=True) for f in feats], axis=-1
        ) * inv_sqrt_d
        m = jnp.max(scores, axis=-1, keepdims=True)
        e = jnp.exp(scores - m)
        pr = e / jnp.sum(e, axis=-1, keepdims=True)
        new_state = feats[0] * pr[:, 0:1]
        for i in range(1, W):
            new_state = new_state + feats[i] * pr[:, i:i + 1]
        temp1 = jnp.concatenate(feats, axis=-1)
        temp2 = jnp.concatenate(feats + [new_state], axis=-1)
        sub = temp1 @ mlp_w + mlp_b
        gate = jax.nn.sigmoid(temp2 @ gate_w + gate_b)
        out = sub + new_state * gate
        prev = out
        outs.append(out)
    return outs


def reference_forward(x, p):
    B, T, H = x.shape
    fwd = _mru_pass_ref(lambda j: x[:, j, :], T, WINDOWS, B, H,
                        p["mlp_w"], p["mlp_b"], p["mgate_w"], p["mgate_b"])
    # BiMRU (as written in PyTorch) re-uses forward_RW on the time-reversed
    # sequence and does NOT re-reverse the result.
    bwd = _mru_pass_ref(lambda j: x[:, T - 1 - j, :], T, WINDOWS, B, H,
                        p["mlp_w"], p["mlp_b"], p["mgate_w"], p["mgate_b"])
    cls_x, cls_f, cls_b = x[:, 0, :], fwd[0], bwd[0]
    cat3 = jnp.concatenate([cls_x, cls_f, cls_b], axis=-1)
    g1 = jax.nn.sigmoid(cat3 @ p["g1_w"] + p["g1_b"])
    g2 = jax.nn.sigmoid(cat3 @ p["g2_w"] + p["g2_b"])
    g3 = jax.nn.sigmoid(cat3 @ p["g3_w"] + p["g3_b"])
    cls = g1 * cls_x + g2 * cls_f + g3 * cls_b
    return cls @ p["lin_w"] + p["lin_b"]


if __name__ == "__main__":
    key = jax.random.PRNGKey(0)
    k_x, k_p = jax.random.split(key)

    # Stand-in for BERT hidden states (see TODO at top).
    x = jax.random.normal(k_x, (BATCH, SEQ, HIDDEN), jnp.float32)
    params = init_params(k_p, HIDDEN, WINDOWS, N_CLASSES)
    fused = fuse_params(params, SEQ)          # one-time weight fusion (hoisted)

    logits = jax.block_until_ready(mutilabel_forward(x, fused))
    ref = jax.block_until_ready(reference_forward(x, params))

    assert logits.shape == (BATCH, N_CLASSES)
    # bf16 MXU operands (f32 accumulation, f32 elementwise) => ~0.5-1% drift
    # versus the pure-f32 reference.
    assert np.allclose(np.asarray(logits), np.asarray(ref), rtol=2e-2, atol=2e-2)

    print("KERNEL_OK")
</pallas_src>

<mosaic_0001>
module attributes {stable_mosaic.version = 11 : i64} {
  func.func @mutilabel_kernel(%arg0: i32, %arg1: memref<2x8x128xf32, #tpu.memory_space<vmem>>, %arg2: memref<4x128x256xbf16, #tpu.memory_space<vmem>>, %arg3: memref<1x256xf32, #tpu.memory_space<vmem>>, %arg4: memref<128x128xbf16, #tpu.memory_space<vmem>>, %arg5: memref<3x128x384xbf16, #tpu.memory_space<vmem>>, %arg6: memref<1x384xf32, #tpu.memory_space<vmem>>, %arg7: memref<128x16xbf16, #tpu.memory_space<vmem>>, %arg8: memref<1x16xf32, #tpu.memory_space<vmem>>, %arg9: memref<2x16xf32, #tpu.memory_space<vmem>>) attributes {dimension_semantics = [#tpu.dimension_semantics<parallel>], iteration_bounds = array<i64: 1>, scalar_prefetch = 0 : i64, scratch_operands = 0 : i64, tpu.core_type = #tpu.core_type<tc>, window_params = [{transform_indices = @transform_0, window_bounds = array<i64: 2, 8, 128>}, {pipeline_mode = #tpu.pipeline_mode<synchronous>, transform_indices = @transform_1, window_bounds = array<i64: 4, 128, 256>}, {pipeline_mode = #tpu.pipeline_mode<synchronous>, transform_indices = @transform_2, window_bounds = array<i64: 1, 256>}, {pipeline_mode = #tpu.pipeline_mode<synchronous>, transform_indices = @transform_3, window_bounds = array<i64: 128, 128>}, {pipeline_mode = #tpu.pipeline_mode<synchronous>, transform_indices = @transform_4, window_bounds = array<i64: 3, 128, 384>}, {pipeline_mode = #tpu.pipeline_mode<synchronous>, transform_indices = @transform_5, window_bounds = array<i64: 1, 384>}, {pipeline_mode = #tpu.pipeline_mode<synchronous>, transform_indices = @transform_6, window_bounds = array<i64: 128, 16>}, {pipeline_mode = #tpu.pipeline_mode<synchronous>, transform_indices = @transform_7, window_bounds = array<i64: 1, 16>}, {transform_indices = @transform_8, window_bounds = array<i64: 2, 16>}]} {
    %c0 = arith.constant 0 : index
    %c0_0 = arith.constant 0 : index
    %c0_1 = arith.constant 0 : index
    %0 = vector.load %arg1[%c0, %c0_0, %c0_1] : memref<2x8x128xf32, #tpu.memory_space<vmem>>, vector<2x1x128xf32>
    %1 = vector.shape_cast %0 : vector<2x1x128xf32> to vector<2x128xf32>
    %c0_2 = arith.constant 0 : index
    %c7 = arith.constant 7 : index
    %c0_3 = arith.constant 0 : index
    %2 = vector.load %arg1[%c0_2, %c7, %c0_3] : memref<2x8x128xf32, #tpu.memory_space<vmem>>, vector<2x1x128xf32>
    %3 = vector.shape_cast %2 : vector<2x1x128xf32> to vector<2x128xf32>
    %4 = tpu.concatenate %1, %3 in 0 : vector<2x128xf32>, vector<2x128xf32> -> vector<4x128xf32>
    %c0_4 = arith.constant 0 : index
    %c1 = arith.constant 1 : index
    %c0_5 = arith.constant 0 : index
    %5 = vector.load %arg1[%c0_4, %c1, %c0_5] : memref<2x8x128xf32, #tpu.memory_space<vmem>>, vector<2x1x128xf32>
    %6 = vector.shape_cast %5 : vector<2x1x128xf32> to vector<2x128xf32>
    %c0_6 = arith.constant 0 : index
    %c6 = arith.constant 6 : index
    %c0_7 = arith.constant 0 : index
    %7 = vector.load %arg1[%c0_6, %c6, %c0_7] : memref<2x8x128xf32, #tpu.memory_space<vmem>>, vector<2x1x128xf32>
    %8 = vector.shape_cast %7 : vector<2x1x128xf32> to vector<2x128xf32>
    %9 = tpu.concatenate %6, %8 in 0 : vector<2x128xf32>, vector<2x128xf32> -> vector<4x128xf32>
    %c0_8 = arith.constant 0 : index
    %c2 = arith.constant 2 : index
    %c0_9 = arith.constant 0 : index
    %10 = vector.load %arg1[%c0_8, %c2, %c0_9] : memref<2x8x128xf32, #tpu.memory_space<vmem>>, vector<2x1x128xf32>
    %11 = vector.shape_cast %10 : vector<2x1x128xf32> to vector<2x128xf32>
    %c0_10 = arith.constant 0 : index
    %c5 = arith.constant 5 : index
    %c0_11 = arith.constant 0 : index
    %12 = vector.load %arg1[%c0_10, %c5, %c0_11] : memref<2x8x128xf32, #tpu.memory_space<vmem>>, vector<2x1x128xf32>
    %13 = vector.shape_cast %12 : vector<2x1x128xf32> to vector<2x128xf32>
    %14 = tpu.concatenate %11, %13 in 0 : vector<2x128xf32>, vector<2x128xf32> -> vector<4x128xf32>
    %c0_12 = arith.constant 0 : index
    %c3 = arith.constant 3 : index
    %c0_13 = arith.constant 0 : index
    %15 = vector.load %arg1[%c0_12, %c3, %c0_13] : memref<2x8x128xf32, #tpu.memory_space<vmem>>, vector<2x1x128xf32>
    %16 = vector.shape_cast %15 : vector<2x1x128xf32> to vector<2x128xf32>
    %c0_14 = arith.constant 0 : index
    %c4 = arith.constant 4 : index
    %c0_15 = arith.constant 0 : index
    %17 = vector.load %arg1[%c0_14, %c4, %c0_15] : memref<2x8x128xf32, #tpu.memory_space<vmem>>, vector<2x1x128xf32>
    %18 = vector.shape_cast %17 : vector<2x1x128xf32> to vector<2x128xf32>
    %19 = tpu.concatenate %16, %18 in 0 : vector<2x128xf32>, vector<2x128xf32> -> vector<4x128xf32>
    %20 = arith.addf %4, %9 : vector<4x128xf32>
    %21 = arith.addf %20, %14 : vector<4x128xf32>
    %22 = arith.addf %21, %19 : vector<4x128xf32>
    %cst = arith.constant 0.142857149 : f32
    %23 = vector.broadcast %cst : f32 to vector<4x128xf32>
    %24 = arith.mulf %22, %23 : vector<4x128xf32>
    %c0_16 = arith.constant 0 : index
    %c0_17 = arith.constant 0 : index
    %c0_18 = arith.constant 0 : index
    %25 = vector.load %arg2[%c0_16, %c0_17, %c0_18] : memref<4x128x256xbf16, #tpu.memory_space<vmem>>, vector<1x128x256xbf16>
    %26 = vector.shape_cast %25 : vector<1x128x256xbf16> to vector<128x256xbf16>
    %27 = arith.truncf %4 : vector<4x128xf32> to vector<4x128xbf16>
    %cst_19 = arith.constant dense<0.000000e+00> : vector<4x256xf32>
    %28 = tpu.matmul %27, %26, %cst_19 {dimension_numbers = #tpu.dot_dimension_numbers<[1], [0], [0], [1], [0, 0, 1, 1], [], []>} : vector<4x128xbf16>, vector<128x256xbf16>, vector<4x256xf32> -> vector<4x256xf32>
    %c1_20 = arith.constant 1 : index
    %c0_21 = arith.constant 0 : index
    %c0_22 = arith.constant 0 : index
    %29 = vector.load %arg2[%c1_20, %c0_21, %c0_22] : memref<4x128x256xbf16, #tpu.memory_space<vmem>>, vector<1x128x256xbf16>
    %30 = vector.shape_cast %29 : vector<1x128x256xbf16> to vector<128x256xbf16>
    %31 = arith.truncf %9 : vector<4x128xf32> to vector<4x128xbf16>
    %cst_23 = arith.constant dense<0.000000e+00> : vector<4x256xf32>
    %32 = tpu.matmul %31, %30, %cst_23 {dimension_numbers = #tpu.dot_dimension_numbers<[1], [0], [0], [1], [0, 0, 1, 1], [], []>} : vector<4x128xbf16>, vector<128x256xbf16>, vector<4x256xf32> -> vector<4x256xf32>
    %33 = arith.addf %28, %32 : vector<4x256xf32>
    %c2_24 = arith.constant 2 : index
    %c0_25 = arith.constant 0 : index
    %c0_26 = arith.constant 0 : index
    %34 = vector.load %arg2[%c2_24, %c0_25, %c0_26] : memref<4x128x256xbf16, #tpu.memory_space<vmem>>, vector<1x128x256xbf16>
    %35 = vector.shape_cast %34 : vector<1x128x256xbf16> to vector<128x256xbf16>
    %36 = arith.truncf %14 : vector<4x128xf32> to vector<4x128xbf16>
    %cst_27 = arith.constant dense<0.000000e+00> : vector<4x256xf32>
    %37 = tpu.matmul %36, %35, %cst_27 {dimension_numbers = #tpu.dot_dimension_numbers<[1], [0], [0], [1], [0, 0, 1, 1], [], []>} : vector<4x128xbf16>, vector<128x256xbf16>, vector<4x256xf32> -> vector<4x256xf32>
    %38 = arith.addf %33, %37 : vector<4x256xf32>
    %c3_28 = arith.constant 3 : index
    %c0_29 = arith.constant 0 : index
    %c0_30 = arith.constant 0 : index
    %39 = vector.load %arg2[%c3_28, %c0_29, %c0_30] : memref<4x128x256xbf16, #tpu.memory_space<vmem>>, vector<1x128x256xbf16>
    %40 = vector.shape_cast %39 : vector<1x128x256xbf16> to vector<128x256xbf16>
    %41 = arith.truncf %19 : vector<4x128xf32> to vector<4x128xbf16>
    %cst_31 = arith.constant dense<0.000000e+00> : vector<4x256xf32>
    %42 = tpu.matmul %41, %40, %cst_31 {dimension_numbers = #tpu.dot_dimension_numbers<[1], [0], [0], [1], [0, 0, 1, 1], [], []>} : vector<4x128xbf16>, vector<128x256xbf16>, vector<4x256xf32> -> vector<4x256xf32>
    %43 = arith.addf %38, %42 : vector<4x256xf32>
    %c0_32 = arith.constant 0 : index
    %c0_33 = arith.constant 0 : index
    %44 = vector.load %arg3[%c0_32, %c0_33] : memref<1x256xf32, #tpu.memory_space<vmem>>, vector<1x256xf32>
    %45 = vector.broadcast %44 : vector<1x256xf32> to vector<4x256xf32>
    %46 = arith.addf %43, %45 : vector<4x256xf32>
    %47 = vector.extract_strided_slice %46 {offsets = [0, 0], sizes = [4, 128], strides = [1, 1]} : vector<4x256xf32> to vector<4x128xf32>
    %48 = vector.extract_strided_slice %46 {offsets = [0, 128], sizes = [4, 128], strides = [1, 1]} : vector<4x256xf32> to vector<4x128xf32>
    %c0_34 = arith.constant 0 : index
    %c0_35 = arith.constant 0 : index
    %49 = vector.load %arg4[%c0_34, %c0_35] : memref<128x128xbf16, #tpu.memory_space<vmem>>, vector<128x128xbf16>
    %50 = arith.truncf %24 : vector<4x128xf32> to vector<4x128xbf16>
    %cst_36 = arith.constant dense<0.000000e+00> : vector<4x128xf32>
    %51 = tpu.matmul %50, %49, %cst_36 {dimension_numbers = #tpu.dot_dimension_numbers<[1], [0], [0], [1], [0, 0, 1, 1], [], []>} : vector<4x128xbf16>, vector<128x128xbf16>, vector<4x128xf32> -> vector<4x128xf32>
    %52 = arith.addf %48, %51 : vector<4x128xf32>
    %53 = arith.negf %52 : vector<4x128xf32>
    %54 = math.exp %53 : vector<4x128xf32>
    %cst_37 = arith.constant 1.000000e+00 : f32
    %55 = vector.broadcast %cst_37 : f32 to vector<4x128xf32>
    %56 = arith.addf %55, %54 : vector<4x128xf32>
    %57 = arith.divf %55, %56 : vector<4x128xf32>
    %58 = arith.mulf %24, %57 : vector<4x128xf32>
    %59 = arith.addf %47, %58 : vector<4x128xf32>
    %60 = vector.extract_strided_slice %59 {offsets = [0, 0], sizes = [2, 128], strides = [1, 1]} : vector<4x128xf32> to vector<2x128xf32>
    %61 = vector.extract_strided_slice %59 {offsets = [2, 0], sizes = [2, 128], strides = [1, 1]} : vector<4x128xf32> to vector<2x128xf32>
    %c0_38 = arith.constant 0 : index
    %c0_39 = arith.constant 0 : index
    %c0_40 = arith.constant 0 : index
    %62 = vector.load %arg1[%c0_38, %c0_39, %c0_40] : memref<2x8x128xf32, #tpu.memory_space<vmem>>, vector<2x1x128xf32>
    %63 = vector.shape_cast %62 : vector<2x1x128xf32> to vector<2x128xf32>
    %c0_41 = arith.constant 0 : index
    %c0_42 = arith.constant 0 : index
    %c0_43 = arith.constant 0 : index
    %64 = vector.load %arg5[%c0_41, %c0_42, %c0_43] : memref<3x128x384xbf16, #tpu.memory_space<vmem>>, vector<1x128x384xbf16>
    %65 = vector.shape_cast %64 : vector<1x128x384xbf16> to vector<128x384xbf16>
    %66 = arith.truncf %63 : vector<2x128xf32> to vector<2x128xbf16>
    %cst_44 = arith.constant dense<0.000000e+00> : vector<2x384xf32>
    %67 = tpu.matmul %66, %65, %cst_44 {dimension_numbers = #tpu.dot_dimension_numbers<[1], [0], [0], [1], [0, 0, 1, 1], [], []>} : vector<2x128xbf16>, vector<128x384xbf16>, vector<2x384xf32> -> vector<2x384xf32>
    %c1_45 = arith.constant 1 : index
    %c0_46 = arith.constant 0 : index
    %c0_47 = arith.constant 0 : index
    %68 = vector.load %arg5[%c1_45, %c0_46, %c0_47] : memref<3x128x384xbf16, #tpu.memory_space<vmem>>, vector<1x128x384xbf16>
    %69 = vector.shape_cast %68 : vector<1x128x384xbf16> to vector<128x384xbf16>
    %70 = arith.truncf %60 : vector<2x128xf32> to vector<2x128xbf16>
    %cst_48 = arith.constant dense<0.000000e+00> : vector<2x384xf32>
    %71 = tpu.matmul %70, %69, %cst_48 {dimension_numbers = #tpu.dot_dimension_numbers<[1], [0], [0], [1], [0, 0, 1, 1], [], []>} : vector<2x128xbf16>, vector<128x384xbf16>, vector<2x384xf32> -> vector<2x384xf32>
    %72 = arith.addf %67, %71 : vector<2x384xf32>
    %c2_49 = arith.constant 2 : index
    %c0_50 = arith.constant 0 : index
    %c0_51 = arith.constant 0 : index
    %73 = vector.load %arg5[%c2_49, %c0_50, %c0_51] : memref<3x128x384xbf16, #tpu.memory_space<vmem>>, vector<1x128x384xbf16>
    %74 = vector.shape_cast %73 : vector<1x128x384xbf16> to vector<128x384xbf16>
    %75 = arith.truncf %61 : vector<2x128xf32> to vector<2x128xbf16>
    %cst_52 = arith.constant dense<0.000000e+00> : vector<2x384xf32>
    %76 = tpu.matmul %75, %74, %cst_52 {dimension_numbers = #tpu.dot_dimension_numbers<[1], [0], [0], [1], [0, 0, 1, 1], [], []>} : vector<2x128xbf16>, vector<128x384xbf16>, vector<2x384xf32> -> vector<2x384xf32>
    %77 = arith.addf %72, %76 : vector<2x384xf32>
    %c0_53 = arith.constant 0 : index
    %c0_54 = arith.constant 0 : index
    %78 = vector.load %arg6[%c0_53, %c0_54] : memref<1x384xf32, #tpu.memory_space<vmem>>, vector<1x384xf32>
    %79 = vector.broadcast %78 : vector<1x384xf32> to vector<2x384xf32>
    %80 = arith.addf %77, %79 : vector<2x384xf32>
    %81 = arith.negf %80 : vector<2x384xf32>
    %82 = math.exp %81 : vector<2x384xf32>
    %cst_55 = arith.constant 1.000000e+00 : f32
    %83 = vector.broadcast %cst_55 : f32 to vector<2x384xf32>
    %84 = arith.addf %83, %82 : vector<2x384xf32>
    %85 = arith.divf %83, %84 : vector<2x384xf32>
    %86 = vector.extract_strided_slice %85 {offsets = [0, 0], sizes = [2, 128], strides = [1, 1]} : vector<2x384xf32> to vector<2x128xf32>
    %87 = arith.mulf %86, %63 : vector<2x128xf32>
    %88 = vector.extract_strided_slice %85 {offsets = [0, 128], sizes = [2, 128], strides = [1, 1]} : vector<2x384xf32> to vector<2x128xf32>
    %89 = arith.mulf %88, %60 : vector<2x128xf32>
    %90 = arith.addf %87, %89 : vector<2x128xf32>
    %91 = vector.extract_strided_slice %85 {offsets = [0, 256], sizes = [2, 128], strides = [1, 1]} : vector<2x384xf32> to vector<2x128xf32>
    %92 = arith.mulf %91, %61 : vector<2x128xf32>
    %93 = arith.addf %90, %92 : vector<2x128xf32>
    %c0_56 = arith.constant 0 : index
    %c0_57 = arith.constant 0 : index
    %94 = vector.load %arg7[%c0_56, %c0_57] : memref<128x16xbf16, #tpu.memory_space<vmem>>, vector<128x16xbf16>
    %95 = arith.truncf %93 : vector<2x128xf32> to vector<2x128xbf16>
    %cst_58 = arith.constant dense<0.000000e+00> : vector<2x16xf32>
    %96 = tpu.matmul %95, %94, %cst_58 {dimension_numbers = #tpu.dot_dimension_numbers<[1], [0], [0], [1], [0, 0, 1, 1], [], []>} : vector<2x128xbf16>, vector<128x16xbf16>, vector<2x16xf32> -> vector<2x16xf32>
    %c0_59 = arith.constant 0 : index
    %c0_60 = arith.constant 0 : index
    %97 = vector.load %arg8[%c0_59, %c0_60] : memref<1x16xf32, #tpu.memory_space<vmem>>, vector<1x16xf32>
    %98 = vector.broadcast %97 : vector<1x16xf32> to vector<2x16xf32>
    %99 = arith.addf %96, %98 : vector<2x16xf32>
    %c0_61 = arith.constant 0 : index
    %c0_62 = arith.constant 0 : index
    %100 = vector.load %arg9[%c0_61, %c0_62] : memref<2x16xf32, #tpu.memory_space<vmem>>, vector<2x16xf32>
    tpu.vector_store %arg9[%c0_61, %c0_62], %99 {strides = array<i32>} : memref<2x16xf32, #tpu.memory_space<vmem>>, vector<2x16xf32>,
    return
  }
  func.func @transform_0(%arg0: i32) -> (i32, i32, i32) {
    %c0_i32 = arith.constant 0 : i32
    %c0_i32_0 = arith.constant 0 : i32
    %c0_i32_1 = arith.constant 0 : i32
    return %arg0, %c0_i32, %c0_i32_0 : i32, i32, i32
  }
  func.func @transform_1(%arg0: i32) -> (i32, i32, i32) {
    %c0_i32 = arith.constant 0 : i32
    %c0_i32_0 = arith.constant 0 : i32
    %c0_i32_1 = arith.constant 0 : i32
    %c0_i32_2 = arith.constant 0 : i32
    return %c0_i32, %c0_i32_0, %c0_i32_1 : i32, i32, i32
  }
  func.func @transform_2(%arg0: i32) -> (i32, i32) {
    %c0_i32 = arith.constant 0 : i32
    %c0_i32_0 = arith.constant 0 : i32
    %c0_i32_1 = arith.constant 0 : i32
    return %c0_i32, %c0_i32_0 : i32, i32
  }
  func.func @transform_3(%arg0: i32) -> (i32, i32) {
    %c0_i32 = arith.constant 0 : i32
    %c0_i32_0 = arith.constant 0 : i32
    %c0_i32_1 = arith.constant 0 : i32
    return %c0_i32, %c0_i32_0 : i32, i32
  }
  func.func @transform_4(%arg0: i32) -> (i32, i32, i32) {
    %c0_i32 = arith.constant 0 : i32
    %c0_i32_0 = arith.constant 0 : i32
    %c0_i32_1 = arith.constant 0 : i32
    %c0_i32_2 = arith.constant 0 : i32
    return %c0_i32, %c0_i32_0, %c0_i32_1 : i32, i32, i32
  }
  func.func @transform_5(%arg0: i32) -> (i32, i32) {
    %c0_i32 = arith.constant 0 : i32
    %c0_i32_0 = arith.constant 0 : i32
    %c0_i32_1 = arith.constant 0 : i32
    return %c0_i32, %c0_i32_0 : i32, i32
  }
  func.func @transform_6(%arg0: i32) -> (i32, i32) {
    %c0_i32 = arith.constant 0 : i32
    %c0_i32_0 = arith.constant 0 : i32
    %c0_i32_1 = arith.constant 0 : i32
    return %c0_i32, %c0_i32_0 : i32, i32
  }
  func.func @transform_7(%arg0: i32) -> (i32, i32) {
    %c0_i32 = arith.constant 0 : i32
    %c0_i32_0 = arith.constant 0 : i32
    %c0_i32_1 = arith.constant 0 : i32
    return %c0_i32, %c0_i32_0 : i32, i32
  }
  func.func @transform_8(%arg0: i32) -> (i32, i32) {
    %c0_i32 = arith.constant 0 : i32
    %c0_i32_0 = arith.constant 0 : i32
    return %arg0, %c0_i32 : i32, i32
  }
}

module attributes {stable_mosaic.version = 11 : i64} {
  func.func @mutilabel_kernel(%arg0: i32, %arg1: memref<2x8x128xf32, #tpu.memory_space<vmem>>, %arg2: memref<4x128x256xbf16, #tpu.memory_space<vmem>>, %arg3: memref<1x256xf32, #tpu.memory_space<vmem>>, %arg4: memref<128x128xbf16, #tpu.memory_space<vmem>>, %arg5: memref<3x128x384xbf16, #tpu.memory_space<vmem>>, %arg6: memref<1x384xf32, #tpu.memory_space<vmem>>, %arg7: memref<128x16xbf16, #tpu.memory_space<vmem>>, %arg8: memref<1x16xf32, #tpu.memory_space<vmem>>, %arg9: memref<2x16xf32, #tpu.memory_space<vmem>>) attributes {dimension_semantics = [#tpu.dimension_semantics<parallel>], iteration_bounds = array<i64: 1>, scalar_prefetch = 0 : i64, scratch_operands = 0 : i64, tpu.core_type = #tpu.core_type<tc>, window_params = [{transform_indices = @transform_0, window_bounds = array<i64: 2, 8, 128>}, {pipeline_mode = #tpu.pipeline_mode<synchronous>, transform_indices = @transform_1, window_bounds = array<i64: 4, 128, 256>}, {pipeline_mode = #tpu.pipeline_mode<synchronous>, transform_indices = @transform_2, window_bounds = array<i64: 1, 256>}, {pipeline_mode = #tpu.pipeline_mode<synchronous>, transform_indices = @transform_3, window_bounds = array<i64: 128, 128>}, {pipeline_mode = #tpu.pipeline_mode<synchronous>, transform_indices = @transform_4, window_bounds = array<i64: 3, 128, 384>}, {pipeline_mode = #tpu.pipeline_mode<synchronous>, transform_indices = @transform_5, window_bounds = array<i64: 1, 384>}, {pipeline_mode = #tpu.pipeline_mode<synchronous>, transform_indices = @transform_6, window_bounds = array<i64: 128, 16>}, {pipeline_mode = #tpu.pipeline_mode<synchronous>, transform_indices = @transform_7, window_bounds = array<i64: 1, 16>}, {transform_indices = @transform_8, window_bounds = array<i64: 2, 16>}]} {
    %c0 = arith.constant 0 : index
    %c0_0 = arith.constant 0 : index
    %c0_1 = arith.constant 0 : index
    %0 = vector.load %arg1[%c0, %c0_0, %c0_1] : memref<2x8x128xf32, #tpu.memory_space<vmem>>, vector<2x1x128xf32>
    %1 = vector.shape_cast %0 : vector<2x1x128xf32> to vector<2x128xf32>
    %c0_2 = arith.constant 0 : index
    %c7 = arith.constant 7 : index
    %c0_3 = arith.constant 0 : index
    %2 = vector.load %arg1[%c0_2, %c7, %c0_3] : memref<2x8x128xf32, #tpu.memory_space<vmem>>, vector<2x1x128xf32>
    %3 = vector.shape_cast %2 : vector<2x1x128xf32> to vector<2x128xf32>
    %4 = tpu.concatenate %1, %3 in 0 : vector<2x128xf32>, vector<2x128xf32> -> vector<4x128xf32>
    %c0_4 = arith.constant 0 : index
    %c1 = arith.constant 1 : index
    %c0_5 = arith.constant 0 : index
    %5 = vector.load %arg1[%c0_4, %c1, %c0_5] : memref<2x8x128xf32, #tpu.memory_space<vmem>>, vector<2x1x128xf32>
    %6 = vector.shape_cast %5 : vector<2x1x128xf32> to vector<2x128xf32>
    %c0_6 = arith.constant 0 : index
    %c6 = arith.constant 6 : index
    %c0_7 = arith.constant 0 : index
    %7 = vector.load %arg1[%c0_6, %c6, %c0_7] : memref<2x8x128xf32, #tpu.memory_space<vmem>>, vector<2x1x128xf32>
    %8 = vector.shape_cast %7 : vector<2x1x128xf32> to vector<2x128xf32>
    %9 = tpu.concatenate %6, %8 in 0 : vector<2x128xf32>, vector<2x128xf32> -> vector<4x128xf32>
    %c0_8 = arith.constant 0 : index
    %c2 = arith.constant 2 : index
    %c0_9 = arith.constant 0 : index
    %10 = vector.load %arg1[%c0_8, %c2, %c0_9] : memref<2x8x128xf32, #tpu.memory_space<vmem>>, vector<2x1x128xf32>
    %11 = vector.shape_cast %10 : vector<2x1x128xf32> to vector<2x128xf32>
    %c0_10 = arith.constant 0 : index
    %c5 = arith.constant 5 : index
    %c0_11 = arith.constant 0 : index
    %12 = vector.load %arg1[%c0_10, %c5, %c0_11] : memref<2x8x128xf32, #tpu.memory_space<vmem>>, vector<2x1x128xf32>
    %13 = vector.shape_cast %12 : vector<2x1x128xf32> to vector<2x128xf32>
    %14 = tpu.concatenate %11, %13 in 0 : vector<2x128xf32>, vector<2x128xf32> -> vector<4x128xf32>
    %c0_12 = arith.constant 0 : index
    %c3 = arith.constant 3 : index
    %c0_13 = arith.constant 0 : index
    %15 = vector.load %arg1[%c0_12, %c3, %c0_13] : memref<2x8x128xf32, #tpu.memory_space<vmem>>, vector<2x1x128xf32>
    %16 = vector.shape_cast %15 : vector<2x1x128xf32> to vector<2x128xf32>
    %c0_14 = arith.constant 0 : index
    %c4 = arith.constant 4 : index
    %c0_15 = arith.constant 0 : index
    %17 = vector.load %arg1[%c0_14, %c4, %c0_15] : memref<2x8x128xf32, #tpu.memory_space<vmem>>, vector<2x1x128xf32>
    %18 = vector.shape_cast %17 : vector<2x1x128xf32> to vector<2x128xf32>
    %19 = tpu.concatenate %16, %18 in 0 : vector<2x128xf32>, vector<2x128xf32> -> vector<4x128xf32>
    %20 = arith.addf %4, %9 : vector<4x128xf32>
    %21 = arith.addf %20, %14 : vector<4x128xf32>
    %22 = arith.addf %21, %19 : vector<4x128xf32>
    %cst = arith.constant 0.142857149 : f32
    %23 = vector.broadcast %cst : f32 to vector<4x128xf32>
    %24 = arith.mulf %22, %23 : vector<4x128xf32>
    %c0_16 = arith.constant 0 : index
    %c0_17 = arith.constant 0 : index
    %c0_18 = arith.constant 0 : index
    %25 = vector.load %arg2[%c0_16, %c0_17, %c0_18] : memref<4x128x256xbf16, #tpu.memory_space<vmem>>, vector<1x128x256xbf16>
    %26 = vector.shape_cast %25 : vector<1x128x256xbf16> to vector<128x256xbf16>
    %27 = arith.truncf %4 : vector<4x128xf32> to vector<4x128xbf16>
    %cst_19 = arith.constant dense<0.000000e+00> : vector<4x256xf32>
    %28 = tpu.matmul %27, %26, %cst_19 {dimension_numbers = #tpu.dot_dimension_numbers<[1], [0], [0], [1], [0, 0, 1, 1], [], []>} : vector<4x128xbf16>, vector<128x256xbf16>, vector<4x256xf32> -> vector<4x256xf32>
    %c1_20 = arith.constant 1 : index
    %c0_21 = arith.constant 0 : index
    %c0_22 = arith.constant 0 : index
    %29 = vector.load %arg2[%c1_20, %c0_21, %c0_22] : memref<4x128x256xbf16, #tpu.memory_space<vmem>>, vector<1x128x256xbf16>
    %30 = vector.shape_cast %29 : vector<1x128x256xbf16> to vector<128x256xbf16>
    %31 = arith.truncf %9 : vector<4x128xf32> to vector<4x128xbf16>
    %cst_23 = arith.constant dense<0.000000e+00> : vector<4x256xf32>
    %32 = tpu.matmul %31, %30, %cst_23 {dimension_numbers = #tpu.dot_dimension_numbers<[1], [0], [0], [1], [0, 0, 1, 1], [], []>} : vector<4x128xbf16>, vector<128x256xbf16>, vector<4x256xf32> -> vector<4x256xf32>
    %33 = arith.addf %28, %32 : vector<4x256xf32>
    %c2_24 = arith.constant 2 : index
    %c0_25 = arith.constant 0 : index
    %c0_26 = arith.constant 0 : index
    %34 = vector.load %arg2[%c2_24, %c0_25, %c0_26] : memref<4x128x256xbf16, #tpu.memory_space<vmem>>, vector<1x128x256xbf16>
    %35 = vector.shape_cast %34 : vector<1x128x256xbf16> to vector<128x256xbf16>
    %36 = arith.truncf %14 : vector<4x128xf32> to vector<4x128xbf16>
    %cst_27 = arith.constant dense<0.000000e+00> : vector<4x256xf32>
    %37 = tpu.matmul %36, %35, %cst_27 {dimension_numbers = #tpu.dot_dimension_numbers<[1], [0], [0], [1], [0, 0, 1, 1], [], []>} : vector<4x128xbf16>, vector<128x256xbf16>, vector<4x256xf32> -> vector<4x256xf32>
    %38 = arith.addf %33, %37 : vector<4x256xf32>
    %c3_28 = arith.constant 3 : index
    %c0_29 = arith.constant 0 : index
    %c0_30 = arith.constant 0 : index
    %39 = vector.load %arg2[%c3_28, %c0_29, %c0_30] : memref<4x128x256xbf16, #tpu.memory_space<vmem>>, vector<1x128x256xbf16>
    %40 = vector.shape_cast %39 : vector<1x128x256xbf16> to vector<128x256xbf16>
    %41 = arith.truncf %19 : vector<4x128xf32> to vector<4x128xbf16>
    %cst_31 = arith.constant dense<0.000000e+00> : vector<4x256xf32>
    %42 = tpu.matmul %41, %40, %cst_31 {dimension_numbers = #tpu.dot_dimension_numbers<[1], [0], [0], [1], [0, 0, 1, 1], [], []>} : vector<4x128xbf16>, vector<128x256xbf16>, vector<4x256xf32> -> vector<4x256xf32>
    %43 = arith.addf %38, %42 : vector<4x256xf32>
    %c0_32 = arith.constant 0 : index
    %c0_33 = arith.constant 0 : index
    %44 = vector.load %arg3[%c0_32, %c0_33] : memref<1x256xf32, #tpu.memory_space<vmem>>, vector<1x256xf32>
    %45 = vector.broadcast %44 : vector<1x256xf32> to vector<4x256xf32>
    %46 = arith.addf %43, %45 : vector<4x256xf32>
    %47 = vector.extract_strided_slice %46 {offsets = [0, 0], sizes = [4, 128], strides = [1, 1]} : vector<4x256xf32> to vector<4x128xf32>
    %48 = vector.extract_strided_slice %46 {offsets = [0, 128], sizes = [4, 128], strides = [1, 1]} : vector<4x256xf32> to vector<4x128xf32>
    %c0_34 = arith.constant 0 : index
    %c0_35 = arith.constant 0 : index
    %49 = vector.load %arg4[%c0_34, %c0_35] : memref<128x128xbf16, #tpu.memory_space<vmem>>, vector<128x128xbf16>
    %50 = arith.truncf %24 : vector<4x128xf32> to vector<4x128xbf16>
    %cst_36 = arith.constant dense<0.000000e+00> : vector<4x128xf32>
    %51 = tpu.matmul %50, %49, %cst_36 {dimension_numbers = #tpu.dot_dimension_numbers<[1], [0], [0], [1], [0, 0, 1, 1], [], []>} : vector<4x128xbf16>, vector<128x128xbf16>, vector<4x128xf32> -> vector<4x128xf32>
    %52 = arith.addf %48, %51 : vector<4x128xf32>
    %53 = arith.negf %52 : vector<4x128xf32>
    %54 = math.exp %53 : vector<4x128xf32>
    %cst_37 = arith.constant 1.000000e+00 : f32
    %55 = vector.broadcast %cst_37 : f32 to vector<4x128xf32>
    %56 = arith.addf %55, %54 : vector<4x128xf32>
    %57 = arith.divf %55, %56 : vector<4x128xf32>
    %58 = arith.mulf %24, %57 : vector<4x128xf32>
    %59 = arith.addf %47, %58 : vector<4x128xf32>
    %60 = vector.extract_strided_slice %59 {offsets = [0, 0], sizes = [2, 128], strides = [1, 1]} : vector<4x128xf32> to vector<2x128xf32>
    %61 = vector.extract_strided_slice %59 {offsets = [2, 0], sizes = [2, 128], strides = [1, 1]} : vector<4x128xf32> to vector<2x128xf32>
    %c0_38 = arith.constant 0 : index
    %c0_39 = arith.constant 0 : index
    %c0_40 = arith.constant 0 : index
    %62 = vector.load %arg1[%c0_38, %c0_39, %c0_40] : memref<2x8x128xf32, #tpu.memory_space<vmem>>, vector<2x1x128xf32>
    %63 = vector.shape_cast %62 : vector<2x1x128xf32> to vector<2x128xf32>
    %c0_41 = arith.constant 0 : index
    %c0_42 = arith.constant 0 : index
    %c0_43 = arith.constant 0 : index
    %64 = vector.load %arg5[%c0_41, %c0_42, %c0_43] : memref<3x128x384xbf16, #tpu.memory_space<vmem>>, vector<1x128x384xbf16>
    %65 = vector.shape_cast %64 : vector<1x128x384xbf16> to vector<128x384xbf16>
    %66 = arith.truncf %63 : vector<2x128xf32> to vector<2x128xbf16>
    %cst_44 = arith.constant dense<0.000000e+00> : vector<2x384xf32>
    %67 = tpu.matmul %66, %65, %cst_44 {dimension_numbers = #tpu.dot_dimension_numbers<[1], [0], [0], [1], [0, 0, 1, 1], [], []>} : vector<2x128xbf16>, vector<128x384xbf16>, vector<2x384xf32> -> vector<2x384xf32>
    %c1_45 = arith.constant 1 : index
    %c0_46 = arith.constant 0 : index
    %c0_47 = arith.constant 0 : index
    %68 = vector.load %arg5[%c1_45, %c0_46, %c0_47] : memref<3x128x384xbf16, #tpu.memory_space<vmem>>, vector<1x128x384xbf16>
    %69 = vector.shape_cast %68 : vector<1x128x384xbf16> to vector<128x384xbf16>
    %70 = arith.truncf %60 : vector<2x128xf32> to vector<2x128xbf16>
    %cst_48 = arith.constant dense<0.000000e+00> : vector<2x384xf32>
    %71 = tpu.matmul %70, %69, %cst_48 {dimension_numbers = #tpu.dot_dimension_numbers<[1], [0], [0], [1], [0, 0, 1, 1], [], []>} : vector<2x128xbf16>, vector<128x384xbf16>, vector<2x384xf32> -> vector<2x384xf32>
    %72 = arith.addf %67, %71 : vector<2x384xf32>
    %c2_49 = arith.constant 2 : index
    %c0_50 = arith.constant 0 : index
    %c0_51 = arith.constant 0 : index
    %73 = vector.load %arg5[%c2_49, %c0_50, %c0_51] : memref<3x128x384xbf16, #tpu.memory_space<vmem>>, vector<1x128x384xbf16>
    %74 = vector.shape_cast %73 : vector<1x128x384xbf16> to vector<128x384xbf16>
    %75 = arith.truncf %61 : vector<2x128xf32> to vector<2x128xbf16>
    %cst_52 = arith.constant dense<0.000000e+00> : vector<2x384xf32>
    %76 = tpu.matmul %75, %74, %cst_52 {dimension_numbers = #tpu.dot_dimension_numbers<[1], [0], [0], [1], [0, 0, 1, 1], [], []>} : vector<2x128xbf16>, vector<128x384xbf16>, vector<2x384xf32> -> vector<2x384xf32>
    %77 = arith.addf %72, %76 : vector<2x384xf32>
    %c0_53 = arith.constant 0 : index
    %c0_54 = arith.constant 0 : index
    %78 = vector.load %arg6[%c0_53, %c0_54] : memref<1x384xf32, #tpu.memory_space<vmem>>, vector<1x384xf32>
    %79 = vector.broadcast %78 : vector<1x384xf32> to vector<2x384xf32>
    %80 = arith.addf %77, %79 : vector<2x384xf32>
    %81 = arith.negf %80 : vector<2x384xf32>
    %82 = math.exp %81 : vector<2x384xf32>
    %cst_55 = arith.constant 1.000000e+00 : f32
    %83 = vector.broadcast %cst_55 : f32 to vector<2x384xf32>
    %84 = arith.addf %83, %82 : vector<2x384xf32>
    %85 = arith.divf %83, %84 : vector<2x384xf32>
    %86 = vector.extract_strided_slice %85 {offsets = [0, 0], sizes = [2, 128], strides = [1, 1]} : vector<2x384xf32> to vector<2x128xf32>
    %87 = arith.mulf %86, %63 : vector<2x128xf32>
    %88 = vector.extract_strided_slice %85 {offsets = [0, 128], sizes = [2, 128], strides = [1, 1]} : vector<2x384xf32> to vector<2x128xf32>
    %89 = arith.mulf %88, %60 : vector<2x128xf32>
    %90 = arith.addf %87, %89 : vector<2x128xf32>
    %91 = vector.extract_strided_slice %85 {offsets = [0, 256], sizes = [2, 128], strides = [1, 1]} : vector<2x384xf32> to vector<2x128xf32>
    %92 = arith.mulf %91, %61 : vector<2x128xf32>
    %93 = arith.addf %90, %92 : vector<2x128xf32>
    %c0_56 = arith.constant 0 : index
    %c0_57 = arith.constant 0 : index
    %94 = vector.load %arg7[%c0_56, %c0_57] : memref<128x16xbf16, #tpu.memory_space<vmem>>, vector<128x16xbf16>
    %95 = arith.truncf %93 : vector<2x128xf32> to vector<2x128xbf16>
    %cst_58 = arith.constant dense<0.000000e+00> : vector<2x16xf32>
    %96 = tpu.matmul %95, %94, %cst_58 {dimension_numbers = #tpu.dot_dimension_numbers<[1], [0], [0], [1], [0, 0, 1, 1], [], []>} : vector<2x128xbf16>, vector<128x16xbf16>, vector<2x16xf32> -> vector<2x16xf32>
    %c0_59 = arith.constant 0 : index
    %c0_60 = arith.constant 0 : index
    %97 = vector.load %arg8[%c0_59, %c0_60] : memref<1x16xf32, #tpu.memory_space<vmem>>, vector<1x16xf32>
    %98 = vector.broadcast %97 : vector<1x16xf32> to vector<2x16xf32>
    %99 = arith.addf %96, %98 : vector<2x16xf32>
    %c0_61 = arith.constant 0 : index
    %c0_62 = arith.constant 0 : index
    %100 = vector.load %arg9[%c0_61, %c0_62] : memref<2x16xf32, #tpu.memory_space<vmem>>, vector<2x16xf32>
    tpu.vector_store %arg9[%c0_61, %c0_62], %99 {strides = array<i32>} : memref<2x16xf32, #tpu.memory_space<vmem>>, vector<2x16xf32>,
    return
  }
  func.func @transform_0(%arg0: i32) -> (i32, i32, i32) {
    %c0_i32 = arith.constant 0 : i32
    %c0_i32_0 = arith.constant 0 : i32
    %c0_i32_1 = arith.constant 0 : i32
    return %arg0, %c0_i32, %c0_i32_0 : i32, i32, i32
  }
  func.func @transform_1(%arg0: i32) -> (i32, i32, i32) {
    %c0_i32 = arith.constant 0 : i32
    %c0_i32_0 = arith.constant 0 : i32
    %c0_i32_1 = arith.constant 0 : i32
    %c0_i32_2 = arith.constant 0 : i32
    return %c0_i32, %c0_i32_0, %c0_i32_1 : i32, i32, i32
  }
  func.func @transform_2(%arg0: i32) -> (i32, i32) {
    %c0_i32 = arith.constant 0 : i32
    %c0_i32_0 = arith.constant 0 : i32
    %c0_i32_1 = arith.constant 0 : i32
    return %c0_i32, %c0_i32_0 : i32, i32
  }
  func.func @transform_3(%arg0: i32) -> (i32, i32) {
    %c0_i32 = arith.constant 0 : i32
    %c0_i32_0 = arith.constant 0 : i32
    %c0_i32_1 = arith.constant 0 : i32
    return %c0_i32, %c0_i32_0 : i32, i32
  }
  func.func @transform_4(%arg0: i32) -> (i32, i32, i32) {
    %c0_i32 = arith.constant 0 : i32
    %c0_i32_0 = arith.constant 0 : i32
    %c0_i32_1 = arith.constant 0 : i32
    %c0_i32_2 = arith.constant 0 : i32
    return %c0_i32, %c0_i32_0, %c0_i32_1 : i32, i32, i32
  }
  func.func @transform_5(%arg0: i32) -> (i32, i32) {
    %c0_i32 = arith.constant 0 : i32
    %c0_i32_0 = arith.constant 0 : i32
    %c0_i32_1 = arith.constant 0 : i32
    return %c0_i32, %c0_i32_0 : i32, i32
  }
  func.func @transform_6(%arg0: i32) -> (i32, i32) {
    %c0_i32 = arith.constant 0 : i32
    %c0_i32_0 = arith.constant 0 : i32
    %c0_i32_1 = arith.constant 0 : i32
    return %c0_i32, %c0_i32_0 : i32, i32
  }
  func.func @transform_7(%arg0: i32) -> (i32, i32) {
    %c0_i32 = arith.constant 0 : i32
    %c0_i32_0 = arith.constant 0 : i32
    %c0_i32_1 = arith.constant 0 : i32
    return %c0_i32, %c0_i32_0 : i32, i32
  }
  func.func @transform_8(%arg0: i32) -> (i32, i32) {
    %c0_i32 = arith.constant 0 : i32
    %c0_i32_0 = arith.constant 0 : i32
    return %arg0, %c0_i32 : i32, i32
  }
}

</mosaic_0001>

<llo_original>
// kernel: tpu_custom_call.1
$region0: #{tpu_custom_call.1}
  #allocation0 [shape = 'u32[]', space=smem, size = 0x4, offset = 0x4, fixed_abs, tag = 'smem constant byte address 0x4 - core index']
  #allocation1 [shape = 'u32[144,128]{1,0:T(1,128)}', space=vmem, size = 0x12000, scoped, tag = 'internal scratch']
  %s0 = inlined_call_operand.vmem [shape: f32[2,8,128], index: 0, kind: input, shape index: {}]
  %s1 = inlined_call_operand.hbm [shape: bf16[4,128,256], index: 1, kind: input, shape index: {}]
  %s2 = inlined_call_operand.vmem [shape: f32[1,256], index: 2, kind: input, shape index: {}]
  %s3 = inlined_call_operand.vmem [shape: bf16[128,128], index: 3, kind: input, shape index: {}]
  %s4 = inlined_call_operand.hbm [shape: bf16[3,128,384], index: 4, kind: input, shape index: {}]
  %s5 = inlined_call_operand.hbm [shape: f32[1,384], index: 5, kind: input, shape index: {}]
  %s6 = inlined_call_operand.vmem [shape: bf16[128,16], index: 6, kind: input, shape index: {}]
  %s7 = inlined_call_operand.vmem [shape: f32[1,16], index: 7, kind: input, shape index: {}]
  %s8 = inlined_call_operand.hbm [shape: f32[2,16], index: 8, kind: output, shape index: {}]
  %s9 = sld [smem:[#allocation0]]
  $region54: #{tpu_custom_call.1} parent=0
    _
  %s11 = ssub.s32 1, %s9
  %s12 = scalar_select 0, %s11, %s9
  $region1: #{tpu_custom_call.1} parent=0
    #allocation2 [shape = 'u8[262144]{0}', space=vmem, size = 0x40000, scoped, tag = 'input window, operand 1, single buffered']
    #allocation3 [shape = 's32[1]{0}', space=sflag, size = 0x4, scoped, tag = 'scoped memory for tpu_custom_call.1']
    #allocation4 [shape = 's32[1]{0}', space=sflag, size = 0x4, scoped, tag = 'scoped memory for tpu_custom_call.1']
    #allocation5 [shape = 'u8[294912]{0}', space=vmem, size = 0x48000, scoped, tag = 'input window, operand 4, single buffered']
    #allocation6 [shape = 's32[1]{0}', space=sflag, size = 0x4, scoped, tag = 'scoped memory for tpu_custom_call.1']
    #allocation7 [shape = 'u8[1536]{0}', space=vmem, size = 0x800, scoped, tag = 'input window, operand 5, single buffered']
    #allocation8 [shape = 'u8[1024]{0}', space=vmem, size = 0x400, scoped, tag = 'output window, operand 0, single buffered']
    %13 = vsyncpa [#allocation3], 0
    %14 = vsyncpa [#allocation6], 0
    %15 = vsyncpa [#allocation4], 0
    // Predicated region
    $region2: #{tpu_custom_call.1} parent=1 // pred_check
      _
    $region3: #{tpu_custom_call.1} parent=1 // pred_check_branch
      %17 = sbr.rel (0) target = $region5
    $region4: #{tpu_custom_call.1} parent=1 // pred_region
      _
    $region5: #{tpu_custom_call.1} parent=1 // pred_fallthru
      _
    // Predicated region
    $region6: #{tpu_custom_call.1} parent=1 // pred_check
      _
    $region7: #{tpu_custom_call.1} parent=1 // pred_check_branch
      %19 = sbr.rel (0) target = $region9
    $region8: #{tpu_custom_call.1} parent=1 // pred_region
      %s21 = ssub.s32 8192, 8192
      %22 = vsyncadd [#allocation3], %s21
      %s23 = sshll.u32 [#allocation2], 4
      %s24 = int_to_ptr.vmem [resolvable:$true] %s23
      %29 = dma.hbm_to_vmem [thread:$0]  %s1, 8192, %s24, [#allocation3], 128, 128, 8
    $region9: #{tpu_custom_call.1} parent=1 // pred_fallthru
      _
    // Predicated region
    $region10: #{tpu_custom_call.1} parent=1 // pred_check
      _
    $region11: #{tpu_custom_call.1} parent=1 // pred_check_branch
      %31 = sbr.rel (0) target = $region13
    $region12: #{tpu_custom_call.1} parent=1 // pred_region
      _
    $region13: #{tpu_custom_call.1} parent=1 // pred_fallthru
      _
    // Predicated region
    $region14: #{tpu_custom_call.1} parent=1 // pred_check
      _
    $region15: #{tpu_custom_call.1} parent=1 // pred_check_branch
      %33 = sbr.rel (0) target = $region17
    $region16: #{tpu_custom_call.1} parent=1 // pred_region
      _
    $region17: #{tpu_custom_call.1} parent=1 // pred_fallthru
      _
    // Predicated region
    $region18: #{tpu_custom_call.1} parent=1 // pred_check
      _
    $region19: #{tpu_custom_call.1} parent=1 // pred_check_branch
      %35 = sbr.rel (0) target = $region21
    $region20: #{tpu_custom_call.1} parent=1 // pred_region
      %s37 = ssub.s32 9216, 9216
      %38 = vsyncadd [#allocation6], %s37
      %s39 = sshll.u32 [#allocation5], 4
      %s40 = int_to_ptr.vmem [resolvable:$true] %s39
      %45 = dma.hbm_to_vmem [thread:$0]  %s4, 9216, %s40, [#allocation6], 192, 192, 12
    $region21: #{tpu_custom_call.1} parent=1 // pred_fallthru
      _
    // Predicated region
    $region22: #{tpu_custom_call.1} parent=1 // pred_check
      _
    $region23: #{tpu_custom_call.1} parent=1 // pred_check_branch
      %47 = sbr.rel (0) target = $region25
    $region24: #{tpu_custom_call.1} parent=1 // pred_region
      %s49 = ssub.s32 48, 48
      %50 = vsyncadd [#allocation6], %s49
      %s52 = sshll.u32 [#allocation7], 4
      %s53 = int_to_ptr.vmem [resolvable:$true] %s52
      %55 = dma.hbm_to_vmem [thread:$0]  %s5, 48, %s53, [#allocation6]
    $region25: #{tpu_custom_call.1} parent=1 // pred_fallthru
      _
    // Predicated region
    $region26: #{tpu_custom_call.1} parent=1 // pred_check
      _
    $region27: #{tpu_custom_call.1} parent=1 // pred_check_branch
      %57 = sbr.rel (0) target = $region29
    $region28: #{tpu_custom_call.1} parent=1 // pred_region
      _
    $region29: #{tpu_custom_call.1} parent=1 // pred_fallthru
      _
    // Predicated region
    $region30: #{tpu_custom_call.1} parent=1 // pred_check
      _
    $region31: #{tpu_custom_call.1} parent=1 // pred_check_branch
      %59 = sbr.rel (0) target = $region33
    $region32: #{tpu_custom_call.1} parent=1 // pred_region
      _
    $region33: #{tpu_custom_call.1} parent=1 // pred_fallthru
      _
    // Predicated region
    $region34: #{tpu_custom_call.1} parent=1 // pred_check
      _
    $region35: #{tpu_custom_call.1} parent=1 // pred_check_branch
      %61 = sbr.rel (0) target = $region37
    $region36: #{tpu_custom_call.1} parent=1 // pred_region
      %62 = dma.done [#allocation3], 8192
    $region37: #{tpu_custom_call.1} parent=1 // pred_fallthru
      _
    // Predicated region
    $region38: #{tpu_custom_call.1} parent=1 // pred_check
      _
    $region39: #{tpu_custom_call.1} parent=1 // pred_check_branch
      %64 = sbr.rel (0) target = $region41
    $region40: #{tpu_custom_call.1} parent=1 // pred_region
      %65 = dma.done [#allocation6], 9216
    $region41: #{tpu_custom_call.1} parent=1 // pred_fallthru
      _
    // Predicated region
    $region42: #{tpu_custom_call.1} parent=1 // pred_check
      _
    $region43: #{tpu_custom_call.1} parent=1 // pred_check_branch
      %67 = sbr.rel (0) target = $region45
    $region44: #{tpu_custom_call.1} parent=1 // pred_region
      %68 = dma.done [#allocation6], 48
    $region45: #{tpu_custom_call.1} parent=1 // pred_fallthru
      _
    %v70 = vld [vmem:[%s0] sm:$0x1]
    %v71 = vld [vmem:[%s0 + $0x8] sm:$0x1]
    %v72 = vld [vmem:[%s0 + $0x7] sm:$0x1]
    %v73 = vld [vmem:[%s0 + $0xf] sm:$0x1]
    %v76 = vrot.slane %v71, 7
    %vm77 = vcmask 1041409
    %v78 = vsel %vm77, %v76, %v70
    %v82 = vrot.slane %v72, 6
    %v83 = vrot.slane %v73, 5
    %vm84 = vcmask 1043459
    %v85 = vsel %vm84, %v83, %v82
    %vm87 = vcmask 1041408
    %v88 = vsel %vm87, %v78, %v85
    %v89 = vld [vmem:[%s0 + $0x1] sm:$0x1]
    %v90 = vld [vmem:[%s0 + $0x9] sm:$0x1]
    %v91 = vld [vmem:[%s0 + $0x6] sm:$0x1]
    %v92 = vld [vmem:[%s0 + $0xe] sm:$0x1]
    %v95 = vrot.slane %v90, 7
    %v96 = vsel %vm77, %v95, %v89
    %v100 = vrot.slane %v91, 6
    %v101 = vrot.slane %v92, 5
    %v102 = vsel %vm84, %v101, %v100
    %v104 = vsel %vm87, %v96, %v102
    %v105 = vld [vmem:[%s0 + $0x2] sm:$0x1]
    %v106 = vld [vmem:[%s0 + $0xa] sm:$0x1]
    %v107 = vld [vmem:[%s0 + $0x5] sm:$0x1]
    %v108 = vld [vmem:[%s0 + $0xd] sm:$0x1]
    %v111 = vrot.slane %v106, 7
    %v112 = vsel %vm77, %v111, %v105
    %v116 = vrot.slane %v107, 6
    %v117 = vrot.slane %v108, 5
    %v118 = vsel %vm84, %v117, %v116
    %v120 = vsel %vm87, %v112, %v118
    %v121 = vld [vmem:[%s0 + $0x3] sm:$0x1]
    %v122 = vld [vmem:[%s0 + $0xb] sm:$0x1]
    %v123 = vld [vmem:[%s0 + $0x4] sm:$0x1]
    %v124 = vld [vmem:[%s0 + $0xc] sm:$0x1]
    %v127 = vrot.slane %v122, 7
    %v128 = vsel %vm77, %v127, %v121
    %v132 = vrot.slane %v123, 6
    %v133 = vrot.slane %v124, 5
    %v134 = vsel %vm84, %v133, %v132
    %v136 = vsel %vm87, %v128, %v134
    %v137 = vadd.f32 %v88, %v104
    %v138 = vadd.f32 %v137, %v120
    %v139 = vadd.f32 %v138, %v136
    %v140 = vmul.f32 %v139, 0.14285715
    %v141 = vld [vmem:[#allocation2] sm:$0xff]
    %v142 = vld [vmem:[#allocation2 + $0x8] sm:$0xff]
    %v143 = vld [vmem:[#allocation2 + $0x10] sm:$0xff]
    %v144 = vld [vmem:[#allocation2 + $0x18] sm:$0xff]
    %v145 = vld [vmem:[#allocation2 + $0x20] sm:$0xff]
    %v146 = vld [vmem:[#allocation2 + $0x28] sm:$0xff]
    %v147 = vld [vmem:[#allocation2 + $0x30] sm:$0xff]
    %v148 = vld [vmem:[#allocation2 + $0x38] sm:$0xff]
    %v149 = vld [vmem:[#allocation2 + $0x40] sm:$0xff]
    %v150 = vld [vmem:[#allocation2 + $0x48] sm:$0xff]
    %v151 = vld [vmem:[#allocation2 + $0x50] sm:$0xff]
    %v152 = vld [vmem:[#allocation2 + $0x58] sm:$0xff]
    %v153 = vld [vmem:[#allocation2 + $0x60] sm:$0xff]
    %v154 = vld [vmem:[#allocation2 + $0x68] sm:$0xff]
    %v155 = vld [vmem:[#allocation2 + $0x70] sm:$0xff]
    %v156 = vld [vmem:[#allocation2 + $0x78] sm:$0xff]
    %v157 = vpack.c.bf16 %v88, %v88
    %s158 = scalar_lea.vmem [#allocation2], 128
    %v159 = vld [vmem:[%s158] sm:$0xff]
    %v160 = vld [vmem:[%s158 + $0x8] sm:$0xff]
    %v161 = vld [vmem:[%s158 + $0x10] sm:$0xff]
    %v162 = vld [vmem:[%s158 + $0x18] sm:$0xff]
    %v163 = vld [vmem:[%s158 + $0x20] sm:$0xff]
    %v164 = vld [vmem:[%s158 + $0x28] sm:$0xff]
    %v165 = vld [vmem:[%s158 + $0x30] sm:$0xff]
    %v166 = vld [vmem:[%s158 + $0x38] sm:$0xff]
    %v167 = vld [vmem:[%s158 + $0x40] sm:$0xff]
    %v168 = vld [vmem:[%s158 + $0x48] sm:$0xff]
    %v169 = vld [vmem:[%s158 + $0x50] sm:$0xff]
    %v170 = vld [vmem:[%s158 + $0x58] sm:$0xff]
    %v171 = vld [vmem:[%s158 + $0x60] sm:$0xff]
    %v172 = vld [vmem:[%s158 + $0x68] sm:$0xff]
    %v173 = vld [vmem:[%s158 + $0x70] sm:$0xff]
    %v174 = vld [vmem:[%s158 + $0x78] sm:$0xff]
    %v175 = vpack.c.bf16 %v104, %v104
    %v192 = vunpack.c.l.b16 %v159
    %v193 = vunpack.c.h.b16 %v159
    %v194 = vunpack.c.l.b16 %v160
    %v195 = vunpack.c.h.b16 %v160
    %v196 = vunpack.c.l.b16 %v161
    %v197 = vunpack.c.h.b16 %v161
    %v198 = vunpack.c.l.b16 %v162
    %v199 = vunpack.c.h.b16 %v162
    %v200 = vunpack.c.l.b16 %v163
    %v201 = vunpack.c.h.b16 %v163
    %v202 = vunpack.c.l.b16 %v164
    %v203 = vunpack.c.h.b16 %v164
    %v204 = vunpack.c.l.b16 %v165
    %v205 = vunpack.c.h.b16 %v165
    %v206 = vunpack.c.l.b16 %v166
    %v207 = vunpack.c.h.b16 %v166
    %v208 = vunpack.c.l.b16 %v167
    %v209 = vunpack.c.h.b16 %v167
    %v210 = vunpack.c.l.b16 %v168
    %v211 = vunpack.c.h.b16 %v168
    %v212 = vunpack.c.l.b16 %v169
    %v213 = vunpack.c.h.b16 %v169
    %v214 = vunpack.c.l.b16 %v170
    %v215 = vunpack.c.h.b16 %v170
    %v216 = vunpack.c.l.b16 %v171
    %v217 = vunpack.c.h.b16 %v171
    %v218 = vunpack.c.l.b16 %v172
    %v219 = vunpack.c.h.b16 %v172
    %v220 = vunpack.c.l.b16 %v173
    %v221 = vunpack.c.h.b16 %v173
    %v222 = vunpack.c.l.b16 %v174
    %v223 = vunpack.c.h.b16 %v174
    %v224 = vpack.c.b16 %v194, %v192
    %v225 = vpack.c.b16 %v195, %v193
    %v226 = vpack.c.b16 %v198, %v196
    %v227 = vpack.c.b16 %v199, %v197
    %v228 = vpack.c.b16 %v202, %v200
    %v229 = vpack.c.b16 %v203, %v201
    %v230 = vpack.c.b16 %v206, %v204
    %v231 = vpack.c.b16 %v207, %v205
    %v232 = vpack.c.b16 %v210, %v208
    %v233 = vpack.c.b16 %v211, %v209
    %v234 = vpack.c.b16 %v214, %v212
    %v235 = vpack.c.b16 %v215, %v213
    %v236 = vpack.c.b16 %v218, %v216
    %v237 = vpack.c.b16 %v219, %v217
    %v238 = vpack.c.b16 %v222, %v220
    %v239 = vpack.c.b16 %v223, %v221
    %256 = vmatprep.subr.bf16.mxu0 %v225
    %257 = vmatpush1.bf16.msra.mxu0 %v224
    %258 = vmatprep.subr.bf16.mxu0 %v227
    %259 = vmatpush1.bf16.msra.mxu0 %v226
    %260 = vmatprep.subr.bf16.mxu0 %v229
    %261 = vmatpush1.bf16.msra.mxu0 %v228
    %262 = vmatprep.subr.bf16.mxu0 %v231
    %263 = vmatpush1.bf16.msra.mxu0 %v230
    %264 = vmatprep.subr.bf16.mxu0 %v233
    %265 = vmatpush1.bf16.msra.mxu0 %v232
    %266 = vmatprep.subr.bf16.mxu0 %v235
    %267 = vmatpush1.bf16.msra.mxu0 %v234
    %268 = vmatprep.subr.bf16.mxu0 %v237
    %269 = vmatpush1.bf16.msra.mxu0 %v236
    %270 = vmatprep.subr.bf16.mxu0 %v239
    %271 = vmatpush1.bf16.msra.mxu0 %v238
    %272 = vmatprep.subr.bf16.mxu0 0
    %273 = vmatpush1.bf16.msra.mxu0 0
    %274 = vmatprep.subr.bf16.mxu0 0
    %275 = vmatpush1.bf16.msra.mxu0 0
    %276 = vmatprep.subr.bf16.mxu0 0
    %277 = vmatpush1.bf16.msra.mxu0 0
    %278 = vmatprep.subr.bf16.mxu0 0
    %279 = vmatpush1.bf16.msra.mxu0 0
    %280 = vmatprep.subr.bf16.mxu0 0
    %281 = vmatpush1.bf16.msra.mxu0 0
    %282 = vmatprep.subr.bf16.mxu0 0
    %283 = vmatpush1.bf16.msra.mxu0 0
    %284 = vmatprep.subr.bf16.mxu0 0
    %285 = vmatpush1.bf16.msra.mxu0 0
    %286 = vmatprep.subr.bf16.mxu0 0
    %287 = vmatpush1.bf16.msra.mxu0 0
    %288 = vmatprep.mubr.bf16.mxu0 0
    %289 = vmatmul.mubr.bf16.gmra.mrb[0].mxu0 %v175
    %v290 = vpop.f32.mrb[0].mxu0
    %v291 = vadd.f32 0.0, %v290
    %v292 = vpop.f32.mrb[0].mxu0
    %v293 = vadd.f32 0.0, %v292
    %v294 = vpop.f32.mrb[0].mxu0
    %v295 = vpop.f32.mrb[0].mxu0
    %296 = vdwg.mxu0
    %v313 = vunpack.c.l.b16 %v141
    %v314 = vunpack.c.h.b16 %v141
    %v315 = vunpack.c.l.b16 %v142
    %v316 = vunpack.c.h.b16 %v142
    %v317 = vunpack.c.l.b16 %v143
    %v318 = vunpack.c.h.b16 %v143
    %v319 = vunpack.c.l.b16 %v144
    %v320 = vunpack.c.h.b16 %v144
    %v321 = vunpack.c.l.b16 %v145
    %v322 = vunpack.c.h.b16 %v145
    %v323 = vunpack.c.l.b16 %v146
    %v324 = vunpack.c.h.b16 %v146
    %v325 = vunpack.c.l.b16 %v147
    %v326 = vunpack.c.h.b16 %v147
    %v327 = vunpack.c.l.b16 %v148
    %v328 = vunpack.c.h.b16 %v148
    %v329 = vunpack.c.l.b16 %v149
    %v330 = vunpack.c.h.b16 %v149
    %v331 = vunpack.c.l.b16 %v150
    %v332 = vunpack.c.h.b16 %v150
    %v333 = vunpack.c.l.b16 %v151
    %v334 = vunpack.c.h.b16 %v151
    %v335 = vunpack.c.l.b16 %v152
    %v336 = vunpack.c.h.b16 %v152
    %v337 = vunpack.c.l.b16 %v153
    %v338 = vunpack.c.h.b16 %v153
    %v339 = vunpack.c.l.b16 %v154
    %v340 = vunpack.c.h.b16 %v154
    %v341 = vunpack.c.l.b16 %v155
    %v342 = vunpack.c.h.b16 %v155
    %v343 = vunpack.c.l.b16 %v156
    %v344 = vunpack.c.h.b16 %v156
    %v345 = vpack.c.b16 %v315, %v313
    %v346 = vpack.c.b16 %v316, %v314
    %v347 = vpack.c.b16 %v319, %v317
    %v348 = vpack.c.b16 %v320, %v318
    %v349 = vpack.c.b16 %v323, %v321
    %v350 = vpack.c.b16 %v324, %v322
    %v351 = vpack.c.b16 %v327, %v325
    %v352 = vpack.c.b16 %v328, %v326
    %v353 = vpack.c.b16 %v331, %v329
    %v354 = vpack.c.b16 %v332, %v330
    %v355 = vpack.c.b16 %v335, %v333
    %v356 = vpack.c.b16 %v336, %v334
    %v357 = vpack.c.b16 %v339, %v337
    %v358 = vpack.c.b16 %v340, %v338
    %v359 = vpack.c.b16 %v343, %v341
    %v360 = vpack.c.b16 %v344, %v342
    %377 = vmatprep.subr.bf16.mxu0 %v346
    %378 = vmatpush1.bf16.msra.mxu0 %v345
    %379 = vmatprep.subr.bf16.mxu0 %v348
    %380 = vmatpush1.bf16.msra.mxu0 %v347
    %381 = vmatprep.subr.bf16.mxu0 %v350
    %382 = vmatpush1.bf16.msra.mxu0 %v349
    %383 = vmatprep.subr.bf16.mxu0 %v352
    %384 = vmatpush1.bf16.msra.mxu0 %v351
    %385 = vmatprep.subr.bf16.mxu0 %v354
    %386 = vmatpush1.bf16.msra.mxu0 %v353
    %387 = vmatprep.subr.bf16.mxu0 %v356
    %388 = vmatpush1.bf16.msra.mxu0 %v355
    %389 = vmatprep.subr.bf16.mxu0 %v358
    %390 = vmatpush1.bf16.msra.mxu0 %v357
    %391 = vmatprep.subr.bf16.mxu0 %v360
    %392 = vmatpush1.bf16.msra.mxu0 %v359
    %393 = vmatprep.subr.bf16.mxu0 0
    %394 = vmatpush1.bf16.msra.mxu0 0
    %395 = vmatprep.subr.bf16.mxu0 0
    %396 = vmatpush1.bf16.msra.mxu0 0
    %397 = vmatprep.subr.bf16.mxu0 0
    %398 = vmatpush1.bf16.msra.mxu0 0
    %399 = vmatprep.subr.bf16.mxu0 0
    %400 = vmatpush1.bf16.msra.mxu0 0
    %401 = vmatprep.subr.bf16.mxu0 0
    %402 = vmatpush1.bf16.msra.mxu0 0
    %403 = vmatprep.subr.bf16.mxu0 0
    %404 = vmatpush1.bf16.msra.mxu0 0
    %405 = vmatprep.subr.bf16.mxu0 0
    %406 = vmatpush1.bf16.msra.mxu0 0
    %407 = vmatprep.subr.bf16.mxu0 0
    %408 = vmatpush1.bf16.msra.mxu0 0
    %409 = vmatprep.mubr.bf16.mxu0 0
    %410 = vmatmul.mubr.bf16.gmra.mrb[0].mxu0 %v157
    %v411 = vpop.f32.mrb[0].mxu0
    %v412 = vadd.f32 %v291, %v411
    %v413 = vpop.f32.mrb[0].mxu0
    %v414 = vadd.f32 %v293, %v413
    %v415 = vpop.f32.mrb[0].mxu0
    %v416 = vpop.f32.mrb[0].mxu0
    %417 = vdwg.mxu0
    %s418 = scalar_lea.vmem [#allocation2], 256
    %v419 = vld [vmem:[%s418] sm:$0xff]
    %v420 = vld [vmem:[%s418 + $0x8] sm:$0xff]
    %v421 = vld [vmem:[%s418 + $0x10] sm:$0xff]
    %v422 = vld [vmem:[%s418 + $0x18] sm:$0xff]
    %v423 = vld [vmem:[%s418 + $0x20] sm:$0xff]
    %v424 = vld [vmem:[%s418 + $0x28] sm:$0xff]
    %v425 = vld [vmem:[%s418 + $0x30] sm:$0xff]
    %v426 = vld [vmem:[%s418 + $0x38] sm:$0xff]
    %v427 = vld [vmem:[%s418 + $0x40] sm:$0xff]
    %v428 = vld [vmem:[%s418 + $0x48] sm:$0xff]
    %v429 = vld [vmem:[%s418 + $0x50] sm:$0xff]
    %v430 = vld [vmem:[%s418 + $0x58] sm:$0xff]
    %v431 = vld [vmem:[%s418 + $0x60] sm:$0xff]
    %v432 = vld [vmem:[%s418 + $0x68] sm:$0xff]
    %v433 = vld [vmem:[%s418 + $0x70] sm:$0xff]
    %v434 = vld [vmem:[%s418 + $0x78] sm:$0xff]
    %v435 = vpack.c.bf16 %v120, %v120
    %v452 = vunpack.c.l.b16 %v419
    %v453 = vunpack.c.h.b16 %v419
    %v454 = vunpack.c.l.b16 %v420
    %v455 = vunpack.c.h.b16 %v420
    %v456 = vunpack.c.l.b16 %v421
    %v457 = vunpack.c.h.b16 %v421
    %v458 = vunpack.c.l.b16 %v422
    %v459 = vunpack.c.h.b16 %v422
    %v460 = vunpack.c.l.b16 %v423
    %v461 = vunpack.c.h.b16 %v423
    %v462 = vunpack.c.l.b16 %v424
    %v463 = vunpack.c.h.b16 %v424
    %v464 = vunpack.c.l.b16 %v425
    %v465 = vunpack.c.h.b16 %v425
    %v466 = vunpack.c.l.b16 %v426
    %v467 = vunpack.c.h.b16 %v426
    %v468 = vunpack.c.l.b16 %v427
    %v469 = vunpack.c.h.b16 %v427
    %v470 = vunpack.c.l.b16 %v428
    %v471 = vunpack.c.h.b16 %v428
    %v472 = vunpack.c.l.b16 %v429
    %v473 = vunpack.c.h.b16 %v429
    %v474 = vunpack.c.l.b16 %v430
    %v475 = vunpack.c.h.b16 %v430
    %v476 = vunpack.c.l.b16 %v431
    %v477 = vunpack.c.h.b16 %v431
    %v478 = vunpack.c.l.b16 %v432
    %v479 = vunpack.c.h.b16 %v432
    %v480 = vunpack.c.l.b16 %v433
    %v481 = vunpack.c.h.b16 %v433
    %v482 = vunpack.c.l.b16 %v434
    %v483 = vunpack.c.h.b16 %v434
    %v484 = vpack.c.b16 %v454, %v452
    %v485 = vpack.c.b16 %v455, %v453
    %v486 = vpack.c.b16 %v458, %v456
    %v487 = vpack.c.b16 %v459, %v457
    %v488 = vpack.c.b16 %v462, %v460
    %v489 = vpack.c.b16 %v463, %v461
    %v490 = vpack.c.b16 %v466, %v464
    %v491 = vpack.c.b16 %v467, %v465
    %v492 = vpack.c.b16 %v470, %v468
    %v493 = vpack.c.b16 %v471, %v469
    %v494 = vpack.c.b16 %v474, %v472
    %v495 = vpack.c.b16 %v475, %v473
    %v496 = vpack.c.b16 %v478, %v476
    %v497 = vpack.c.b16 %v479, %v477
    %v498 = vpack.c.b16 %v482, %v480
    %v499 = vpack.c.b16 %v483, %v481
    %516 = vmatprep.subr.bf16.mxu0 %v485
    %517 = vmatpush1.bf16.msra.mxu0 %v484
    %518 = vmatprep.subr.bf16.mxu0 %v487
    %519 = vmatpush1.bf16.msra.mxu0 %v486
    %520 = vmatprep.subr.bf16.mxu0 %v489
    %521 = vmatpush1.bf16.msra.mxu0 %v488
    %522 = vmatprep.subr.bf16.mxu0 %v491
    %523 = vmatpush1.bf16.msra.mxu0 %v490
    %524 = vmatprep.subr.bf16.mxu0 %v493
    %525 = vmatpush1.bf16.msra.mxu0 %v492
    %526 = vmatprep.subr.bf16.mxu0 %v495
    %527 = vmatpush1.bf16.msra.mxu0 %v494
    %528 = vmatprep.subr.bf16.mxu0 %v497
    %529 = vmatpush1.bf16.msra.mxu0 %v496
    %530 = vmatprep.subr.bf16.mxu0 %v499
    %531 = vmatpush1.bf16.msra.mxu0 %v498
    %532 = vmatprep.subr.bf16.mxu0 0
    %533 = vmatpush1.bf16.msra.mxu0 0
    %534 = vmatprep.subr.bf16.mxu0 0
    %535 = vmatpush1.bf16.msra.mxu0 0
    %536 = vmatprep.subr.bf16.mxu0 0
    %537 = vmatpush1.bf16.msra.mxu0 0
    %538 = vmatprep.subr.bf16.mxu0 0
    %539 = vmatpush1.bf16.msra.mxu0 0
    %540 = vmatprep.subr.bf16.mxu0 0
    %541 = vmatpush1.bf16.msra.mxu0 0
    %542 = vmatprep.subr.bf16.mxu0 0
    %543 = vmatpush1.bf16.msra.mxu0 0
    %544 = vmatprep.subr.bf16.mxu0 0
    %545 = vmatpush1.bf16.msra.mxu0 0
    %546 = vmatprep.subr.bf16.mxu0 0
    %547 = vmatpush1.bf16.msra.mxu0 0
    %548 = vmatprep.mubr.bf16.mxu0 0
    %549 = vmatmul.mubr.bf16.gmra.mrb[0].mxu0 %v435
    %v550 = vpop.f32.mrb[0].mxu0
    %v551 = vadd.f32 0.0, %v550
    %v552 = vpop.f32.mrb[0].mxu0
    %v553 = vadd.f32 0.0, %v552
    %v554 = vpop.f32.mrb[0].mxu0
    %v555 = vpop.f32.mrb[0].mxu0
    %556 = vdwg.mxu0
    %v557 = vadd.f32 %v412, %v551
    %v558 = vadd.f32 %v414, %v553
    %s559 = scalar_lea.vmem [#allocation2], 384
    %v560 = vld [vmem:[%s559] sm:$0xff]
    %v561 = vld [vmem:[%s559 + $0x8] sm:$0xff]
    %v562 = vld [vmem:[%s559 + $0x10] sm:$0xff]
    %v563 = vld [vmem:[%s559 + $0x18] sm:$0xff]
    %v564 = vld [vmem:[%s559 + $0x20] sm:$0xff]
    %v565 = vld [vmem:[%s559 + $0x28] sm:$0xff]
    %v566 = vld [vmem:[%s559 + $0x30] sm:$0xff]
    %v567 = vld [vmem:[%s559 + $0x38] sm:$0xff]
    %v568 = vld [vmem:[%s559 + $0x40] sm:$0xff]
    %v569 = vld [vmem:[%s559 + $0x48] sm:$0xff]
    %v570 = vld [vmem:[%s559 + $0x50] sm:$0xff]
    %v571 = vld [vmem:[%s559 + $0x58] sm:$0xff]
    %v572 = vld [vmem:[%s559 + $0x60] sm:$0xff]
    %v573 = vld [vmem:[%s559 + $0x68] sm:$0xff]
    %v574 = vld [vmem:[%s559 + $0x70] sm:$0xff]
    %v575 = vld [vmem:[%s559 + $0x78] sm:$0xff]
    %v576 = vpack.c.bf16 %v136, %v136
    %v593 = vunpack.c.l.b16 %v560
    %v594 = vunpack.c.h.b16 %v560
    %v595 = vunpack.c.l.b16 %v561
    %v596 = vunpack.c.h.b16 %v561
    %v597 = vunpack.c.l.b16 %v562
    %v598 = vunpack.c.h.b16 %v562
    %v599 = vunpack.c.l.b16 %v563
    %v600 = vunpack.c.h.b16 %v563
    %v601 = vunpack.c.l.b16 %v564
    %v602 = vunpack.c.h.b16 %v564
    %v603 = vunpack.c.l.b16 %v565
    %v604 = vunpack.c.h.b16 %v565
    %v605 = vunpack.c.l.b16 %v566
    %v606 = vunpack.c.h.b16 %v566
    %v607 = vunpack.c.l.b16 %v567
    %v608 = vunpack.c.h.b16 %v567
    %v609 = vunpack.c.l.b16 %v568
    %v610 = vunpack.c.h.b16 %v568
    %v611 = vunpack.c.l.b16 %v569
    %v612 = vunpack.c.h.b16 %v569
    %v613 = vunpack.c.l.b16 %v570
    %v614 = vunpack.c.h.b16 %v570
    %v615 = vunpack.c.l.b16 %v571
    %v616 = vunpack.c.h.b16 %v571
    %v617 = vunpack.c.l.b16 %v572
    %v618 = vunpack.c.h.b16 %v572
    %v619 = vunpack.c.l.b16 %v573
    %v620 = vunpack.c.h.b16 %v573
    %v621 = vunpack.c.l.b16 %v574
    %v622 = vunpack.c.h.b16 %v574
    %v623 = vunpack.c.l.b16 %v575
    %v624 = vunpack.c.h.b16 %v575
    %v625 = vpack.c.b16 %v595, %v593
    %v626 = vpack.c.b16 %v596, %v594
    %v627 = vpack.c.b16 %v599, %v597
    %v628 = vpack.c.b16 %v600, %v598
    %v629 = vpack.c.b16 %v603, %v601
    %v630 = vpack.c.b16 %v604, %v602
    %v631 = vpack.c.b16 %v607, %v605
    %v632 = vpack.c.b16 %v608, %v606
    %v633 = vpack.c.b16 %v611, %v609
    %v634 = vpack.c.b16 %v612, %v610
    %v635 = vpack.c.b16 %v615, %v613
    %v636 = vpack.c.b16 %v616, %v614
    %v637 = vpack.c.b16 %v619, %v617
    %v638 = vpack.c.b16 %v620, %v618
    %v639 = vpack.c.b16 %v623, %v621
    %v640 = vpack.c.b16 %v624, %v622
    %657 = vmatprep.subr.bf16.mxu0 %v626
    %658 = vmatpush1.bf16.msra.mxu0 %v625
    %659 = vmatprep.subr.bf16.mxu0 %v628
    %660 = vmatpush1.bf16.msra.mxu0 %v627
    %661 = vmatprep.subr.bf16.mxu0 %v630
    %662 = vmatpush1.bf16.msra.mxu0 %v629
    %663 = vmatprep.subr.bf16.mxu0 %v632
    %664 = vmatpush1.bf16.msra.mxu0 %v631
    %665 = vmatprep.subr.bf16.mxu0 %v634
    %666 = vmatpush1.bf16.msra.mxu0 %v633
    %667 = vmatprep.subr.bf16.mxu0 %v636
    %668 = vmatpush1.bf16.msra.mxu0 %v635
    %669 = vmatprep.subr.bf16.mxu0 %v638
    %670 = vmatpush1.bf16.msra.mxu0 %v637
    %671 = vmatprep.subr.bf16.mxu0 %v640
    %672 = vmatpush1.bf16.msra.mxu0 %v639
    %673 = vmatprep.subr.bf16.mxu0 0
    %674 = vmatpush1.bf16.msra.mxu0 0
    %675 = vmatprep.subr.bf16.mxu0 0
    %676 = vmatpush1.bf16.msra.mxu0 0
    %677 = vmatprep.subr.bf16.mxu0 0
    %678 = vmatpush1.bf16.msra.mxu0 0
    %679 = vmatprep.subr.bf16.mxu0 0
    %680 = vmatpush1.bf16.msra.mxu0 0
    %681 = vmatprep.subr.bf16.mxu0 0
    %682 = vmatpush1.bf16.msra.mxu0 0
    %683 = vmatprep.subr.bf16.mxu0 0
    %684 = vmatpush1.bf16.msra.mxu0 0
    %685 = vmatprep.subr.bf16.mxu0 0
    %686 = vmatpush1.bf16.msra.mxu0 0
    %687 = vmatprep.subr.bf16.mxu0 0
    %688 = vmatpush1.bf16.msra.mxu0 0
    %689 = vmatprep.mubr.bf16.mxu0 0
    %690 = vmatmul.mubr.bf16.gmra.mrb[0].mxu0 %v576
    %v691 = vpop.f32.mrb[0].mxu0
    %v692 = vadd.f32 0.0, %v691
    %v693 = vpop.f32.mrb[0].mxu0
    %v694 = vadd.f32 0.0, %v693
    %v695 = vpop.f32.mrb[0].mxu0
    %v696 = vpop.f32.mrb[0].mxu0
    %697 = vdwg.mxu0
    %v698 = vadd.f32 %v557, %v692
    %v699 = vadd.f32 %v558, %v694
    %v700 = vld [vmem:[%s2] sm:$0x3]
    %v702 = vlaneseq
    %v703 = vshrl.u32 %v702, 7
    %v704 = vsub.s32 0, %v703
    %v705 = vrot.slane %v700, %v704
    %v706 = vlaneseq
    %v707 = vshrl.u32 %v706, 7
    %v708 = vsub.s32 1, %v707
    %v709 = vrot.slane %v700, %v708
    %v712 = vadd.f32 %v698, %v705
    %v713 = vadd.f32 %v699, %v709
    %v714 = vld [vmem:[%s3] sm:$0xf]
    %v715 = vld [vmem:[%s3 + $0x4] sm:$0xf]
    %v716 = vld [vmem:[%s3 + $0x8] sm:$0xf]
    %v717 = vld [vmem:[%s3 + $0xc] sm:$0xf]
    %v718 = vld [vmem:[%s3 + $0x10] sm:$0xf]
    %v719 = vld [vmem:[%s3 + $0x14] sm:$0xf]
    %v720 = vld [vmem:[%s3 + $0x18] sm:$0xf]
    %v721 = vld [vmem:[%s3 + $0x1c] sm:$0xf]
    %v722 = vld [vmem:[%s3 + $0x20] sm:$0xf]
    %v723 = vld [vmem:[%s3 + $0x24] sm:$0xf]
    %v724 = vld [vmem:[%s3 + $0x28] sm:$0xf]
    %v725 = vld [vmem:[%s3 + $0x2c] sm:$0xf]
    %v726 = vld [vmem:[%s3 + $0x30] sm:$0xf]
    %v727 = vld [vmem:[%s3 + $0x34] sm:$0xf]
    %v728 = vld [vmem:[%s3 + $0x38] sm:$0xf]
    %v729 = vld [vmem:[%s3 + $0x3c] sm:$0xf]
    %v730 = vpack.c.bf16 %v140, %v140
    %v747 = vunpack.c.l.b16 %v714
    %v748 = vunpack.c.l.b16 %v715
    %v749 = vunpack.c.l.b16 %v716
    %v750 = vunpack.c.l.b16 %v717
    %v751 = vunpack.c.l.b16 %v718
    %v752 = vunpack.c.l.b16 %v719
    %v753 = vunpack.c.l.b16 %v720
    %v754 = vunpack.c.l.b16 %v721
    %v755 = vunpack.c.l.b16 %v722
    %v756 = vunpack.c.l.b16 %v723
    %v757 = vunpack.c.l.b16 %v724
    %v758 = vunpack.c.l.b16 %v725
    %v759 = vunpack.c.l.b16 %v726
    %v760 = vunpack.c.l.b16 %v727
    %v761 = vunpack.c.l.b16 %v728
    %v762 = vunpack.c.l.b16 %v729
    %v763 = vpack.c.b16 %v748, %v747
    %v764 = vpack.c.b16 %v750, %v749
    %v765 = vpack.c.b16 %v752, %v751
    %v766 = vpack.c.b16 %v754, %v753
    %v767 = vpack.c.b16 %v756, %v755
    %v768 = vpack.c.b16 %v758, %v757
    %v769 = vpack.c.b16 %v760, %v759
    %v770 = vpack.c.b16 %v762, %v761
    %779 = vmatprep.subr.bf16.mxu0 0
    %780 = vmatpush1.bf16.msra.mxu0 %v763
    %781 = vmatprep.subr.bf16.mxu0 0
    %782 = vmatpush1.bf16.msra.mxu0 %v764
    %783 = vmatprep.subr.bf16.mxu0 0
    %784 = vmatpush1.bf16.msra.mxu0 %v765
    %785 = vmatprep.subr.bf16.mxu0 0
    %786 = vmatpush1.bf16.msra.mxu0 %v766
    %787 = vmatprep.subr.bf16.mxu0 0
    %788 = vmatpush1.bf16.msra.mxu0 %v767
    %789 = vmatprep.subr.bf16.mxu0 0
    %790 = vmatpush1.bf16.msra.mxu0 %v768
    %791 = vmatprep.subr.bf16.mxu0 0
    %792 = vmatpush1.bf16.msra.mxu0 %v769
    %793 = vmatprep.subr.bf16.mxu0 0
    %794 = vmatpush1.bf16.msra.mxu0 %v770
    %795 = vmatprep.subr.bf16.mxu0 0
    %796 = vmatpush1.bf16.msra.mxu0 0
    %797 = vmatprep.subr.bf16.mxu0 0
    %798 = vmatpush1.bf16.msra.mxu0 0
    %799 = vmatprep.subr.bf16.mxu0 0
    %800 = vmatpush1.bf16.msra.mxu0 0
    %801 = vmatprep.subr.bf16.mxu0 0
    %802 = vmatpush1.bf16.msra.mxu0 0
    %803 = vmatprep.subr.bf16.mxu0 0
    %804 = vmatpush1.bf16.msra.mxu0 0
    %805 = vmatprep.subr.bf16.mxu0 0
    %806 = vmatpush1.bf16.msra.mxu0 0
    %807 = vmatprep.subr.bf16.mxu0 0
    %808 = vmatpush1.bf16.msra.mxu0 0
    %809 = vmatprep.subr.bf16.mxu0 0
    %810 = vmatpush1.bf16.msra.mxu0 0
    %811 = vmatprep.mubr.bf16.mxu0 0
    %812 = vmatmul.mubr.bf16.gmra.mrb[0].mxu0 %v730
    %v813 = vpop.f32.mrb[0].mxu0
    %v814 = vadd.f32 0.0, %v813
    %v815 = vpop.f32.mrb[0].mxu0
    %v816 = vpop.f32.mrb[0].mxu0
    %v817 = vpop.f32.mrb[0].mxu0
    %818 = vdwg.mxu0
    %v819 = vadd.f32 %v713, %v814
    %v820 = vxor.u32 %v819, 2147483648
    %v821 = vmul.f32 %v820, 1.442695
    %v822 = vpow.pop %v821
    %v823 = vadd.f32 %v822, 1.0
    %v824 = vrcp.pop %v823
    %v825 = vmul.f32 1.0, %v824
    %v826 = vmul.f32 %v140, %v825
    %v827 = vadd.f32 %v712, %v826
    %v828 = vld [vmem:[#allocation5] sm:$0xff]
    %v829 = vld [vmem:[#allocation5 + $0x8] sm:$0xf]
    %v830 = vld [vmem:[#allocation5 + $0xc] sm:$0xff]
    %v831 = vld [vmem:[#allocation5 + $0x14] sm:$0xf]
    %v832 = vld [vmem:[#allocation5 + $0x18] sm:$0xff]
    %v833 = vld [vmem:[#allocation5 + $0x20] sm:$0xf]
    %v834 = vld [vmem:[#allocation5 + $0x24] sm:$0xff]
    %v835 = vld [vmem:[#allocation5 + $0x2c] sm:$0xf]
    %v836 = vld [vmem:[#allocation5 + $0x30] sm:$0xff]
    %v837 = vld [vmem:[#allocation5 + $0x38] sm:$0xf]
    %v838 = vld [vmem:[#allocation5 + $0x3c] sm:$0xff]
    %v839 = vld [vmem:[#allocation5 + $0x44] sm:$0xf]
    %v840 = vld [vmem:[#allocation5 + $0x48] sm:$0xff]
    %v841 = vld [vmem:[#allocation5 + $0x50] sm:$0xf]
    %v842 = vld [vmem:[#allocation5 + $0x54] sm:$0xff]
    %v843 = vld [vmem:[#allocation5 + $0x5c] sm:$0xf]
    %v844 = vld [vmem:[#allocation5 + $0x60] sm:$0xff]
    %v845 = vld [vmem:[#allocation5 + $0x68] sm:$0xf]
    %v846 = vld [vmem:[#allocation5 + $0x6c] sm:$0xff]
    %v847 = vld [vmem:[#allocation5 + $0x74] sm:$0xf]
    %v848 = vld [vmem:[#allocation5 + $0x78] sm:$0xff]
    %v849 = vld [vmem:[#allocation5 + $0x80] sm:$0xf]
    %v850 = vld [vmem:[#allocation5 + $0x84] sm:$0xff]
    %v851 = vld [vmem:[#allocation5 + $0x8c] sm:$0xf]
    %v852 = vld [vmem:[#allocation5 + $0x90] sm:$0xff]
    %v853 = vld [vmem:[#allocation5 + $0x98] sm:$0xf]
    %v854 = vld [vmem:[#allocation5 + $0x9c] sm:$0xff]
    %v855 = vld [vmem:[#allocation5 + $0xa4] sm:$0xf]
    %v856 = vld [vmem:[#allocation5 + $0xa8] sm:$0xff]
    %v857 = vld [vmem:[#allocation5 + $0xb0] sm:$0xf]
    %v858 = vld [vmem:[#allocation5 + $0xb4] sm:$0xff]
    %v859 = vld [vmem:[#allocation5 + $0xbc] sm:$0xf]
    %v860 = vpack.c.bf16 %v70, %v70
    %v861 = vpack.c.bf16 %v71, %v71
    %s862 = scalar_lea.vmem [#allocation5], 192
    %v863 = vld [vmem:[%s862] sm:$0xff]
    %v864 = vld [vmem:[%s862 + $0x8] sm:$0xf]
    %v865 = vld [vmem:[%s862 + $0xc] sm:$0xff]
    %v866 = vld [vmem:[%s862 + $0x14] sm:$0xf]
    %v867 = vld [vmem:[%s862 + $0x18] sm:$0xff]
    %v868 = vld [vmem:[%s862 + $0x20] sm:$0xf]
    %v869 = vld [vmem:[%s862 + $0x24] sm:$0xff]
    %v870 = vld [vmem:[%s862 + $0x2c] sm:$0xf]
    %v871 = vld [vmem:[%s862 + $0x30] sm:$0xff]
    %v872 = vld [vmem:[%s862 + $0x38] sm:$0xf]
    %v873 = vld [vmem:[%s862 + $0x3c] sm:$0xff]
    %v874 = vld [vmem:[%s862 + $0x44] sm:$0xf]
    %v875 = vld [vmem:[%s862 + $0x48] sm:$0xff]
    %v876 = vld [vmem:[%s862 + $0x50] sm:$0xf]
    %v877 = vld [vmem:[%s862 + $0x54] sm:$0xff]
    %v878 = vld [vmem:[%s862 + $0x5c] sm:$0xf]
    %v879 = vld [vmem:[%s862 + $0x60] sm:$0xff]
    %v880 = vld [vmem:[%s862 + $0x68] sm:$0xf]
    %v881 = vld [vmem:[%s862 + $0x6c] sm:$0xff]
    %v882 = vld [vmem:[%s862 + $0x74] sm:$0xf]
    %v883 = vld [vmem:[%s862 + $0x78] sm:$0xff]
    %v884 = vld [vmem:[%s862 + $0x80] sm:$0xf]
    %v885 = vld [vmem:[%s862 + $0x84] sm:$0xff]
    %v886 = vld [vmem:[%s862 + $0x8c] sm:$0xf]
    %v887 = vld [vmem:[%s862 + $0x90] sm:$0xff]
    %v888 = vld [vmem:[%s862 + $0x98] sm:$0xf]
    %v889 = vld [vmem:[%s862 + $0x9c] sm:$0xff]
    %v890 = vld [vmem:[%s862 + $0xa4] sm:$0xf]
    %v891 = vld [vmem:[%s862 + $0xa8] sm:$0xff]
    %v892 = vld [vmem:[%s862 + $0xb0] sm:$0xf]
    %v893 = vld [vmem:[%s862 + $0xb4] sm:$0xff]
    %v894 = vld [vmem:[%s862 + $0xbc] sm:$0xf]
    %v895 = vpack.c.bf16 %v827, %v827
    %v928 = vunpack.c.l.b16 %v863
    %v929 = vunpack.c.h.b16 %v863
    %v930 = vunpack.c.l.b16 %v864
    %v931 = vunpack.c.l.b16 %v865
    %v932 = vunpack.c.h.b16 %v865
    %v933 = vunpack.c.l.b16 %v866
    %v934 = vunpack.c.l.b16 %v867
    %v935 = vunpack.c.h.b16 %v867
    %v936 = vunpack.c.l.b16 %v868
    %v937 = vunpack.c.l.b16 %v869
    %v938 = vunpack.c.h.b16 %v869
    %v939 = vunpack.c.l.b16 %v870
    %v940 = vunpack.c.l.b16 %v871
    %v941 = vunpack.c.h.b16 %v871
    %v942 = vunpack.c.l.b16 %v872
    %v943 = vunpack.c.l.b16 %v873
    %v944 = vunpack.c.h.b16 %v873
    %v945 = vunpack.c.l.b16 %v874
    %v946 = vunpack.c.l.b16 %v875
    %v947 = vunpack.c.h.b16 %v875
    %v948 = vunpack.c.l.b16 %v876
    %v949 = vunpack.c.l.b16 %v877
    %v950 = vunpack.c.h.b16 %v877
    %v951 = vunpack.c.l.b16 %v878
    %v952 = vunpack.c.l.b16 %v879
    %v953 = vunpack.c.h.b16 %v879
    %v954 = vunpack.c.l.b16 %v880
    %v955 = vunpack.c.l.b16 %v881
    %v956 = vunpack.c.h.b16 %v881
    %v957 = vunpack.c.l.b16 %v882
    %v958 = vunpack.c.l.b16 %v883
    %v959 = vunpack.c.h.b16 %v883
    %v960 = vunpack.c.l.b16 %v884
    %v961 = vunpack.c.l.b16 %v885
    %v962 = vunpack.c.h.b16 %v885
    %v963 = vunpack.c.l.b16 %v886
    %v964 = vunpack.c.l.b16 %v887
    %v965 = vunpack.c.h.b16 %v887
    %v966 = vunpack.c.l.b16 %v888
    %v967 = vunpack.c.l.b16 %v889
    %v968 = vunpack.c.h.b16 %v889
    %v969 = vunpack.c.l.b16 %v890
    %v970 = vunpack.c.l.b16 %v891
    %v971 = vunpack.c.h.b16 %v891
    %v972 = vunpack.c.l.b16 %v892
    %v973 = vunpack.c.l.b16 %v893
    %v974 = vunpack.c.h.b16 %v893
    %v975 = vunpack.c.l.b16 %v894
    %v976 = vpack.c.b16 %v931, %v928
    %v977 = vpack.c.b16 %v932, %v929
    %v978 = vpack.c.b16 %v933, %v930
    %v979 = vpack.c.b16 %v937, %v934
    %v980 = vpack.c.b16 %v938, %v935
    %v981 = vpack.c.b16 %v939, %v936
    %v982 = vpack.c.b16 %v943, %v940
    %v983 = vpack.c.b16 %v944, %v941
    %v984 = vpack.c.b16 %v945, %v942
    %v985 = vpack.c.b16 %v949, %v946
    %v986 = vpack.c.b16 %v950, %v947
    %v987 = vpack.c.b16 %v951, %v948
    %v988 = vpack.c.b16 %v955, %v952
    %v989 = vpack.c.b16 %v956, %v953
    %v990 = vpack.c.b16 %v957, %v954
    %v991 = vpack.c.b16 %v961, %v958
    %v992 = vpack.c.b16 %v962, %v959
    %v993 = vpack.c.b16 %v963, %v960
    %v994 = vpack.c.b16 %v967, %v964
    %v995 = vpack.c.b16 %v968, %v965
    %v996 = vpack.c.b16 %v969, %v966
    %v997 = vpack.c.b16 %v973, %v970
    %v998 = vpack.c.b16 %v974, %v971
    %v999 = vpack.c.b16 %v975, %v972
    %1024 = vmatprep.subr.bf16.mxu0 %v977
    %1025 = vmatpush1.bf16.msra.mxu0 %v976
    %1026 = vmatprep.subr.bf16.mxu0 %v980
    %1027 = vmatpush1.bf16.msra.mxu0 %v979
    %1028 = vmatprep.subr.bf16.mxu0 %v983
    %1029 = vmatpush1.bf16.msra.mxu0 %v982
    %1030 = vmatprep.subr.bf16.mxu0 %v986
    %1031 = vmatpush1.bf16.msra.mxu0 %v985
    %1032 = vmatprep.subr.bf16.mxu0 %v989
    %1033 = vmatpush1.bf16.msra.mxu0 %v988
    %1034 = vmatprep.subr.bf16.mxu0 %v992
    %1035 = vmatpush1.bf16.msra.mxu0 %v991
    %1036 = vmatprep.subr.bf16.mxu0 %v995
    %1037 = vmatpush1.bf16.msra.mxu0 %v994
    %1038 = vmatprep.subr.bf16.mxu0 %v998
    %1039 = vmatpush1.bf16.msra.mxu0 %v997
    %1040 = vmatprep.subr.bf16.mxu0 0
    %1041 = vmatpush1.bf16.msra.mxu0 0
    %1042 = vmatprep.subr.bf16.mxu0 0
    %1043 = vmatpush1.bf16.msra.mxu0 0
    %1044 = vmatprep.subr.bf16.mxu0 0
    %1045 = vmatpush1.bf16.msra.mxu0 0
    %1046 = vmatprep.subr.bf16.mxu0 0
    %1047 = vmatpush1.bf16.msra.mxu0 0
    %1048 = vmatprep.subr.bf16.mxu0 0
    %1049 = vmatpush1.bf16.msra.mxu0 0
    %1050 = vmatprep.subr.bf16.mxu0 0
    %1051 = vmatpush1.bf16.msra.mxu0 0
    %1052 = vmatprep.subr.bf16.mxu0 0
    %1053 = vmatpush1.bf16.msra.mxu0 0
    %1054 = vmatprep.subr.bf16.mxu0 0
    %1055 = vmatpush1.bf16.msra.mxu0 0
    %1056 = vmatprep.mubr.bf16.mxu0 0
    %1057 = vmatmul.mubr.bf16.gmra.mrb[0].mxu0 %v895
    %v1058 = vpop.f32.mrb[0].mxu0
    %v1059 = vadd.f32 0.0, %v1058
    %v1060 = vpop.f32.mrb[0].mxu0
    %v1061 = vadd.f32 0.0, %v1060
    %v1062 = vpop.f32.mrb[0].mxu0
    %v1063 = vpop.f32.mrb[0].mxu0
    %1064 = vdwg.mxu0
    %1065 = vmatprep.subr.bf16.mxu0 0
    %1066 = vmatpush1.bf16.msra.mxu0 %v978
    %1067 = vmatprep.subr.bf16.mxu0 0
    %1068 = vmatpush1.bf16.msra.mxu0 %v981
    %1069 = vmatprep.subr.bf16.mxu0 0
    %1070 = vmatpush1.bf16.msra.mxu0 %v984
    %1071 = vmatprep.subr.bf16.mxu0 0
    %1072 = vmatpush1.bf16.msra.mxu0 %v987
    %1073 = vmatprep.subr.bf16.mxu0 0
    %1074 = vmatpush1.bf16.msra.mxu0 %v990
    %1075 = vmatprep.subr.bf16.mxu0 0
    %1076 = vmatpush1.bf16.msra.mxu0 %v993
    %1077 = vmatprep.subr.bf16.mxu0 0
    %1078 = vmatpush1.bf16.msra.mxu0 %v996
    %1079 = vmatprep.subr.bf16.mxu0 0
    %1080 = vmatpush1.bf16.msra.mxu0 %v999
    %1081 = vmatprep.subr.bf16.mxu0 0
    %1082 = vmatpush1.bf16.msra.mxu0 0
    %1083 = vmatprep.subr.bf16.mxu0 0
    %1084 = vmatpush1.bf16.msra.mxu0 0
    %1085 = vmatprep.subr.bf16.mxu0 0
    %1086 = vmatpush1.bf16.msra.mxu0 0
    %1087 = vmatprep.subr.bf16.mxu0 0
    %1088 = vmatpush1.bf16.msra.mxu0 0
    %1089 = vmatprep.subr.bf16.mxu0 0
    %1090 = vmatpush1.bf16.msra.mxu0 0
    %1091 = vmatprep.subr.bf16.mxu0 0
    %1092 = vmatpush1.bf16.msra.mxu0 0
    %1093 = vmatprep.subr.bf16.mxu0 0
    %1094 = vmatpush1.bf16.msra.mxu0 0
    %1095 = vmatprep.subr.bf16.mxu0 0
    %1096 = vmatpush1.bf16.msra.mxu0 0
    %1097 = vmatprep.mubr.bf16.mxu0 0
    %1098 = vmatmul.mubr.bf16.gmra.mrb[0].mxu0 %v895
    %v1099 = vpop.f32.mrb[0].mxu0
    %v1100 = vadd.f32 0.0, %v1099
    %v1101 = vpop.f32.mrb[0].mxu0
    %v1102 = vpop.f32.mrb[0].mxu0
    %v1103 = vpop.f32.mrb[0].mxu0
    %1104 = vdwg.mxu0
    %v1107 = vunpack.c.l.b16 %v860
    %v1108 = vunpack.c.l.b16 %v861
    %v1109 = vrot.slane %v1108, 7
    %v1110 = vsel %vm77, %v1109, %v1107
    %v1111 = vpack.c.b16 %v1110, %v1110
    %v1145 = vunpack.c.l.b16 %v828
    %v1146 = vunpack.c.h.b16 %v828
    %v1147 = vunpack.c.l.b16 %v829
    %v1148 = vunpack.c.l.b16 %v830
    %v1149 = vunpack.c.h.b16 %v830
    %v1150 = vunpack.c.l.b16 %v831
    %v1151 = vunpack.c.l.b16 %v832
    %v1152 = vunpack.c.h.b16 %v832
    %v1153 = vunpack.c.l.b16 %v833
    %v1154 = vunpack.c.l.b16 %v834
    %v1155 = vunpack.c.h.b16 %v834
    %v1156 = vunpack.c.l.b16 %v835
    %v1157 = vunpack.c.l.b16 %v836
    %v1158 = vunpack.c.h.b16 %v836
    %v1159 = vunpack.c.l.b16 %v837
    %v1160 = vunpack.c.l.b16 %v838
    %v1161 = vunpack.c.h.b16 %v838
    %v1162 = vunpack.c.l.b16 %v839
    %v1163 = vunpack.c.l.b16 %v840
    %v1164 = vunpack.c.h.b16 %v840
    %v1165 = vunpack.c.l.b16 %v841
    %v1166 = vunpack.c.l.b16 %v842
    %v1167 = vunpack.c.h.b16 %v842
    %v1168 = vunpack.c.l.b16 %v843
    %v1169 = vunpack.c.l.b16 %v844
    %v1170 = vunpack.c.h.b16 %v844
    %v1171 = vunpack.c.l.b16 %v845
    %v1172 = vunpack.c.l.b16 %v846
    %v1173 = vunpack.c.h.b16 %v846
    %v1174 = vunpack.c.l.b16 %v847
    %v1175 = vunpack.c.l.b16 %v848
    %v1176 = vunpack.c.h.b16 %v848
    %v1177 = vunpack.c.l.b16 %v849
    %v1178 = vunpack.c.l.b16 %v850
    %v1179 = vunpack.c.h.b16 %v850
    %v1180 = vunpack.c.l.b16 %v851
    %v1181 = vunpack.c.l.b16 %v852
    %v1182 = vunpack.c.h.b16 %v852
    %v1183 = vunpack.c.l.b16 %v853
    %v1184 = vunpack.c.l.b16 %v854
    %v1185 = vunpack.c.h.b16 %v854
    %v1186 = vunpack.c.l.b16 %v855
    %v1187 = vunpack.c.l.b16 %v856
    %v1188 = vunpack.c.h.b16 %v856
    %v1189 = vunpack.c.l.b16 %v857
    %v1190 = vunpack.c.l.b16 %v858
    %v1191 = vunpack.c.h.b16 %v858
    %v1192 = vunpack.c.l.b16 %v859
    %v1193 = vpack.c.b16 %v1148, %v1145
    %v1194 = vpack.c.b16 %v1149, %v1146
    %v1195 = vpack.c.b16 %v1150, %v1147
    %v1196 = vpack.c.b16 %v1154, %v1151
    %v1197 = vpack.c.b16 %v1155, %v1152
    %v1198 = vpack.c.b16 %v1156, %v1153
    %v1199 = vpack.c.b16 %v1160, %v1157
    %v1200 = vpack.c.b16 %v1161, %v1158
    %v1201 = vpack.c.b16 %v1162, %v1159
    %v1202 = vpack.c.b16 %v1166, %v1163
    %v1203 = vpack.c.b16 %v1167, %v1164
    %v1204 = vpack.c.b16 %v1168, %v1165
    %v1205 = vpack.c.b16 %v1172, %v1169
    %v1206 = vpack.c.b16 %v1173, %v1170
    %v1207 = vpack.c.b16 %v1174, %v1171
    %v1208 = vpack.c.b16 %v1178, %v1175
    %v1209 = vpack.c.b16 %v1179, %v1176
    %v1210 = vpack.c.b16 %v1180, %v1177
    %v1211 = vpack.c.b16 %v1184, %v1181
    %v1212 = vpack.c.b16 %v1185, %v1182
    %v1213 = vpack.c.b16 %v1186, %v1183
    %v1214 = vpack.c.b16 %v1190, %v1187
    %v1215 = vpack.c.b16 %v1191, %v1188
    %v1216 = vpack.c.b16 %v1192, %v1189
    %1241 = vmatprep.subr.bf16.mxu0 %v1194
    %1242 = vmatpush1.bf16.msra.mxu0 %v1193
    %1243 = vmatprep.subr.bf16.mxu0 %v1197
    %1244 = vmatpush1.bf16.msra.mxu0 %v1196
    %1245 = vmatprep.subr.bf16.mxu0 %v1200
    %1246 = vmatpush1.bf16.msra.mxu0 %v1199
    %1247 = vmatprep.subr.bf16.mxu0 %v1203
    %1248 = vmatpush1.bf16.msra.mxu0 %v1202
    %1249 = vmatprep.subr.bf16.mxu0 %v1206
    %1250 = vmatpush1.bf16.msra.mxu0 %v1205
    %1251 = vmatprep.subr.bf16.mxu0 %v1209
    %1252 = vmatpush1.bf16.msra.mxu0 %v1208
    %1253 = vmatprep.subr.bf16.mxu0 %v1212
    %1254 = vmatpush1.bf16.msra.mxu0 %v1211
    %1255 = vmatprep.subr.bf16.mxu0 %v1215
    %1256 = vmatpush1.bf16.msra.mxu0 %v1214
    %1257 = vmatprep.subr.bf16.mxu0 0
    %1258 = vmatpush1.bf16.msra.mxu0 0
    %1259 = vmatprep.subr.bf16.mxu0 0
    %1260 = vmatpush1.bf16.msra.mxu0 0
    %1261 = vmatprep.subr.bf16.mxu0 0
    %1262 = vmatpush1.bf16.msra.mxu0 0
    %1263 = vmatprep.subr.bf16.mxu0 0
    %1264 = vmatpush1.bf16.msra.mxu0 0
    %1265 = vmatprep.subr.bf16.mxu0 0
    %1266 = vmatpush1.bf16.msra.mxu0 0
    %1267 = vmatprep.subr.bf16.mxu0 0
    %1268 = vmatpush1.bf16.msra.mxu0 0
    %1269 = vmatprep.subr.bf16.mxu0 0
    %1270 = vmatpush1.bf16.msra.mxu0 0
    %1271 = vmatprep.subr.bf16.mxu0 0
    %1272 = vmatpush1.bf16.msra.mxu0 0
    %1273 = vmatprep.mubr.bf16.mxu0 0
    %1274 = vmatmul.mubr.bf16.gmra.mrb[0].mxu0 %v1111
    %v1275 = vpop.f32.mrb[0].mxu0
    %v1276 = vadd.f32 %v1059, %v1275
    %v1277 = vpop.f32.mrb[0].mxu0
    %v1278 = vadd.f32 %v1061, %v1277
    %v1279 = vpop.f32.mrb[0].mxu0
    %v1280 = vpop.f32.mrb[0].mxu0
    %1281 = vdwg.mxu0
    %1282 = vmatprep.subr.bf16.mxu0 0
    %1283 = vmatpush1.bf16.msra.mxu0 %v1195
    %1284 = vmatprep.subr.bf16.mxu0 0
    %1285 = vmatpush1.bf16.msra.mxu0 %v1198
    %1286 = vmatprep.subr.bf16.mxu0 0
    %1287 = vmatpush1.bf16.msra.mxu0 %v1201
    %1288 = vmatprep.subr.bf16.mxu0 0
    %1289 = vmatpush1.bf16.msra.mxu0 %v1204
    %1290 = vmatprep.subr.bf16.mxu0 0
    %1291 = vmatpush1.bf16.msra.mxu0 %v1207
    %1292 = vmatprep.subr.bf16.mxu0 0
    %1293 = vmatpush1.bf16.msra.mxu0 %v1210
    %1294 = vmatprep.subr.bf16.mxu0 0
    %1295 = vmatpush1.bf16.msra.mxu0 %v1213
    %1296 = vmatprep.subr.bf16.mxu0 0
    %1297 = vmatpush1.bf16.msra.mxu0 %v1216
    %1298 = vmatprep.subr.bf16.mxu0 0
    %1299 = vmatpush1.bf16.msra.mxu0 0
    %1300 = vmatprep.subr.bf16.mxu0 0
    %1301 = vmatpush1.bf16.msra.mxu0 0
    %1302 = vmatprep.subr.bf16.mxu0 0
    %1303 = vmatpush1.bf16.msra.mxu0 0
    %1304 = vmatprep.subr.bf16.mxu0 0
    %1305 = vmatpush1.bf16.msra.mxu0 0
    %1306 = vmatprep.subr.bf16.mxu0 0
    %1307 = vmatpush1.bf16.msra.mxu0 0
    %1308 = vmatprep.subr.bf16.mxu0 0
    %1309 = vmatpush1.bf16.msra.mxu0 0
    %1310 = vmatprep.subr.bf16.mxu0 0
    %1311 = vmatpush1.bf16.msra.mxu0 0
    %1312 = vmatprep.subr.bf16.mxu0 0
    %1313 = vmatpush1.bf16.msra.mxu0 0
    %1314 = vmatprep.mubr.bf16.mxu0 0
    %1315 = vmatmul.mubr.bf16.gmra.mrb[0].mxu0 %v1111
    %v1316 = vpop.f32.mrb[0].mxu0
    %v1317 = vadd.f32 %v1100, %v1316
    %v1318 = vpop.f32.mrb[0].mxu0
    %v1319 = vpop.f32.mrb[0].mxu0
    %v1320 = vpop.f32.mrb[0].mxu0
    %1321 = vdwg.mxu0
    %s1322 = scalar_lea.vmem [#allocation5], 384
    %v1323 = vld [vmem:[%s1322] sm:$0xff]
    %v1324 = vld [vmem:[%s1322 + $0x8] sm:$0xf]
    %v1325 = vld [vmem:[%s1322 + $0xc] sm:$0xff]
    %v1326 = vld [vmem:[%s1322 + $0x14] sm:$0xf]
    %v1327 = vld [vmem:[%s1322 + $0x18] sm:$0xff]
    %v1328 = vld [vmem:[%s1322 + $0x20] sm:$0xf]
    %v1329 = vld [vmem:[%s1322 + $0x24] sm:$0xff]
    %v1330 = vld [vmem:[%s1322 + $0x2c] sm:$0xf]
    %v1331 = vld [vmem:[%s1322 + $0x30] sm:$0xff]
    %v1332 = vld [vmem:[%s1322 + $0x38] sm:$0xf]
    %v1333 = vld [vmem:[%s1322 + $0x3c] sm:$0xff]
    %v1334 = vld [vmem:[%s1322 + $0x44] sm:$0xf]
    %v1335 = vld [vmem:[%s1322 + $0x48] sm:$0xff]
    %v1336 = vld [vmem:[%s1322 + $0x50] sm:$0xf]
    %v1337 = vld [vmem:[%s1322 + $0x54] sm:$0xff]
    %v1338 = vld [vmem:[%s1322 + $0x5c] sm:$0xf]
    %v1339 = vld [vmem:[%s1322 + $0x60] sm:$0xff]
    %v1340 = vld [vmem:[%s1322 + $0x68] sm:$0xf]
    %v1341 = vld [vmem:[%s1322 + $0x6c] sm:$0xff]
    %v1342 = vld [vmem:[%s1322 + $0x74] sm:$0xf]
    %v1343 = vld [vmem:[%s1322 + $0x78] sm:$0xff]
    %v1344 = vld [vmem:[%s1322 + $0x80] sm:$0xf]
    %v1345 = vld [vmem:[%s1322 + $0x84] sm:$0xff]
    %v1346 = vld [vmem:[%s1322 + $0x8c] sm:$0xf]
    %v1347 = vld [vmem:[%s1322 + $0x90] sm:$0xff]
    %v1348 = vld [vmem:[%s1322 + $0x98] sm:$0xf]
    %v1349 = vld [vmem:[%s1322 + $0x9c] sm:$0xff]
    %v1350 = vld [vmem:[%s1322 + $0xa4] sm:$0xf]
    %v1351 = vld [vmem:[%s1322 + $0xa8] sm:$0xff]
    %v1352 = vld [vmem:[%s1322 + $0xb0] sm:$0xf]
    %v1353 = vld [vmem:[%s1322 + $0xb4] sm:$0xff]
    %v1354 = vld [vmem:[%s1322 + $0xbc] sm:$0xf]
    %v1356 = vrot.slane %v895, 1
    %v1390 = vunpack.c.l.b16 %v1323
    %v1391 = vunpack.c.h.b16 %v1323
    %v1392 = vunpack.c.l.b16 %v1324
    %v1393 = vunpack.c.l.b16 %v1325
    %v1394 = vunpack.c.h.b16 %v1325
    %v1395 = vunpack.c.l.b16 %v1326
    %v1396 = vunpack.c.l.b16 %v1327
    %v1397 = vunpack.c.h.b16 %v1327
    %v1398 = vunpack.c.l.b16 %v1328
    %v1399 = vunpack.c.l.b16 %v1329
    %v1400 = vunpack.c.h.b16 %v1329
    %v1401 = vunpack.c.l.b16 %v1330
    %v1402 = vunpack.c.l.b16 %v1331
    %v1403 = vunpack.c.h.b16 %v1331
    %v1404 = vunpack.c.l.b16 %v1332
    %v1405 = vunpack.c.l.b16 %v1333
    %v1406 = vunpack.c.h.b16 %v1333
    %v1407 = vunpack.c.l.b16 %v1334
    %v1408 = vunpack.c.l.b16 %v1335
    %v1409 = vunpack.c.h.b16 %v1335
    %v1410 = vunpack.c.l.b16 %v1336
    %v1411 = vunpack.c.l.b16 %v1337
    %v1412 = vunpack.c.h.b16 %v1337
    %v1413 = vunpack.c.l.b16 %v1338
    %v1414 = vunpack.c.l.b16 %v1339
    %v1415 = vunpack.c.h.b16 %v1339
    %v1416 = vunpack.c.l.b16 %v1340
    %v1417 = vunpack.c.l.b16 %v1341
    %v1418 = vunpack.c.h.b16 %v1341
    %v1419 = vunpack.c.l.b16 %v1342
    %v1420 = vunpack.c.l.b16 %v1343
    %v1421 = vunpack.c.h.b16 %v1343
    %v1422 = vunpack.c.l.b16 %v1344
    %v1423 = vunpack.c.l.b16 %v1345
    %v1424 = vunpack.c.h.b16 %v1345
    %v1425 = vunpack.c.l.b16 %v1346
    %v1426 = vunpack.c.l.b16 %v1347
    %v1427 = vunpack.c.h.b16 %v1347
    %v1428 = vunpack.c.l.b16 %v1348
    %v1429 = vunpack.c.l.b16 %v1349
    %v1430 = vunpack.c.h.b16 %v1349
    %v1431 = vunpack.c.l.b16 %v1350
    %v1432 = vunpack.c.l.b16 %v1351
    %v1433 = vunpack.c.h.b16 %v1351
    %v1434 = vunpack.c.l.b16 %v1352
    %v1435 = vunpack.c.l.b16 %v1353
    %v1436 = vunpack.c.h.b16 %v1353
    %v1437 = vunpack.c.l.b16 %v1354
    %v1438 = vpack.c.b16 %v1393, %v1390
    %v1439 = vpack.c.b16 %v1394, %v1391
    %v1440 = vpack.c.b16 %v1395, %v1392
    %v1441 = vpack.c.b16 %v1399, %v1396
    %v1442 = vpack.c.b16 %v1400, %v1397
    %v1443 = vpack.c.b16 %v1401, %v1398
    %v1444 = vpack.c.b16 %v1405, %v1402
    %v1445 = vpack.c.b16 %v1406, %v1403
    %v1446 = vpack.c.b16 %v1407, %v1404
    %v1447 = vpack.c.b16 %v1411, %v1408
    %v1448 = vpack.c.b16 %v1412, %v1409
    %v1449 = vpack.c.b16 %v1413, %v1410
    %v1450 = vpack.c.b16 %v1417, %v1414
    %v1451 = vpack.c.b16 %v1418, %v1415
    %v1452 = vpack.c.b16 %v1419, %v1416
    %v1453 = vpack.c.b16 %v1423, %v1420
    %v1454 = vpack.c.b16 %v1424, %v1421
    %v1455 = vpack.c.b16 %v1425, %v1422
    %v1456 = vpack.c.b16 %v1429, %v1426
    %v1457 = vpack.c.b16 %v1430, %v1427
    %v1458 = vpack.c.b16 %v1431, %v1428
    %v1459 = vpack.c.b16 %v1435, %v1432
    %v1460 = vpack.c.b16 %v1436, %v1433
    %v1461 = vpack.c.b16 %v1437, %v1434
    %1486 = vmatprep.subr.bf16.mxu0 %v1439
    %1487 = vmatpush1.bf16.msra.mxu0 %v1438
    %1488 = vmatprep.subr.bf16.mxu0 %v1442
    %1489 = vmatpush1.bf16.msra.mxu0 %v1441
    %1490 = vmatprep.subr.bf16.mxu0 %v1445
    %1491 = vmatpush1.bf16.msra.mxu0 %v1444
    %1492 = vmatprep.subr.bf16.mxu0 %v1448
    %1493 = vmatpush1.bf16.msra.mxu0 %v1447
    %1494 = vmatprep.subr.bf16.mxu0 %v1451
    %1495 = vmatpush1.bf16.msra.mxu0 %v1450
    %1496 = vmatprep.subr.bf16.mxu0 %v1454
    %1497 = vmatpush1.bf16.msra.mxu0 %v1453
    %1498 = vmatprep.subr.bf16.mxu0 %v1457
    %1499 = vmatpush1.bf16.msra.mxu0 %v1456
    %1500 = vmatprep.subr.bf16.mxu0 %v1460
    %1501 = vmatpush1.bf16.msra.mxu0 %v1459
    %1502 = vmatprep.subr.bf16.mxu0 0
    %1503 = vmatpush1.bf16.msra.mxu0 0
    %1504 = vmatprep.subr.bf16.mxu0 0
    %1505 = vmatpush1.bf16.msra.mxu0 0
    %1506 = vmatprep.subr.bf16.mxu0 0
    %1507 = vmatpush1.bf16.msra.mxu0 0
    %1508 = vmatprep.subr.bf16.mxu0 0
    %1509 = vmatpush1.bf16.msra.mxu0 0
    %1510 = vmatprep.subr.bf16.mxu0 0
    %1511 = vmatpush1.bf16.msra.mxu0 0
    %1512 = vmatprep.subr.bf16.mxu0 0
    %1513 = vmatpush1.bf16.msra.mxu0 0
    %1514 = vmatprep.subr.bf16.mxu0 0
    %1515 = vmatpush1.bf16.msra.mxu0 0
    %1516 = vmatprep.subr.bf16.mxu0 0
    %1517 = vmatpush1.bf16.msra.mxu0 0
    %1518 = vmatprep.mubr.bf16.mxu0 0
    %1519 = vmatmul.mubr.bf16.gmra.mrb[0].mxu0 %v1356
    %v1520 = vpop.f32.mrb[0].mxu0
    %v1521 = vadd.f32 0.0, %v1520
    %v1522 = vpop.f32.mrb[0].mxu0
    %v1523 = vadd.f32 0.0, %v1522
    %v1524 = vpop.f32.mrb[0].mxu0
    %v1525 = vpop.f32.mrb[0].mxu0
    %1526 = vdwg.mxu0
    %1527 = vmatprep.subr.bf16.mxu0 0
    %1528 = vmatpush1.bf16.msra.mxu0 %v1440
    %1529 = vmatprep.subr.bf16.mxu0 0
    %1530 = vmatpush1.bf16.msra.mxu0 %v1443
    %1531 = vmatprep.subr.bf16.mxu0 0
    %1532 = vmatpush1.bf16.msra.mxu0 %v1446
    %1533 = vmatprep.subr.bf16.mxu0 0
    %1534 = vmatpush1.bf16.msra.mxu0 %v1449
    %1535 = vmatprep.subr.bf16.mxu0 0
    %1536 = vmatpush1.bf16.msra.mxu0 %v1452
    %1537 = vmatprep.subr.bf16.mxu0 0
    %1538 = vmatpush1.bf16.msra.mxu0 %v1455
    %1539 = vmatprep.subr.bf16.mxu0 0
    %1540 = vmatpush1.bf16.msra.mxu0 %v1458
    %1541 = vmatprep.subr.bf16.mxu0 0
    %1542 = vmatpush1.bf16.msra.mxu0 %v1461
    %1543 = vmatprep.subr.bf16.mxu0 0
    %1544 = vmatpush1.bf16.msra.mxu0 0
    %1545 = vmatprep.subr.bf16.mxu0 0
    %1546 = vmatpush1.bf16.msra.mxu0 0
    %1547 = vmatprep.subr.bf16.mxu0 0
    %1548 = vmatpush1.bf16.msra.mxu0 0
    %1549 = vmatprep.subr.bf16.mxu0 0
    %1550 = vmatpush1.bf16.msra.mxu0 0
    %1551 = vmatprep.subr.bf16.mxu0 0
    %1552 = vmatpush1.bf16.msra.mxu0 0
    %1553 = vmatprep.subr.bf16.mxu0 0
    %1554 = vmatpush1.bf16.msra.mxu0 0
    %1555 = vmatprep.subr.bf16.mxu0 0
    %1556 = vmatpush1.bf16.msra.mxu0 0
    %1557 = vmatprep.subr.bf16.mxu0 0
    %1558 = vmatpush1.bf16.msra.mxu0 0
    %1559 = vmatprep.mubr.bf16.mxu0 0
    %1560 = vmatmul.mubr.bf16.gmra.mrb[0].mxu0 %v1356
    %v1561 = vpop.f32.mrb[0].mxu0
    %v1562 = vadd.f32 0.0, %v1561
    %v1563 = vpop.f32.mrb[0].mxu0
    %v1564 = vpop.f32.mrb[0].mxu0
    %v1565 = vpop.f32.mrb[0].mxu0
    %1566 = vdwg.mxu0
    %v1567 = vadd.f32 %v1276, %v1521
    %v1568 = vadd.f32 %v1278, %v1523
    %v1569 = vadd.f32 %v1317, %v1562
    %v1570 = vld [vmem:[#allocation7] sm:$0x7]
    %v1572 = vlaneseq
    %v1573 = vshrl.u32 %v1572, 7
    %v1574 = vsub.s32 0, %v1573
    %v1575 = vrot.slane %v1570, %v1574
    %v1576 = vlaneseq
    %v1577 = vshrl.u32 %v1576, 7
    %v1578 = vsub.s32 1, %v1577
    %v1579 = vrot.slane %v1570, %v1578
    %v1580 = vlaneseq
    %v1581 = vshrl.u32 %v1580, 7
    %v1582 = vsub.s32 2, %v1581
    %v1583 = vrot.slane %v1570, %v1582
    %v1587 = vadd.f32 %v1567, %v1575
    %v1588 = vadd.f32 %v1568, %v1579
    %v1589 = vadd.f32 %v1569, %v1583
    %v1590 = vxor.u32 %v1587, 2147483648
    %v1591 = vxor.u32 %v1588, 2147483648
    %v1592 = vxor.u32 %v1589, 2147483648
    %v1593 = vmul.f32 %v1590, 1.442695
    %v1594 = vpow.pop %v1593
    %v1595 = vmul.f32 %v1591, 1.442695
    %v1596 = vpow.pop %v1595
    %v1597 = vmul.f32 %v1592, 1.442695
    %v1598 = vpow.pop %v1597
    %v1599 = vadd.f32 %v1594, 1.0
    %v1600 = vadd.f32 %v1596, 1.0
    %v1601 = vadd.f32 %v1598, 1.0
    %v1602 = vrcp.pop %v1599
    %v1603 = vmul.f32 1.0, %v1602
    %v1604 = vrcp.pop %v1600
    %v1605 = vmul.f32 1.0, %v1604
    %v1606 = vrcp.pop %v1601
    %v1607 = vmul.f32 1.0, %v1606
    %v1608 = vmul.f32 %v1603, %v78
    %v1609 = vmul.f32 %v1605, %v827
    %v1610 = vadd.f32 %v1608, %v1609
    %v1612 = vrot.slane %v827, 2
    %v1614 = vmul.f32 %v1607, %v1612
    %v1615 = vadd.f32 %v1610, %v1614
    %v1616 = vld [vmem:[%s6] sm:$0xf]
    %v1617 = vld [vmem:[%s6 + $0x4] sm:$0xf]
    %v1618 = vld [vmem:[%s6 + $0x8] sm:$0xf]
    %v1619 = vld [vmem:[%s6 + $0xc] sm:$0xf]
    %v1620 = vld [vmem:[%s6 + $0x10] sm:$0xf]
    %v1621 = vld [vmem:[%s6 + $0x14] sm:$0xf]
    %v1622 = vld [vmem:[%s6 + $0x18] sm:$0xf]
    %v1623 = vld [vmem:[%s6 + $0x1c] sm:$0xf]
    %v1624 = vld [vmem:[%s6 + $0x20] sm:$0xf]
    %v1625 = vld [vmem:[%s6 + $0x24] sm:$0xf]
    %v1626 = vld [vmem:[%s6 + $0x28] sm:$0xf]
    %v1627 = vld [vmem:[%s6 + $0x2c] sm:$0xf]
    %v1628 = vld [vmem:[%s6 + $0x30] sm:$0xf]
    %v1629 = vld [vmem:[%s6 + $0x34] sm:$0xf]
    %v1630 = vld [vmem:[%s6 + $0x38] sm:$0xf]
    %v1631 = vld [vmem:[%s6 + $0x3c] sm:$0xf]
    %v1632 = vpack.c.bf16 %v1615, %v1615
    %v1633 = vld [vmem:[%s7] sm:$0x1]
    %v1635 = vlaneseq
    %v1636 = vshrl.u32 %v1635, 7
    %v1637 = vsub.s32 0, %v1636
    %v1638 = vrot.slane %v1633, %v1637
    %v1656 = vunpack.c.l.b16 %v1616
    %v1657 = vunpack.c.l.b16 %v1617
    %v1658 = vunpack.c.l.b16 %v1618
    %v1659 = vunpack.c.l.b16 %v1619
    %v1660 = vunpack.c.l.b16 %v1620
    %v1661 = vunpack.c.l.b16 %v1621
    %v1662 = vunpack.c.l.b16 %v1622
    %v1663 = vunpack.c.l.b16 %v1623
    %v1664 = vunpack.c.l.b16 %v1624
    %v1665 = vunpack.c.l.b16 %v1625
    %v1666 = vunpack.c.l.b16 %v1626
    %v1667 = vunpack.c.l.b16 %v1627
    %v1668 = vunpack.c.l.b16 %v1628
    %v1669 = vunpack.c.l.b16 %v1629
    %v1670 = vunpack.c.l.b16 %v1630
    %v1671 = vunpack.c.l.b16 %v1631
    %v1672 = vpack.c.b16 %v1657, %v1656
    %v1673 = vpack.c.b16 %v1659, %v1658
    %v1674 = vpack.c.b16 %v1661, %v1660
    %v1675 = vpack.c.b16 %v1663, %v1662
    %v1676 = vpack.c.b16 %v1665, %v1664
    %v1677 = vpack.c.b16 %v1667, %v1666
    %v1678 = vpack.c.b16 %v1669, %v1668
    %v1679 = vpack.c.b16 %v1671, %v1670
    %1688 = vmatprep.subr.bf16.mxu0 0
    %1689 = vmatpush1.bf16.msra.mxu0 %v1672
    %1690 = vmatprep.subr.bf16.mxu0 0
    %1691 = vmatpush1.bf16.msra.mxu0 %v1673
    %1692 = vmatprep.subr.bf16.mxu0 0
    %1693 = vmatpush1.bf16.msra.mxu0 %v1674
    %1694 = vmatprep.subr.bf16.mxu0 0
    %1695 = vmatpush1.bf16.msra.mxu0 %v1675
    %1696 = vmatprep.subr.bf16.mxu0 0
    %1697 = vmatpush1.bf16.msra.mxu0 %v1676
    %1698 = vmatprep.subr.bf16.mxu0 0
    %1699 = vmatpush1.bf16.msra.mxu0 %v1677
    %1700 = vmatprep.subr.bf16.mxu0 0
    %1701 = vmatpush1.bf16.msra.mxu0 %v1678
    %1702 = vmatprep.subr.bf16.mxu0 0
    %1703 = vmatpush1.bf16.msra.mxu0 %v1679
    %1704 = vmatprep.subr.bf16.mxu0 0
    %1705 = vmatpush1.bf16.msra.mxu0 0
    %1706 = vmatprep.subr.bf16.mxu0 0
    %1707 = vmatpush1.bf16.msra.mxu0 0
    %1708 = vmatprep.subr.bf16.mxu0 0
    %1709 = vmatpush1.bf16.msra.mxu0 0
    %1710 = vmatprep.subr.bf16.mxu0 0
    %1711 = vmatpush1.bf16.msra.mxu0 0
    %1712 = vmatprep.subr.bf16.mxu0 0
    %1713 = vmatpush1.bf16.msra.mxu0 0
    %1714 = vmatprep.subr.bf16.mxu0 0
    %1715 = vmatpush1.bf16.msra.mxu0 0
    %1716 = vmatprep.subr.bf16.mxu0 0
    %1717 = vmatpush1.bf16.msra.mxu0 0
    %1718 = vmatprep.subr.bf16.mxu0 0
    %1719 = vmatpush1.bf16.msra.mxu0 0
    %1720 = vmatprep.mubr.bf16.mxu0 0
    %1721 = vmatmul.mubr.bf16.gmra.mrb[0].mxu0 %v1632
    %v1722 = vpop.f32.mrb[0].mxu0
    %v1723 = vadd.f32 %v1638, %v1722
    %v1724 = vpop.f32.mrb[0].mxu0
    %v1725 = vpop.f32.mrb[0].mxu0
    %v1726 = vpop.f32.mrb[0].mxu0
    %1727 = vdwg.mxu0
    %vm1728 = vcmask 123904
    %1729 = vst.msk [vmem:[#allocation8] sm:$0x3] %vm1728, %v1723
    // Predicated region
    $region46: #{tpu_custom_call.1} parent=1 // pred_check
      _
    $region47: #{tpu_custom_call.1} parent=1 // pred_check_branch
      %1731 = sbr.rel (0) target = $region49
    $region48: #{tpu_custom_call.1} parent=1 // pred_region
      %s1733 = ssub.s32 32, 32
      %1734 = vsyncadd [#allocation4], %s1733
      %s1736 = sshll.u32 [#allocation8], 4
      %s1737 = int_to_ptr.vmem [resolvable:$true] %s1736
      %1739 = dma.vmem_to_hbm [thread:$0]  %s1737, 32, %s8, [#allocation4]
    $region49: #{tpu_custom_call.1} parent=1 // pred_fallthru
      _
    // Predicated region
    $region50: #{tpu_custom_call.1} parent=1 // pred_check
      _
    $region51: #{tpu_custom_call.1} parent=1 // pred_check_branch
      %1741 = sbr.rel (0) target = $region53
    $region52: #{tpu_custom_call.1} parent=1 // pred_region
      %1742 = dma.done [#allocation4], 32
    $region53: #{tpu_custom_call.1} parent=1 // pred_fallthru
      _
    %1743 = vsyncpa [#allocation3], 1
    %1744 = vsyncpa [#allocation6], 1
    %1745 = vsyncpa [#allocation4], 1

// kernel: tpu_custom_call.1
$region0: #{tpu_custom_call.1}
  #allocation0 [shape = 'u32[]', space=smem, size = 0x4, offset = 0x4, fixed_abs, tag = 'smem constant byte address 0x4 - core index']
  #allocation1 [shape = 'u32[144,128]{1,0:T(1,128)}', space=vmem, size = 0x12000, scoped, tag = 'internal scratch']
  %s0 = inlined_call_operand.vmem [shape: f32[2,8,128], index: 0, kind: input, shape index: {}]
  %s1 = inlined_call_operand.hbm [shape: bf16[4,128,256], index: 1, kind: input, shape index: {}]
  %s2 = inlined_call_operand.vmem [shape: f32[1,256], index: 2, kind: input, shape index: {}]
  %s3 = inlined_call_operand.vmem [shape: bf16[128,128], index: 3, kind: input, shape index: {}]
  %s4 = inlined_call_operand.hbm [shape: bf16[3,128,384], index: 4, kind: input, shape index: {}]
  %s5 = inlined_call_operand.hbm [shape: f32[1,384], index: 5, kind: input, shape index: {}]
  %s6 = inlined_call_operand.vmem [shape: bf16[128,16], index: 6, kind: input, shape index: {}]
  %s7 = inlined_call_operand.vmem [shape: f32[1,16], index: 7, kind: input, shape index: {}]
  %s8 = inlined_call_operand.hbm [shape: f32[2,16], index: 8, kind: output, shape index: {}]
  %s9 = sld [smem:[#allocation0]]
  $region54: #{tpu_custom_call.1} parent=0
    _
  %s11 = ssub.s32 1, %s9
  %s12 = scalar_select 0, %s11, %s9
  $region1: #{tpu_custom_call.1} parent=0
    #allocation2 [shape = 'u8[262144]{0}', space=vmem, size = 0x40000, scoped, tag = 'input window, operand 1, single buffered']
    #allocation3 [shape = 's32[1]{0}', space=sflag, size = 0x4, scoped, tag = 'scoped memory for tpu_custom_call.1']
    #allocation4 [shape = 's32[1]{0}', space=sflag, size = 0x4, scoped, tag = 'scoped memory for tpu_custom_call.1']
    #allocation5 [shape = 'u8[294912]{0}', space=vmem, size = 0x48000, scoped, tag = 'input window, operand 4, single buffered']
    #allocation6 [shape = 's32[1]{0}', space=sflag, size = 0x4, scoped, tag = 'scoped memory for tpu_custom_call.1']
    #allocation7 [shape = 'u8[1536]{0}', space=vmem, size = 0x800, scoped, tag = 'input window, operand 5, single buffered']
    #allocation8 [shape = 'u8[1024]{0}', space=vmem, size = 0x400, scoped, tag = 'output window, operand 0, single buffered']
    %13 = vsyncpa [#allocation3], 0
    %14 = vsyncpa [#allocation6], 0
    %15 = vsyncpa [#allocation4], 0
    // Predicated region
    $region2: #{tpu_custom_call.1} parent=1 // pred_check
      _
    $region3: #{tpu_custom_call.1} parent=1 // pred_check_branch
      %17 = sbr.rel (0) target = $region5
    $region4: #{tpu_custom_call.1} parent=1 // pred_region
      _
    $region5: #{tpu_custom_call.1} parent=1 // pred_fallthru
      _
    // Predicated region
    $region6: #{tpu_custom_call.1} parent=1 // pred_check
      _
    $region7: #{tpu_custom_call.1} parent=1 // pred_check_branch
      %19 = sbr.rel (0) target = $region9
    $region8: #{tpu_custom_call.1} parent=1 // pred_region
      %s21 = ssub.s32 8192, 8192
      %22 = vsyncadd [#allocation3], %s21
      %s23 = sshll.u32 [#allocation2], 4
      %s24 = int_to_ptr.vmem [resolvable:$true] %s23
      %29 = dma.hbm_to_vmem [thread:$0]  %s1, 8192, %s24, [#allocation3], 128, 128, 8
    $region9: #{tpu_custom_call.1} parent=1 // pred_fallthru
      _
    // Predicated region
    $region10: #{tpu_custom_call.1} parent=1 // pred_check
      _
    $region11: #{tpu_custom_call.1} parent=1 // pred_check_branch
      %31 = sbr.rel (0) target = $region13
    $region12: #{tpu_custom_call.1} parent=1 // pred_region
      _
    $region13: #{tpu_custom_call.1} parent=1 // pred_fallthru
      _
    // Predicated region
    $region14: #{tpu_custom_call.1} parent=1 // pred_check
      _
    $region15: #{tpu_custom_call.1} parent=1 // pred_check_branch
      %33 = sbr.rel (0) target = $region17
    $region16: #{tpu_custom_call.1} parent=1 // pred_region
      _
    $region17: #{tpu_custom_call.1} parent=1 // pred_fallthru
      _
    // Predicated region
    $region18: #{tpu_custom_call.1} parent=1 // pred_check
      _
    $region19: #{tpu_custom_call.1} parent=1 // pred_check_branch
      %35 = sbr.rel (0) target = $region21
    $region20: #{tpu_custom_call.1} parent=1 // pred_region
      %s37 = ssub.s32 9216, 9216
      %38 = vsyncadd [#allocation6], %s37
      %s39 = sshll.u32 [#allocation5], 4
      %s40 = int_to_ptr.vmem [resolvable:$true] %s39
      %45 = dma.hbm_to_vmem [thread:$0]  %s4, 9216, %s40, [#allocation6], 192, 192, 12
    $region21: #{tpu_custom_call.1} parent=1 // pred_fallthru
      _
    // Predicated region
    $region22: #{tpu_custom_call.1} parent=1 // pred_check
      _
    $region23: #{tpu_custom_call.1} parent=1 // pred_check_branch
      %47 = sbr.rel (0) target = $region25
    $region24: #{tpu_custom_call.1} parent=1 // pred_region
      %s49 = ssub.s32 48, 48
      %50 = vsyncadd [#allocation6], %s49
      %s52 = sshll.u32 [#allocation7], 4
      %s53 = int_to_ptr.vmem [resolvable:$true] %s52
      %55 = dma.hbm_to_vmem [thread:$0]  %s5, 48, %s53, [#allocation6]
    $region25: #{tpu_custom_call.1} parent=1 // pred_fallthru
      _
    // Predicated region
    $region26: #{tpu_custom_call.1} parent=1 // pred_check
      _
    $region27: #{tpu_custom_call.1} parent=1 // pred_check_branch
      %57 = sbr.rel (0) target = $region29
    $region28: #{tpu_custom_call.1} parent=1 // pred_region
      _
    $region29: #{tpu_custom_call.1} parent=1 // pred_fallthru
      _
    // Predicated region
    $region30: #{tpu_custom_call.1} parent=1 // pred_check
      _
    $region31: #{tpu_custom_call.1} parent=1 // pred_check_branch
      %59 = sbr.rel (0) target = $region33
    $region32: #{tpu_custom_call.1} parent=1 // pred_region
      _
    $region33: #{tpu_custom_call.1} parent=1 // pred_fallthru
      _
    // Predicated region
    $region34: #{tpu_custom_call.1} parent=1 // pred_check
      _
    $region35: #{tpu_custom_call.1} parent=1 // pred_check_branch
      %61 = sbr.rel (0) target = $region37
    $region36: #{tpu_custom_call.1} parent=1 // pred_region
      %62 = dma.done [#allocation3], 8192
    $region37: #{tpu_custom_call.1} parent=1 // pred_fallthru
      _
    // Predicated region
    $region38: #{tpu_custom_call.1} parent=1 // pred_check
      _
    $region39: #{tpu_custom_call.1} parent=1 // pred_check_branch
      %64 = sbr.rel (0) target = $region41
    $region40: #{tpu_custom_call.1} parent=1 // pred_region
      %65 = dma.done [#allocation6], 9216
    $region41: #{tpu_custom_call.1} parent=1 // pred_fallthru
      _
    // Predicated region
    $region42: #{tpu_custom_call.1} parent=1 // pred_check
      _
    $region43: #{tpu_custom_call.1} parent=1 // pred_check_branch
      %67 = sbr.rel (0) target = $region45
    $region44: #{tpu_custom_call.1} parent=1 // pred_region
      %68 = dma.done [#allocation6], 48
    $region45: #{tpu_custom_call.1} parent=1 // pred_fallthru
      _
    %v70 = vld [vmem:[%s0] sm:$0x1]
    %v71 = vld [vmem:[%s0 + $0x8] sm:$0x1]
    %v72 = vld [vmem:[%s0 + $0x7] sm:$0x1]
    %v73 = vld [vmem:[%s0 + $0xf] sm:$0x1]
    %v76 = vrot.slane %v71, 7
    %vm77 = vcmask 1041409
    %v78 = vsel %vm77, %v76, %v70
    %v82 = vrot.slane %v72, 6
    %v83 = vrot.slane %v73, 5
    %vm84 = vcmask 1043459
    %v85 = vsel %vm84, %v83, %v82
    %vm87 = vcmask 1041408
    %v88 = vsel %vm87, %v78, %v85
    %v89 = vld [vmem:[%s0 + $0x1] sm:$0x1]
    %v90 = vld [vmem:[%s0 + $0x9] sm:$0x1]
    %v91 = vld [vmem:[%s0 + $0x6] sm:$0x1]
    %v92 = vld [vmem:[%s0 + $0xe] sm:$0x1]
    %v95 = vrot.slane %v90, 7
    %v96 = vsel %vm77, %v95, %v89
    %v100 = vrot.slane %v91, 6
    %v101 = vrot.slane %v92, 5
    %v102 = vsel %vm84, %v101, %v100
    %v104 = vsel %vm87, %v96, %v102
    %v105 = vld [vmem:[%s0 + $0x2] sm:$0x1]
    %v106 = vld [vmem:[%s0 + $0xa] sm:$0x1]
    %v107 = vld [vmem:[%s0 + $0x5] sm:$0x1]
    %v108 = vld [vmem:[%s0 + $0xd] sm:$0x1]
    %v111 = vrot.slane %v106, 7
    %v112 = vsel %vm77, %v111, %v105
    %v116 = vrot.slane %v107, 6
    %v117 = vrot.slane %v108, 5
    %v118 = vsel %vm84, %v117, %v116
    %v120 = vsel %vm87, %v112, %v118
    %v121 = vld [vmem:[%s0 + $0x3] sm:$0x1]
    %v122 = vld [vmem:[%s0 + $0xb] sm:$0x1]
    %v123 = vld [vmem:[%s0 + $0x4] sm:$0x1]
    %v124 = vld [vmem:[%s0 + $0xc] sm:$0x1]
    %v127 = vrot.slane %v122, 7
    %v128 = vsel %vm77, %v127, %v121
    %v132 = vrot.slane %v123, 6
    %v133 = vrot.slane %v124, 5
    %v134 = vsel %vm84, %v133, %v132
    %v136 = vsel %vm87, %v128, %v134
    %v137 = vadd.f32 %v88, %v104
    %v138 = vadd.f32 %v137, %v120
    %v139 = vadd.f32 %v138, %v136
    %v140 = vmul.f32 %v139, 0.14285715
    %v141 = vld [vmem:[#allocation2] sm:$0xff]
    %v142 = vld [vmem:[#allocation2 + $0x8] sm:$0xff]
    %v143 = vld [vmem:[#allocation2 + $0x10] sm:$0xff]
    %v144 = vld [vmem:[#allocation2 + $0x18] sm:$0xff]
    %v145 = vld [vmem:[#allocation2 + $0x20] sm:$0xff]
    %v146 = vld [vmem:[#allocation2 + $0x28] sm:$0xff]
    %v147 = vld [vmem:[#allocation2 + $0x30] sm:$0xff]
    %v148 = vld [vmem:[#allocation2 + $0x38] sm:$0xff]
    %v149 = vld [vmem:[#allocation2 + $0x40] sm:$0xff]
    %v150 = vld [vmem:[#allocation2 + $0x48] sm:$0xff]
    %v151 = vld [vmem:[#allocation2 + $0x50] sm:$0xff]
    %v152 = vld [vmem:[#allocation2 + $0x58] sm:$0xff]
    %v153 = vld [vmem:[#allocation2 + $0x60] sm:$0xff]
    %v154 = vld [vmem:[#allocation2 + $0x68] sm:$0xff]
    %v155 = vld [vmem:[#allocation2 + $0x70] sm:$0xff]
    %v156 = vld [vmem:[#allocation2 + $0x78] sm:$0xff]
    %v157 = vpack.c.bf16 %v88, %v88
    %s158 = scalar_lea.vmem [#allocation2], 128
    %v159 = vld [vmem:[%s158] sm:$0xff]
    %v160 = vld [vmem:[%s158 + $0x8] sm:$0xff]
    %v161 = vld [vmem:[%s158 + $0x10] sm:$0xff]
    %v162 = vld [vmem:[%s158 + $0x18] sm:$0xff]
    %v163 = vld [vmem:[%s158 + $0x20] sm:$0xff]
    %v164 = vld [vmem:[%s158 + $0x28] sm:$0xff]
    %v165 = vld [vmem:[%s158 + $0x30] sm:$0xff]
    %v166 = vld [vmem:[%s158 + $0x38] sm:$0xff]
    %v167 = vld [vmem:[%s158 + $0x40] sm:$0xff]
    %v168 = vld [vmem:[%s158 + $0x48] sm:$0xff]
    %v169 = vld [vmem:[%s158 + $0x50] sm:$0xff]
    %v170 = vld [vmem:[%s158 + $0x58] sm:$0xff]
    %v171 = vld [vmem:[%s158 + $0x60] sm:$0xff]
    %v172 = vld [vmem:[%s158 + $0x68] sm:$0xff]
    %v173 = vld [vmem:[%s158 + $0x70] sm:$0xff]
    %v174 = vld [vmem:[%s158 + $0x78] sm:$0xff]
    %v175 = vpack.c.bf16 %v104, %v104
    %v192 = vunpack.c.l.b16 %v159
    %v193 = vunpack.c.h.b16 %v159
    %v194 = vunpack.c.l.b16 %v160
    %v195 = vunpack.c.h.b16 %v160
    %v196 = vunpack.c.l.b16 %v161
    %v197 = vunpack.c.h.b16 %v161
    %v198 = vunpack.c.l.b16 %v162
    %v199 = vunpack.c.h.b16 %v162
    %v200 = vunpack.c.l.b16 %v163
    %v201 = vunpack.c.h.b16 %v163
    %v202 = vunpack.c.l.b16 %v164
    %v203 = vunpack.c.h.b16 %v164
    %v204 = vunpack.c.l.b16 %v165
    %v205 = vunpack.c.h.b16 %v165
    %v206 = vunpack.c.l.b16 %v166
    %v207 = vunpack.c.h.b16 %v166
    %v208 = vunpack.c.l.b16 %v167
    %v209 = vunpack.c.h.b16 %v167
    %v210 = vunpack.c.l.b16 %v168
    %v211 = vunpack.c.h.b16 %v168
    %v212 = vunpack.c.l.b16 %v169
    %v213 = vunpack.c.h.b16 %v169
    %v214 = vunpack.c.l.b16 %v170
    %v215 = vunpack.c.h.b16 %v170
    %v216 = vunpack.c.l.b16 %v171
    %v217 = vunpack.c.h.b16 %v171
    %v218 = vunpack.c.l.b16 %v172
    %v219 = vunpack.c.h.b16 %v172
    %v220 = vunpack.c.l.b16 %v173
    %v221 = vunpack.c.h.b16 %v173
    %v222 = vunpack.c.l.b16 %v174
    %v223 = vunpack.c.h.b16 %v174
    %v224 = vpack.c.b16 %v194, %v192
    %v225 = vpack.c.b16 %v195, %v193
    %v226 = vpack.c.b16 %v198, %v196
    %v227 = vpack.c.b16 %v199, %v197
    %v228 = vpack.c.b16 %v202, %v200
    %v229 = vpack.c.b16 %v203, %v201
    %v230 = vpack.c.b16 %v206, %v204
    %v231 = vpack.c.b16 %v207, %v205
    %v232 = vpack.c.b16 %v210, %v208
    %v233 = vpack.c.b16 %v211, %v209
    %v234 = vpack.c.b16 %v214, %v212
    %v235 = vpack.c.b16 %v215, %v213
    %v236 = vpack.c.b16 %v218, %v216
    %v237 = vpack.c.b16 %v219, %v217
    %v238 = vpack.c.b16 %v222, %v220
    %v239 = vpack.c.b16 %v223, %v221
    %256 = vmatprep.subr.bf16.mxu0 %v225
    %257 = vmatpush1.bf16.msra.mxu0 %v224
    %258 = vmatprep.subr.bf16.mxu0 %v227
    %259 = vmatpush1.bf16.msra.mxu0 %v226
    %260 = vmatprep.subr.bf16.mxu0 %v229
    %261 = vmatpush1.bf16.msra.mxu0 %v228
    %262 = vmatprep.subr.bf16.mxu0 %v231
    %263 = vmatpush1.bf16.msra.mxu0 %v230
    %264 = vmatprep.subr.bf16.mxu0 %v233
    %265 = vmatpush1.bf16.msra.mxu0 %v232
    %266 = vmatprep.subr.bf16.mxu0 %v235
    %267 = vmatpush1.bf16.msra.mxu0 %v234
    %268 = vmatprep.subr.bf16.mxu0 %v237
    %269 = vmatpush1.bf16.msra.mxu0 %v236
    %270 = vmatprep.subr.bf16.mxu0 %v239
    %271 = vmatpush1.bf16.msra.mxu0 %v238
    %272 = vmatprep.subr.bf16.mxu0 0
    %273 = vmatpush1.bf16.msra.mxu0 0
    %274 = vmatprep.subr.bf16.mxu0 0
    %275 = vmatpush1.bf16.msra.mxu0 0
    %276 = vmatprep.subr.bf16.mxu0 0
    %277 = vmatpush1.bf16.msra.mxu0 0
    %278 = vmatprep.subr.bf16.mxu0 0
    %279 = vmatpush1.bf16.msra.mxu0 0
    %280 = vmatprep.subr.bf16.mxu0 0
    %281 = vmatpush1.bf16.msra.mxu0 0
    %282 = vmatprep.subr.bf16.mxu0 0
    %283 = vmatpush1.bf16.msra.mxu0 0
    %284 = vmatprep.subr.bf16.mxu0 0
    %285 = vmatpush1.bf16.msra.mxu0 0
    %286 = vmatprep.subr.bf16.mxu0 0
    %287 = vmatpush1.bf16.msra.mxu0 0
    %288 = vmatprep.mubr.bf16.mxu0 0
    %289 = vmatmul.mubr.bf16.gmra.mrb[0].mxu0 %v175
    %v290 = vpop.f32.mrb[0].mxu0
    %v291 = vadd.f32 0.0, %v290
    %v292 = vpop.f32.mrb[0].mxu0
    %v293 = vadd.f32 0.0, %v292
    %v294 = vpop.f32.mrb[0].mxu0
    %v295 = vpop.f32.mrb[0].mxu0
    %296 = vdwg.mxu0
    %v313 = vunpack.c.l.b16 %v141
    %v314 = vunpack.c.h.b16 %v141
    %v315 = vunpack.c.l.b16 %v142
    %v316 = vunpack.c.h.b16 %v142
    %v317 = vunpack.c.l.b16 %v143
    %v318 = vunpack.c.h.b16 %v143
    %v319 = vunpack.c.l.b16 %v144
    %v320 = vunpack.c.h.b16 %v144
    %v321 = vunpack.c.l.b16 %v145
    %v322 = vunpack.c.h.b16 %v145
    %v323 = vunpack.c.l.b16 %v146
    %v324 = vunpack.c.h.b16 %v146
    %v325 = vunpack.c.l.b16 %v147
    %v326 = vunpack.c.h.b16 %v147
    %v327 = vunpack.c.l.b16 %v148
    %v328 = vunpack.c.h.b16 %v148
    %v329 = vunpack.c.l.b16 %v149
    %v330 = vunpack.c.h.b16 %v149
    %v331 = vunpack.c.l.b16 %v150
    %v332 = vunpack.c.h.b16 %v150
    %v333 = vunpack.c.l.b16 %v151
    %v334 = vunpack.c.h.b16 %v151
    %v335 = vunpack.c.l.b16 %v152
    %v336 = vunpack.c.h.b16 %v152
    %v337 = vunpack.c.l.b16 %v153
    %v338 = vunpack.c.h.b16 %v153
    %v339 = vunpack.c.l.b16 %v154
    %v340 = vunpack.c.h.b16 %v154
    %v341 = vunpack.c.l.b16 %v155
    %v342 = vunpack.c.h.b16 %v155
    %v343 = vunpack.c.l.b16 %v156
    %v344 = vunpack.c.h.b16 %v156
    %v345 = vpack.c.b16 %v315, %v313
    %v346 = vpack.c.b16 %v316, %v314
    %v347 = vpack.c.b16 %v319, %v317
    %v348 = vpack.c.b16 %v320, %v318
    %v349 = vpack.c.b16 %v323, %v321
    %v350 = vpack.c.b16 %v324, %v322
    %v351 = vpack.c.b16 %v327, %v325
    %v352 = vpack.c.b16 %v328, %v326
    %v353 = vpack.c.b16 %v331, %v329
    %v354 = vpack.c.b16 %v332, %v330
    %v355 = vpack.c.b16 %v335, %v333
    %v356 = vpack.c.b16 %v336, %v334
    %v357 = vpack.c.b16 %v339, %v337
    %v358 = vpack.c.b16 %v340, %v338
    %v359 = vpack.c.b16 %v343, %v341
    %v360 = vpack.c.b16 %v344, %v342
    %377 = vmatprep.subr.bf16.mxu0 %v346
    %378 = vmatpush1.bf16.msra.mxu0 %v345
    %379 = vmatprep.subr.bf16.mxu0 %v348
    %380 = vmatpush1.bf16.msra.mxu0 %v347
    %381 = vmatprep.subr.bf16.mxu0 %v350
    %382 = vmatpush1.bf16.msra.mxu0 %v349
    %383 = vmatprep.subr.bf16.mxu0 %v352
    %384 = vmatpush1.bf16.msra.mxu0 %v351
    %385 = vmatprep.subr.bf16.mxu0 %v354
    %386 = vmatpush1.bf16.msra.mxu0 %v353
    %387 = vmatprep.subr.bf16.mxu0 %v356
    %388 = vmatpush1.bf16.msra.mxu0 %v355
    %389 = vmatprep.subr.bf16.mxu0 %v358
    %390 = vmatpush1.bf16.msra.mxu0 %v357
    %391 = vmatprep.subr.bf16.mxu0 %v360
    %392 = vmatpush1.bf16.msra.mxu0 %v359
    %393 = vmatprep.subr.bf16.mxu0 0
    %394 = vmatpush1.bf16.msra.mxu0 0
    %395 = vmatprep.subr.bf16.mxu0 0
    %396 = vmatpush1.bf16.msra.mxu0 0
    %397 = vmatprep.subr.bf16.mxu0 0
    %398 = vmatpush1.bf16.msra.mxu0 0
    %399 = vmatprep.subr.bf16.mxu0 0
    %400 = vmatpush1.bf16.msra.mxu0 0
    %401 = vmatprep.subr.bf16.mxu0 0
    %402 = vmatpush1.bf16.msra.mxu0 0
    %403 = vmatprep.subr.bf16.mxu0 0
    %404 = vmatpush1.bf16.msra.mxu0 0
    %405 = vmatprep.subr.bf16.mxu0 0
    %406 = vmatpush1.bf16.msra.mxu0 0
    %407 = vmatprep.subr.bf16.mxu0 0
    %408 = vmatpush1.bf16.msra.mxu0 0
    %409 = vmatprep.mubr.bf16.mxu0 0
    %410 = vmatmul.mubr.bf16.gmra.mrb[0].mxu0 %v157
    %v411 = vpop.f32.mrb[0].mxu0
    %v412 = vadd.f32 %v291, %v411
    %v413 = vpop.f32.mrb[0].mxu0
    %v414 = vadd.f32 %v293, %v413
    %v415 = vpop.f32.mrb[0].mxu0
    %v416 = vpop.f32.mrb[0].mxu0
    %417 = vdwg.mxu0
    %s418 = scalar_lea.vmem [#allocation2], 256
    %v419 = vld [vmem:[%s418] sm:$0xff]
    %v420 = vld [vmem:[%s418 + $0x8] sm:$0xff]
    %v421 = vld [vmem:[%s418 + $0x10] sm:$0xff]
    %v422 = vld [vmem:[%s418 + $0x18] sm:$0xff]
    %v423 = vld [vmem:[%s418 + $0x20] sm:$0xff]
    %v424 = vld [vmem:[%s418 + $0x28] sm:$0xff]
    %v425 = vld [vmem:[%s418 + $0x30] sm:$0xff]
    %v426 = vld [vmem:[%s418 + $0x38] sm:$0xff]
    %v427 = vld [vmem:[%s418 + $0x40] sm:$0xff]
    %v428 = vld [vmem:[%s418 + $0x48] sm:$0xff]
    %v429 = vld [vmem:[%s418 + $0x50] sm:$0xff]
    %v430 = vld [vmem:[%s418 + $0x58] sm:$0xff]
    %v431 = vld [vmem:[%s418 + $0x60] sm:$0xff]
    %v432 = vld [vmem:[%s418 + $0x68] sm:$0xff]
    %v433 = vld [vmem:[%s418 + $0x70] sm:$0xff]
    %v434 = vld [vmem:[%s418 + $0x78] sm:$0xff]
    %v435 = vpack.c.bf16 %v120, %v120
    %v452 = vunpack.c.l.b16 %v419
    %v453 = vunpack.c.h.b16 %v419
    %v454 = vunpack.c.l.b16 %v420
    %v455 = vunpack.c.h.b16 %v420
    %v456 = vunpack.c.l.b16 %v421
    %v457 = vunpack.c.h.b16 %v421
    %v458 = vunpack.c.l.b16 %v422
    %v459 = vunpack.c.h.b16 %v422
    %v460 = vunpack.c.l.b16 %v423
    %v461 = vunpack.c.h.b16 %v423
    %v462 = vunpack.c.l.b16 %v424
    %v463 = vunpack.c.h.b16 %v424
    %v464 = vunpack.c.l.b16 %v425
    %v465 = vunpack.c.h.b16 %v425
    %v466 = vunpack.c.l.b16 %v426
    %v467 = vunpack.c.h.b16 %v426
    %v468 = vunpack.c.l.b16 %v427
    %v469 = vunpack.c.h.b16 %v427
    %v470 = vunpack.c.l.b16 %v428
    %v471 = vunpack.c.h.b16 %v428
    %v472 = vunpack.c.l.b16 %v429
    %v473 = vunpack.c.h.b16 %v429
    %v474 = vunpack.c.l.b16 %v430
    %v475 = vunpack.c.h.b16 %v430
    %v476 = vunpack.c.l.b16 %v431
    %v477 = vunpack.c.h.b16 %v431
    %v478 = vunpack.c.l.b16 %v432
    %v479 = vunpack.c.h.b16 %v432
    %v480 = vunpack.c.l.b16 %v433
    %v481 = vunpack.c.h.b16 %v433
    %v482 = vunpack.c.l.b16 %v434
    %v483 = vunpack.c.h.b16 %v434
    %v484 = vpack.c.b16 %v454, %v452
    %v485 = vpack.c.b16 %v455, %v453
    %v486 = vpack.c.b16 %v458, %v456
    %v487 = vpack.c.b16 %v459, %v457
    %v488 = vpack.c.b16 %v462, %v460
    %v489 = vpack.c.b16 %v463, %v461
    %v490 = vpack.c.b16 %v466, %v464
    %v491 = vpack.c.b16 %v467, %v465
    %v492 = vpack.c.b16 %v470, %v468
    %v493 = vpack.c.b16 %v471, %v469
    %v494 = vpack.c.b16 %v474, %v472
    %v495 = vpack.c.b16 %v475, %v473
    %v496 = vpack.c.b16 %v478, %v476
    %v497 = vpack.c.b16 %v479, %v477
    %v498 = vpack.c.b16 %v482, %v480
    %v499 = vpack.c.b16 %v483, %v481
    %516 = vmatprep.subr.bf16.mxu0 %v485
    %517 = vmatpush1.bf16.msra.mxu0 %v484
    %518 = vmatprep.subr.bf16.mxu0 %v487
    %519 = vmatpush1.bf16.msra.mxu0 %v486
    %520 = vmatprep.subr.bf16.mxu0 %v489
    %521 = vmatpush1.bf16.msra.mxu0 %v488
    %522 = vmatprep.subr.bf16.mxu0 %v491
    %523 = vmatpush1.bf16.msra.mxu0 %v490
    %524 = vmatprep.subr.bf16.mxu0 %v493
    %525 = vmatpush1.bf16.msra.mxu0 %v492
    %526 = vmatprep.subr.bf16.mxu0 %v495
    %527 = vmatpush1.bf16.msra.mxu0 %v494
    %528 = vmatprep.subr.bf16.mxu0 %v497
    %529 = vmatpush1.bf16.msra.mxu0 %v496
    %530 = vmatprep.subr.bf16.mxu0 %v499
    %531 = vmatpush1.bf16.msra.mxu0 %v498
    %532 = vmatprep.subr.bf16.mxu0 0
    %533 = vmatpush1.bf16.msra.mxu0 0
    %534 = vmatprep.subr.bf16.mxu0 0
    %535 = vmatpush1.bf16.msra.mxu0 0
    %536 = vmatprep.subr.bf16.mxu0 0
    %537 = vmatpush1.bf16.msra.mxu0 0
    %538 = vmatprep.subr.bf16.mxu0 0
    %539 = vmatpush1.bf16.msra.mxu0 0
    %540 = vmatprep.subr.bf16.mxu0 0
    %541 = vmatpush1.bf16.msra.mxu0 0
    %542 = vmatprep.subr.bf16.mxu0 0
    %543 = vmatpush1.bf16.msra.mxu0 0
    %544 = vmatprep.subr.bf16.mxu0 0
    %545 = vmatpush1.bf16.msra.mxu0 0
    %546 = vmatprep.subr.bf16.mxu0 0
    %547 = vmatpush1.bf16.msra.mxu0 0
    %548 = vmatprep.mubr.bf16.mxu0 0
    %549 = vmatmul.mubr.bf16.gmra.mrb[0].mxu0 %v435
    %v550 = vpop.f32.mrb[0].mxu0
    %v551 = vadd.f32 0.0, %v550
    %v552 = vpop.f32.mrb[0].mxu0
    %v553 = vadd.f32 0.0, %v552
    %v554 = vpop.f32.mrb[0].mxu0
    %v555 = vpop.f32.mrb[0].mxu0
    %556 = vdwg.mxu0
    %v557 = vadd.f32 %v412, %v551
    %v558 = vadd.f32 %v414, %v553
    %s559 = scalar_lea.vmem [#allocation2], 384
    %v560 = vld [vmem:[%s559] sm:$0xff]
    %v561 = vld [vmem:[%s559 + $0x8] sm:$0xff]
    %v562 = vld [vmem:[%s559 + $0x10] sm:$0xff]
    %v563 = vld [vmem:[%s559 + $0x18] sm:$0xff]
    %v564 = vld [vmem:[%s559 + $0x20] sm:$0xff]
    %v565 = vld [vmem:[%s559 + $0x28] sm:$0xff]
    %v566 = vld [vmem:[%s559 + $0x30] sm:$0xff]
    %v567 = vld [vmem:[%s559 + $0x38] sm:$0xff]
    %v568 = vld [vmem:[%s559 + $0x40] sm:$0xff]
    %v569 = vld [vmem:[%s559 + $0x48] sm:$0xff]
    %v570 = vld [vmem:[%s559 + $0x50] sm:$0xff]
    %v571 = vld [vmem:[%s559 + $0x58] sm:$0xff]
    %v572 = vld [vmem:[%s559 + $0x60] sm:$0xff]
    %v573 = vld [vmem:[%s559 + $0x68] sm:$0xff]
    %v574 = vld [vmem:[%s559 + $0x70] sm:$0xff]
    %v575 = vld [vmem:[%s559 + $0x78] sm:$0xff]
    %v576 = vpack.c.bf16 %v136, %v136
    %v593 = vunpack.c.l.b16 %v560
    %v594 = vunpack.c.h.b16 %v560
    %v595 = vunpack.c.l.b16 %v561
    %v596 = vunpack.c.h.b16 %v561
    %v597 = vunpack.c.l.b16 %v562
    %v598 = vunpack.c.h.b16 %v562
    %v599 = vunpack.c.l.b16 %v563
    %v600 = vunpack.c.h.b16 %v563
    %v601 = vunpack.c.l.b16 %v564
    %v602 = vunpack.c.h.b16 %v564
    %v603 = vunpack.c.l.b16 %v565
    %v604 = vunpack.c.h.b16 %v565
    %v605 = vunpack.c.l.b16 %v566
    %v606 = vunpack.c.h.b16 %v566
    %v607 = vunpack.c.l.b16 %v567
    %v608 = vunpack.c.h.b16 %v567
    %v609 = vunpack.c.l.b16 %v568
    %v610 = vunpack.c.h.b16 %v568
    %v611 = vunpack.c.l.b16 %v569
    %v612 = vunpack.c.h.b16 %v569
    %v613 = vunpack.c.l.b16 %v570
    %v614 = vunpack.c.h.b16 %v570
    %v615 = vunpack.c.l.b16 %v571
    %v616 = vunpack.c.h.b16 %v571
    %v617 = vunpack.c.l.b16 %v572
    %v618 = vunpack.c.h.b16 %v572
    %v619 = vunpack.c.l.b16 %v573
    %v620 = vunpack.c.h.b16 %v573
    %v621 = vunpack.c.l.b16 %v574
    %v622 = vunpack.c.h.b16 %v574
    %v623 = vunpack.c.l.b16 %v575
    %v624 = vunpack.c.h.b16 %v575
    %v625 = vpack.c.b16 %v595, %v593
    %v626 = vpack.c.b16 %v596, %v594
    %v627 = vpack.c.b16 %v599, %v597
    %v628 = vpack.c.b16 %v600, %v598
    %v629 = vpack.c.b16 %v603, %v601
    %v630 = vpack.c.b16 %v604, %v602
    %v631 = vpack.c.b16 %v607, %v605
    %v632 = vpack.c.b16 %v608, %v606
    %v633 = vpack.c.b16 %v611, %v609
    %v634 = vpack.c.b16 %v612, %v610
    %v635 = vpack.c.b16 %v615, %v613
    %v636 = vpack.c.b16 %v616, %v614
    %v637 = vpack.c.b16 %v619, %v617
    %v638 = vpack.c.b16 %v620, %v618
    %v639 = vpack.c.b16 %v623, %v621
    %v640 = vpack.c.b16 %v624, %v622
    %657 = vmatprep.subr.bf16.mxu0 %v626
    %658 = vmatpush1.bf16.msra.mxu0 %v625
    %659 = vmatprep.subr.bf16.mxu0 %v628
    %660 = vmatpush1.bf16.msra.mxu0 %v627
    %661 = vmatprep.subr.bf16.mxu0 %v630
    %662 = vmatpush1.bf16.msra.mxu0 %v629
    %663 = vmatprep.subr.bf16.mxu0 %v632
    %664 = vmatpush1.bf16.msra.mxu0 %v631
    %665 = vmatprep.subr.bf16.mxu0 %v634
    %666 = vmatpush1.bf16.msra.mxu0 %v633
    %667 = vmatprep.subr.bf16.mxu0 %v636
    %668 = vmatpush1.bf16.msra.mxu0 %v635
    %669 = vmatprep.subr.bf16.mxu0 %v638
    %670 = vmatpush1.bf16.msra.mxu0 %v637
    %671 = vmatprep.subr.bf16.mxu0 %v640
    %672 = vmatpush1.bf16.msra.mxu0 %v639
    %673 = vmatprep.subr.bf16.mxu0 0
    %674 = vmatpush1.bf16.msra.mxu0 0
    %675 = vmatprep.subr.bf16.mxu0 0
    %676 = vmatpush1.bf16.msra.mxu0 0
    %677 = vmatprep.subr.bf16.mxu0 0
    %678 = vmatpush1.bf16.msra.mxu0 0
    %679 = vmatprep.subr.bf16.mxu0 0
    %680 = vmatpush1.bf16.msra.mxu0 0
    %681 = vmatprep.subr.bf16.mxu0 0
    %682 = vmatpush1.bf16.msra.mxu0 0
    %683 = vmatprep.subr.bf16.mxu0 0
    %684 = vmatpush1.bf16.msra.mxu0 0
    %685 = vmatprep.subr.bf16.mxu0 0
    %686 = vmatpush1.bf16.msra.mxu0 0
    %687 = vmatprep.subr.bf16.mxu0 0
    %688 = vmatpush1.bf16.msra.mxu0 0
    %689 = vmatprep.mubr.bf16.mxu0 0
    %690 = vmatmul.mubr.bf16.gmra.mrb[0].mxu0 %v576
    %v691 = vpop.f32.mrb[0].mxu0
    %v692 = vadd.f32 0.0, %v691
    %v693 = vpop.f32.mrb[0].mxu0
    %v694 = vadd.f32 0.0, %v693
    %v695 = vpop.f32.mrb[0].mxu0
    %v696 = vpop.f32.mrb[0].mxu0
    %697 = vdwg.mxu0
    %v698 = vadd.f32 %v557, %v692
    %v699 = vadd.f32 %v558, %v694
    %v700 = vld [vmem:[%s2] sm:$0x3]
    %v702 = vlaneseq
    %v703 = vshrl.u32 %v702, 7
    %v704 = vsub.s32 0, %v703
    %v705 = vrot.slane %v700, %v704
    %v706 = vlaneseq
    %v707 = vshrl.u32 %v706, 7
    %v708 = vsub.s32 1, %v707
    %v709 = vrot.slane %v700, %v708
    %v712 = vadd.f32 %v698, %v705
    %v713 = vadd.f32 %v699, %v709
    %v714 = vld [vmem:[%s3] sm:$0xf]
    %v715 = vld [vmem:[%s3 + $0x4] sm:$0xf]
    %v716 = vld [vmem:[%s3 + $0x8] sm:$0xf]
    %v717 = vld [vmem:[%s3 + $0xc] sm:$0xf]
    %v718 = vld [vmem:[%s3 + $0x10] sm:$0xf]
    %v719 = vld [vmem:[%s3 + $0x14] sm:$0xf]
    %v720 = vld [vmem:[%s3 + $0x18] sm:$0xf]
    %v721 = vld [vmem:[%s3 + $0x1c] sm:$0xf]
    %v722 = vld [vmem:[%s3 + $0x20] sm:$0xf]
    %v723 = vld [vmem:[%s3 + $0x24] sm:$0xf]
    %v724 = vld [vmem:[%s3 + $0x28] sm:$0xf]
    %v725 = vld [vmem:[%s3 + $0x2c] sm:$0xf]
    %v726 = vld [vmem:[%s3 + $0x30] sm:$0xf]
    %v727 = vld [vmem:[%s3 + $0x34] sm:$0xf]
    %v728 = vld [vmem:[%s3 + $0x38] sm:$0xf]
    %v729 = vld [vmem:[%s3 + $0x3c] sm:$0xf]
    %v730 = vpack.c.bf16 %v140, %v140
    %v747 = vunpack.c.l.b16 %v714
    %v748 = vunpack.c.l.b16 %v715
    %v749 = vunpack.c.l.b16 %v716
    %v750 = vunpack.c.l.b16 %v717
    %v751 = vunpack.c.l.b16 %v718
    %v752 = vunpack.c.l.b16 %v719
    %v753 = vunpack.c.l.b16 %v720
    %v754 = vunpack.c.l.b16 %v721
    %v755 = vunpack.c.l.b16 %v722
    %v756 = vunpack.c.l.b16 %v723
    %v757 = vunpack.c.l.b16 %v724
    %v758 = vunpack.c.l.b16 %v725
    %v759 = vunpack.c.l.b16 %v726
    %v760 = vunpack.c.l.b16 %v727
    %v761 = vunpack.c.l.b16 %v728
    %v762 = vunpack.c.l.b16 %v729
    %v763 = vpack.c.b16 %v748, %v747
    %v764 = vpack.c.b16 %v750, %v749
    %v765 = vpack.c.b16 %v752, %v751
    %v766 = vpack.c.b16 %v754, %v753
    %v767 = vpack.c.b16 %v756, %v755
    %v768 = vpack.c.b16 %v758, %v757
    %v769 = vpack.c.b16 %v760, %v759
    %v770 = vpack.c.b16 %v762, %v761
    %779 = vmatprep.subr.bf16.mxu0 0
    %780 = vmatpush1.bf16.msra.mxu0 %v763
    %781 = vmatprep.subr.bf16.mxu0 0
    %782 = vmatpush1.bf16.msra.mxu0 %v764
    %783 = vmatprep.subr.bf16.mxu0 0
    %784 = vmatpush1.bf16.msra.mxu0 %v765
    %785 = vmatprep.subr.bf16.mxu0 0
    %786 = vmatpush1.bf16.msra.mxu0 %v766
    %787 = vmatprep.subr.bf16.mxu0 0
    %788 = vmatpush1.bf16.msra.mxu0 %v767
    %789 = vmatprep.subr.bf16.mxu0 0
    %790 = vmatpush1.bf16.msra.mxu0 %v768
    %791 = vmatprep.subr.bf16.mxu0 0
    %792 = vmatpush1.bf16.msra.mxu0 %v769
    %793 = vmatprep.subr.bf16.mxu0 0
    %794 = vmatpush1.bf16.msra.mxu0 %v770
    %795 = vmatprep.subr.bf16.mxu0 0
    %796 = vmatpush1.bf16.msra.mxu0 0
    %797 = vmatprep.subr.bf16.mxu0 0
    %798 = vmatpush1.bf16.msra.mxu0 0
    %799 = vmatprep.subr.bf16.mxu0 0
    %800 = vmatpush1.bf16.msra.mxu0 0
    %801 = vmatprep.subr.bf16.mxu0 0
    %802 = vmatpush1.bf16.msra.mxu0 0
    %803 = vmatprep.subr.bf16.mxu0 0
    %804 = vmatpush1.bf16.msra.mxu0 0
    %805 = vmatprep.subr.bf16.mxu0 0
    %806 = vmatpush1.bf16.msra.mxu0 0
    %807 = vmatprep.subr.bf16.mxu0 0
    %808 = vmatpush1.bf16.msra.mxu0 0
    %809 = vmatprep.subr.bf16.mxu0 0
    %810 = vmatpush1.bf16.msra.mxu0 0
    %811 = vmatprep.mubr.bf16.mxu0 0
    %812 = vmatmul.mubr.bf16.gmra.mrb[0].mxu0 %v730
    %v813 = vpop.f32.mrb[0].mxu0
    %v814 = vadd.f32 0.0, %v813
    %v815 = vpop.f32.mrb[0].mxu0
    %v816 = vpop.f32.mrb[0].mxu0
    %v817 = vpop.f32.mrb[0].mxu0
    %818 = vdwg.mxu0
    %v819 = vadd.f32 %v713, %v814
    %v820 = vxor.u32 %v819, 2147483648
    %v821 = vmul.f32 %v820, 1.442695
    %v822 = vpow.pop %v821
    %v823 = vadd.f32 %v822, 1.0
    %v824 = vrcp.pop %v823
    %v825 = vmul.f32 1.0, %v824
    %v826 = vmul.f32 %v140, %v825
    %v827 = vadd.f32 %v712, %v826
    %v828 = vld [vmem:[#allocation5] sm:$0xff]
    %v829 = vld [vmem:[#allocation5 + $0x8] sm:$0xf]
    %v830 = vld [vmem:[#allocation5 + $0xc] sm:$0xff]
    %v831 = vld [vmem:[#allocation5 + $0x14] sm:$0xf]
    %v832 = vld [vmem:[#allocation5 + $0x18] sm:$0xff]
    %v833 = vld [vmem:[#allocation5 + $0x20] sm:$0xf]
    %v834 = vld [vmem:[#allocation5 + $0x24] sm:$0xff]
    %v835 = vld [vmem:[#allocation5 + $0x2c] sm:$0xf]
    %v836 = vld [vmem:[#allocation5 + $0x30] sm:$0xff]
    %v837 = vld [vmem:[#allocation5 + $0x38] sm:$0xf]
    %v838 = vld [vmem:[#allocation5 + $0x3c] sm:$0xff]
    %v839 = vld [vmem:[#allocation5 + $0x44] sm:$0xf]
    %v840 = vld [vmem:[#allocation5 + $0x48] sm:$0xff]
    %v841 = vld [vmem:[#allocation5 + $0x50] sm:$0xf]
    %v842 = vld [vmem:[#allocation5 + $0x54] sm:$0xff]
    %v843 = vld [vmem:[#allocation5 + $0x5c] sm:$0xf]
    %v844 = vld [vmem:[#allocation5 + $0x60] sm:$0xff]
    %v845 = vld [vmem:[#allocation5 + $0x68] sm:$0xf]
    %v846 = vld [vmem:[#allocation5 + $0x6c] sm:$0xff]
    %v847 = vld [vmem:[#allocation5 + $0x74] sm:$0xf]
    %v848 = vld [vmem:[#allocation5 + $0x78] sm:$0xff]
    %v849 = vld [vmem:[#allocation5 + $0x80] sm:$0xf]
    %v850 = vld [vmem:[#allocation5 + $0x84] sm:$0xff]
    %v851 = vld [vmem:[#allocation5 + $0x8c] sm:$0xf]
    %v852 = vld [vmem:[#allocation5 + $0x90] sm:$0xff]
    %v853 = vld [vmem:[#allocation5 + $0x98] sm:$0xf]
    %v854 = vld [vmem:[#allocation5 + $0x9c] sm:$0xff]
    %v855 = vld [vmem:[#allocation5 + $0xa4] sm:$0xf]
    %v856 = vld [vmem:[#allocation5 + $0xa8] sm:$0xff]
    %v857 = vld [vmem:[#allocation5 + $0xb0] sm:$0xf]
    %v858 = vld [vmem:[#allocation5 + $0xb4] sm:$0xff]
    %v859 = vld [vmem:[#allocation5 + $0xbc] sm:$0xf]
    %v860 = vpack.c.bf16 %v70, %v70
    %v861 = vpack.c.bf16 %v71, %v71
    %s862 = scalar_lea.vmem [#allocation5], 192
    %v863 = vld [vmem:[%s862] sm:$0xff]
    %v864 = vld [vmem:[%s862 + $0x8] sm:$0xf]
    %v865 = vld [vmem:[%s862 + $0xc] sm:$0xff]
    %v866 = vld [vmem:[%s862 + $0x14] sm:$0xf]
    %v867 = vld [vmem:[%s862 + $0x18] sm:$0xff]
    %v868 = vld [vmem:[%s862 + $0x20] sm:$0xf]
    %v869 = vld [vmem:[%s862 + $0x24] sm:$0xff]
    %v870 = vld [vmem:[%s862 + $0x2c] sm:$0xf]
    %v871 = vld [vmem:[%s862 + $0x30] sm:$0xff]
    %v872 = vld [vmem:[%s862 + $0x38] sm:$0xf]
    %v873 = vld [vmem:[%s862 + $0x3c] sm:$0xff]
    %v874 = vld [vmem:[%s862 + $0x44] sm:$0xf]
    %v875 = vld [vmem:[%s862 + $0x48] sm:$0xff]
    %v876 = vld [vmem:[%s862 + $0x50] sm:$0xf]
    %v877 = vld [vmem:[%s862 + $0x54] sm:$0xff]
    %v878 = vld [vmem:[%s862 + $0x5c] sm:$0xf]
    %v879 = vld [vmem:[%s862 + $0x60] sm:$0xff]
    %v880 = vld [vmem:[%s862 + $0x68] sm:$0xf]
    %v881 = vld [vmem:[%s862 + $0x6c] sm:$0xff]
    %v882 = vld [vmem:[%s862 + $0x74] sm:$0xf]
    %v883 = vld [vmem:[%s862 + $0x78] sm:$0xff]
    %v884 = vld [vmem:[%s862 + $0x80] sm:$0xf]
    %v885 = vld [vmem:[%s862 + $0x84] sm:$0xff]
    %v886 = vld [vmem:[%s862 + $0x8c] sm:$0xf]
    %v887 = vld [vmem:[%s862 + $0x90] sm:$0xff]
    %v888 = vld [vmem:[%s862 + $0x98] sm:$0xf]
    %v889 = vld [vmem:[%s862 + $0x9c] sm:$0xff]
    %v890 = vld [vmem:[%s862 + $0xa4] sm:$0xf]
    %v891 = vld [vmem:[%s862 + $0xa8] sm:$0xff]
    %v892 = vld [vmem:[%s862 + $0xb0] sm:$0xf]
    %v893 = vld [vmem:[%s862 + $0xb4] sm:$0xff]
    %v894 = vld [vmem:[%s862 + $0xbc] sm:$0xf]
    %v895 = vpack.c.bf16 %v827, %v827
    %v928 = vunpack.c.l.b16 %v863
    %v929 = vunpack.c.h.b16 %v863
    %v930 = vunpack.c.l.b16 %v864
    %v931 = vunpack.c.l.b16 %v865
    %v932 = vunpack.c.h.b16 %v865
    %v933 = vunpack.c.l.b16 %v866
    %v934 = vunpack.c.l.b16 %v867
    %v935 = vunpack.c.h.b16 %v867
    %v936 = vunpack.c.l.b16 %v868
    %v937 = vunpack.c.l.b16 %v869
    %v938 = vunpack.c.h.b16 %v869
    %v939 = vunpack.c.l.b16 %v870
    %v940 = vunpack.c.l.b16 %v871
    %v941 = vunpack.c.h.b16 %v871
    %v942 = vunpack.c.l.b16 %v872
    %v943 = vunpack.c.l.b16 %v873
    %v944 = vunpack.c.h.b16 %v873
    %v945 = vunpack.c.l.b16 %v874
    %v946 = vunpack.c.l.b16 %v875
    %v947 = vunpack.c.h.b16 %v875
    %v948 = vunpack.c.l.b16 %v876
    %v949 = vunpack.c.l.b16 %v877
    %v950 = vunpack.c.h.b16 %v877
    %v951 = vunpack.c.l.b16 %v878
    %v952 = vunpack.c.l.b16 %v879
    %v953 = vunpack.c.h.b16 %v879
    %v954 = vunpack.c.l.b16 %v880
    %v955 = vunpack.c.l.b16 %v881
    %v956 = vunpack.c.h.b16 %v881
    %v957 = vunpack.c.l.b16 %v882
    %v958 = vunpack.c.l.b16 %v883
    %v959 = vunpack.c.h.b16 %v883
    %v960 = vunpack.c.l.b16 %v884
    %v961 = vunpack.c.l.b16 %v885
    %v962 = vunpack.c.h.b16 %v885
    %v963 = vunpack.c.l.b16 %v886
    %v964 = vunpack.c.l.b16 %v887
    %v965 = vunpack.c.h.b16 %v887
    %v966 = vunpack.c.l.b16 %v888
    %v967 = vunpack.c.l.b16 %v889
    %v968 = vunpack.c.h.b16 %v889
    %v969 = vunpack.c.l.b16 %v890
    %v970 = vunpack.c.l.b16 %v891
    %v971 = vunpack.c.h.b16 %v891
    %v972 = vunpack.c.l.b16 %v892
    %v973 = vunpack.c.l.b16 %v893
    %v974 = vunpack.c.h.b16 %v893
    %v975 = vunpack.c.l.b16 %v894
    %v976 = vpack.c.b16 %v931, %v928
    %v977 = vpack.c.b16 %v932, %v929
    %v978 = vpack.c.b16 %v933, %v930
    %v979 = vpack.c.b16 %v937, %v934
    %v980 = vpack.c.b16 %v938, %v935
    %v981 = vpack.c.b16 %v939, %v936
    %v982 = vpack.c.b16 %v943, %v940
    %v983 = vpack.c.b16 %v944, %v941
    %v984 = vpack.c.b16 %v945, %v942
    %v985 = vpack.c.b16 %v949, %v946
    %v986 = vpack.c.b16 %v950, %v947
    %v987 = vpack.c.b16 %v951, %v948
    %v988 = vpack.c.b16 %v955, %v952
    %v989 = vpack.c.b16 %v956, %v953
    %v990 = vpack.c.b16 %v957, %v954
    %v991 = vpack.c.b16 %v961, %v958
    %v992 = vpack.c.b16 %v962, %v959
    %v993 = vpack.c.b16 %v963, %v960
    %v994 = vpack.c.b16 %v967, %v964
    %v995 = vpack.c.b16 %v968, %v965
    %v996 = vpack.c.b16 %v969, %v966
    %v997 = vpack.c.b16 %v973, %v970
    %v998 = vpack.c.b16 %v974, %v971
    %v999 = vpack.c.b16 %v975, %v972
    %1024 = vmatprep.subr.bf16.mxu0 %v977
    %1025 = vmatpush1.bf16.msra.mxu0 %v976
    %1026 = vmatprep.subr.bf16.mxu0 %v980
    %1027 = vmatpush1.bf16.msra.mxu0 %v979
    %1028 = vmatprep.subr.bf16.mxu0 %v983
    %1029 = vmatpush1.bf16.msra.mxu0 %v982
    %1030 = vmatprep.subr.bf16.mxu0 %v986
    %1031 = vmatpush1.bf16.msra.mxu0 %v985
    %1032 = vmatprep.subr.bf16.mxu0 %v989
    %1033 = vmatpush1.bf16.msra.mxu0 %v988
    %1034 = vmatprep.subr.bf16.mxu0 %v992
    %1035 = vmatpush1.bf16.msra.mxu0 %v991
    %1036 = vmatprep.subr.bf16.mxu0 %v995
    %1037 = vmatpush1.bf16.msra.mxu0 %v994
    %1038 = vmatprep.subr.bf16.mxu0 %v998
    %1039 = vmatpush1.bf16.msra.mxu0 %v997
    %1040 = vmatprep.subr.bf16.mxu0 0
    %1041 = vmatpush1.bf16.msra.mxu0 0
    %1042 = vmatprep.subr.bf16.mxu0 0
    %1043 = vmatpush1.bf16.msra.mxu0 0
    %1044 = vmatprep.subr.bf16.mxu0 0
    %1045 = vmatpush1.bf16.msra.mxu0 0
    %1046 = vmatprep.subr.bf16.mxu0 0
    %1047 = vmatpush1.bf16.msra.mxu0 0
    %1048 = vmatprep.subr.bf16.mxu0 0
    %1049 = vmatpush1.bf16.msra.mxu0 0
    %1050 = vmatprep.subr.bf16.mxu0 0
    %1051 = vmatpush1.bf16.msra.mxu0 0
    %1052 = vmatprep.subr.bf16.mxu0 0
    %1053 = vmatpush1.bf16.msra.mxu0 0
    %1054 = vmatprep.subr.bf16.mxu0 0
    %1055 = vmatpush1.bf16.msra.mxu0 0
    %1056 = vmatprep.mubr.bf16.mxu0 0
    %1057 = vmatmul.mubr.bf16.gmra.mrb[0].mxu0 %v895
    %v1058 = vpop.f32.mrb[0].mxu0
    %v1059 = vadd.f32 0.0, %v1058
    %v1060 = vpop.f32.mrb[0].mxu0
    %v1061 = vadd.f32 0.0, %v1060
    %v1062 = vpop.f32.mrb[0].mxu0
    %v1063 = vpop.f32.mrb[0].mxu0
    %1064 = vdwg.mxu0
    %1065 = vmatprep.subr.bf16.mxu0 0
    %1066 = vmatpush1.bf16.msra.mxu0 %v978
    %1067 = vmatprep.subr.bf16.mxu0 0
    %1068 = vmatpush1.bf16.msra.mxu0 %v981
    %1069 = vmatprep.subr.bf16.mxu0 0
    %1070 = vmatpush1.bf16.msra.mxu0 %v984
    %1071 = vmatprep.subr.bf16.mxu0 0
    %1072 = vmatpush1.bf16.msra.mxu0 %v987
    %1073 = vmatprep.subr.bf16.mxu0 0
    %1074 = vmatpush1.bf16.msra.mxu0 %v990
    %1075 = vmatprep.subr.bf16.mxu0 0
    %1076 = vmatpush1.bf16.msra.mxu0 %v993
    %1077 = vmatprep.subr.bf16.mxu0 0
    %1078 = vmatpush1.bf16.msra.mxu0 %v996
    %1079 = vmatprep.subr.bf16.mxu0 0
    %1080 = vmatpush1.bf16.msra.mxu0 %v999
    %1081 = vmatprep.subr.bf16.mxu0 0
    %1082 = vmatpush1.bf16.msra.mxu0 0
    %1083 = vmatprep.subr.bf16.mxu0 0
    %1084 = vmatpush1.bf16.msra.mxu0 0
    %1085 = vmatprep.subr.bf16.mxu0 0
    %1086 = vmatpush1.bf16.msra.mxu0 0
    %1087 = vmatprep.subr.bf16.mxu0 0
    %1088 = vmatpush1.bf16.msra.mxu0 0
    %1089 = vmatprep.subr.bf16.mxu0 0
    %1090 = vmatpush1.bf16.msra.mxu0 0
    %1091 = vmatprep.subr.bf16.mxu0 0
    %1092 = vmatpush1.bf16.msra.mxu0 0
    %1093 = vmatprep.subr.bf16.mxu0 0
    %1094 = vmatpush1.bf16.msra.mxu0 0
    %1095 = vmatprep.subr.bf16.mxu0 0
    %1096 = vmatpush1.bf16.msra.mxu0 0
    %1097 = vmatprep.mubr.bf16.mxu0 0
    %1098 = vmatmul.mubr.bf16.gmra.mrb[0].mxu0 %v895
    %v1099 = vpop.f32.mrb[0].mxu0
    %v1100 = vadd.f32 0.0, %v1099
    %v1101 = vpop.f32.mrb[0].mxu0
    %v1102 = vpop.f32.mrb[0].mxu0
    %v1103 = vpop.f32.mrb[0].mxu0
    %1104 = vdwg.mxu0
    %v1107 = vunpack.c.l.b16 %v860
    %v1108 = vunpack.c.l.b16 %v861
    %v1109 = vrot.slane %v1108, 7
    %v1110 = vsel %vm77, %v1109, %v1107
    %v1111 = vpack.c.b16 %v1110, %v1110
    %v1145 = vunpack.c.l.b16 %v828
    %v1146 = vunpack.c.h.b16 %v828
    %v1147 = vunpack.c.l.b16 %v829
    %v1148 = vunpack.c.l.b16 %v830
    %v1149 = vunpack.c.h.b16 %v830
    %v1150 = vunpack.c.l.b16 %v831
    %v1151 = vunpack.c.l.b16 %v832
    %v1152 = vunpack.c.h.b16 %v832
    %v1153 = vunpack.c.l.b16 %v833
    %v1154 = vunpack.c.l.b16 %v834
    %v1155 = vunpack.c.h.b16 %v834
    %v1156 = vunpack.c.l.b16 %v835
    %v1157 = vunpack.c.l.b16 %v836
    %v1158 = vunpack.c.h.b16 %v836
    %v1159 = vunpack.c.l.b16 %v837
    %v1160 = vunpack.c.l.b16 %v838
    %v1161 = vunpack.c.h.b16 %v838
    %v1162 = vunpack.c.l.b16 %v839
    %v1163 = vunpack.c.l.b16 %v840
    %v1164 = vunpack.c.h.b16 %v840
    %v1165 = vunpack.c.l.b16 %v841
    %v1166 = vunpack.c.l.b16 %v842
    %v1167 = vunpack.c.h.b16 %v842
    %v1168 = vunpack.c.l.b16 %v843
    %v1169 = vunpack.c.l.b16 %v844
    %v1170 = vunpack.c.h.b16 %v844
    %v1171 = vunpack.c.l.b16 %v845
    %v1172 = vunpack.c.l.b16 %v846
    %v1173 = vunpack.c.h.b16 %v846
    %v1174 = vunpack.c.l.b16 %v847
    %v1175 = vunpack.c.l.b16 %v848
    %v1176 = vunpack.c.h.b16 %v848
    %v1177 = vunpack.c.l.b16 %v849
    %v1178 = vunpack.c.l.b16 %v850
    %v1179 = vunpack.c.h.b16 %v850
    %v1180 = vunpack.c.l.b16 %v851
    %v1181 = vunpack.c.l.b16 %v852
    %v1182 = vunpack.c.h.b16 %v852
    %v1183 = vunpack.c.l.b16 %v853
    %v1184 = vunpack.c.l.b16 %v854
    %v1185 = vunpack.c.h.b16 %v854
    %v1186 = vunpack.c.l.b16 %v855
    %v1187 = vunpack.c.l.b16 %v856
    %v1188 = vunpack.c.h.b16 %v856
    %v1189 = vunpack.c.l.b16 %v857
    %v1190 = vunpack.c.l.b16 %v858
    %v1191 = vunpack.c.h.b16 %v858
    %v1192 = vunpack.c.l.b16 %v859
    %v1193 = vpack.c.b16 %v1148, %v1145
    %v1194 = vpack.c.b16 %v1149, %v1146
    %v1195 = vpack.c.b16 %v1150, %v1147
    %v1196 = vpack.c.b16 %v1154, %v1151
    %v1197 = vpack.c.b16 %v1155, %v1152
    %v1198 = vpack.c.b16 %v1156, %v1153
    %v1199 = vpack.c.b16 %v1160, %v1157
    %v1200 = vpack.c.b16 %v1161, %v1158
    %v1201 = vpack.c.b16 %v1162, %v1159
    %v1202 = vpack.c.b16 %v1166, %v1163
    %v1203 = vpack.c.b16 %v1167, %v1164
    %v1204 = vpack.c.b16 %v1168, %v1165
    %v1205 = vpack.c.b16 %v1172, %v1169
    %v1206 = vpack.c.b16 %v1173, %v1170
    %v1207 = vpack.c.b16 %v1174, %v1171
    %v1208 = vpack.c.b16 %v1178, %v1175
    %v1209 = vpack.c.b16 %v1179, %v1176
    %v1210 = vpack.c.b16 %v1180, %v1177
    %v1211 = vpack.c.b16 %v1184, %v1181
    %v1212 = vpack.c.b16 %v1185, %v1182
    %v1213 = vpack.c.b16 %v1186, %v1183
    %v1214 = vpack.c.b16 %v1190, %v1187
    %v1215 = vpack.c.b16 %v1191, %v1188
    %v1216 = vpack.c.b16 %v1192, %v1189
    %1241 = vmatprep.subr.bf16.mxu0 %v1194
    %1242 = vmatpush1.bf16.msra.mxu0 %v1193
    %1243 = vmatprep.subr.bf16.mxu0 %v1197
    %1244 = vmatpush1.bf16.msra.mxu0 %v1196
    %1245 = vmatprep.subr.bf16.mxu0 %v1200
    %1246 = vmatpush1.bf16.msra.mxu0 %v1199
    %1247 = vmatprep.subr.bf16.mxu0 %v1203
    %1248 = vmatpush1.bf16.msra.mxu0 %v1202
    %1249 = vmatprep.subr.bf16.mxu0 %v1206
    %1250 = vmatpush1.bf16.msra.mxu0 %v1205
    %1251 = vmatprep.subr.bf16.mxu0 %v1209
    %1252 = vmatpush1.bf16.msra.mxu0 %v1208
    %1253 = vmatprep.subr.bf16.mxu0 %v1212
    %1254 = vmatpush1.bf16.msra.mxu0 %v1211
    %1255 = vmatprep.subr.bf16.mxu0 %v1215
    %1256 = vmatpush1.bf16.msra.mxu0 %v1214
    %1257 = vmatprep.subr.bf16.mxu0 0
    %1258 = vmatpush1.bf16.msra.mxu0 0
    %1259 = vmatprep.subr.bf16.mxu0 0
    %1260 = vmatpush1.bf16.msra.mxu0 0
    %1261 = vmatprep.subr.bf16.mxu0 0
    %1262 = vmatpush1.bf16.msra.mxu0 0
    %1263 = vmatprep.subr.bf16.mxu0 0
    %1264 = vmatpush1.bf16.msra.mxu0 0
    %1265 = vmatprep.subr.bf16.mxu0 0
    %1266 = vmatpush1.bf16.msra.mxu0 0
    %1267 = vmatprep.subr.bf16.mxu0 0
    %1268 = vmatpush1.bf16.msra.mxu0 0
    %1269 = vmatprep.subr.bf16.mxu0 0
    %1270 = vmatpush1.bf16.msra.mxu0 0
    %1271 = vmatprep.subr.bf16.mxu0 0
    %1272 = vmatpush1.bf16.msra.mxu0 0
    %1273 = vmatprep.mubr.bf16.mxu0 0
    %1274 = vmatmul.mubr.bf16.gmra.mrb[0].mxu0 %v1111
    %v1275 = vpop.f32.mrb[0].mxu0
    %v1276 = vadd.f32 %v1059, %v1275
    %v1277 = vpop.f32.mrb[0].mxu0
    %v1278 = vadd.f32 %v1061, %v1277
    %v1279 = vpop.f32.mrb[0].mxu0
    %v1280 = vpop.f32.mrb[0].mxu0
    %1281 = vdwg.mxu0
    %1282 = vmatprep.subr.bf16.mxu0 0
    %1283 = vmatpush1.bf16.msra.mxu0 %v1195
    %1284 = vmatprep.subr.bf16.mxu0 0
    %1285 = vmatpush1.bf16.msra.mxu0 %v1198
    %1286 = vmatprep.subr.bf16.mxu0 0
    %1287 = vmatpush1.bf16.msra.mxu0 %v1201
    %1288 = vmatprep.subr.bf16.mxu0 0
    %1289 = vmatpush1.bf16.msra.mxu0 %v1204
    %1290 = vmatprep.subr.bf16.mxu0 0
    %1291 = vmatpush1.bf16.msra.mxu0 %v1207
    %1292 = vmatprep.subr.bf16.mxu0 0
    %1293 = vmatpush1.bf16.msra.mxu0 %v1210
    %1294 = vmatprep.subr.bf16.mxu0 0
    %1295 = vmatpush1.bf16.msra.mxu0 %v1213
    %1296 = vmatprep.subr.bf16.mxu0 0
    %1297 = vmatpush1.bf16.msra.mxu0 %v1216
    %1298 = vmatprep.subr.bf16.mxu0 0
    %1299 = vmatpush1.bf16.msra.mxu0 0
    %1300 = vmatprep.subr.bf16.mxu0 0
    %1301 = vmatpush1.bf16.msra.mxu0 0
    %1302 = vmatprep.subr.bf16.mxu0 0
    %1303 = vmatpush1.bf16.msra.mxu0 0
    %1304 = vmatprep.subr.bf16.mxu0 0
    %1305 = vmatpush1.bf16.msra.mxu0 0
    %1306 = vmatprep.subr.bf16.mxu0 0
    %1307 = vmatpush1.bf16.msra.mxu0 0
    %1308 = vmatprep.subr.bf16.mxu0 0
    %1309 = vmatpush1.bf16.msra.mxu0 0
    %1310 = vmatprep.subr.bf16.mxu0 0
    %1311 = vmatpush1.bf16.msra.mxu0 0
    %1312 = vmatprep.subr.bf16.mxu0 0
    %1313 = vmatpush1.bf16.msra.mxu0 0
    %1314 = vmatprep.mubr.bf16.mxu0 0
    %1315 = vmatmul.mubr.bf16.gmra.mrb[0].mxu0 %v1111
    %v1316 = vpop.f32.mrb[0].mxu0
    %v1317 = vadd.f32 %v1100, %v1316
    %v1318 = vpop.f32.mrb[0].mxu0
    %v1319 = vpop.f32.mrb[0].mxu0
    %v1320 = vpop.f32.mrb[0].mxu0
    %1321 = vdwg.mxu0
    %s1322 = scalar_lea.vmem [#allocation5], 384
    %v1323 = vld [vmem:[%s1322] sm:$0xff]
    %v1324 = vld [vmem:[%s1322 + $0x8] sm:$0xf]
    %v1325 = vld [vmem:[%s1322 + $0xc] sm:$0xff]
    %v1326 = vld [vmem:[%s1322 + $0x14] sm:$0xf]
    %v1327 = vld [vmem:[%s1322 + $0x18] sm:$0xff]
    %v1328 = vld [vmem:[%s1322 + $0x20] sm:$0xf]
    %v1329 = vld [vmem:[%s1322 + $0x24] sm:$0xff]
    %v1330 = vld [vmem:[%s1322 + $0x2c] sm:$0xf]
    %v1331 = vld [vmem:[%s1322 + $0x30] sm:$0xff]
    %v1332 = vld [vmem:[%s1322 + $0x38] sm:$0xf]
    %v1333 = vld [vmem:[%s1322 + $0x3c] sm:$0xff]
    %v1334 = vld [vmem:[%s1322 + $0x44] sm:$0xf]
    %v1335 = vld [vmem:[%s1322 + $0x48] sm:$0xff]
    %v1336 = vld [vmem:[%s1322 + $0x50] sm:$0xf]
    %v1337 = vld [vmem:[%s1322 + $0x54] sm:$0xff]
    %v1338 = vld [vmem:[%s1322 + $0x5c] sm:$0xf]
    %v1339 = vld [vmem:[%s1322 + $0x60] sm:$0xff]
    %v1340 = vld [vmem:[%s1322 + $0x68] sm:$0xf]
    %v1341 = vld [vmem:[%s1322 + $0x6c] sm:$0xff]
    %v1342 = vld [vmem:[%s1322 + $0x74] sm:$0xf]
    %v1343 = vld [vmem:[%s1322 + $0x78] sm:$0xff]
    %v1344 = vld [vmem:[%s1322 + $0x80] sm:$0xf]
    %v1345 = vld [vmem:[%s1322 + $0x84] sm:$0xff]
    %v1346 = vld [vmem:[%s1322 + $0x8c] sm:$0xf]
    %v1347 = vld [vmem:[%s1322 + $0x90] sm:$0xff]
    %v1348 = vld [vmem:[%s1322 + $0x98] sm:$0xf]
    %v1349 = vld [vmem:[%s1322 + $0x9c] sm:$0xff]
    %v1350 = vld [vmem:[%s1322 + $0xa4] sm:$0xf]
    %v1351 = vld [vmem:[%s1322 + $0xa8] sm:$0xff]
    %v1352 = vld [vmem:[%s1322 + $0xb0] sm:$0xf]
    %v1353 = vld [vmem:[%s1322 + $0xb4] sm:$0xff]
    %v1354 = vld [vmem:[%s1322 + $0xbc] sm:$0xf]
    %v1356 = vrot.slane %v895, 1
    %v1390 = vunpack.c.l.b16 %v1323
    %v1391 = vunpack.c.h.b16 %v1323
    %v1392 = vunpack.c.l.b16 %v1324
    %v1393 = vunpack.c.l.b16 %v1325
    %v1394 = vunpack.c.h.b16 %v1325
    %v1395 = vunpack.c.l.b16 %v1326
    %v1396 = vunpack.c.l.b16 %v1327
    %v1397 = vunpack.c.h.b16 %v1327
    %v1398 = vunpack.c.l.b16 %v1328
    %v1399 = vunpack.c.l.b16 %v1329
    %v1400 = vunpack.c.h.b16 %v1329
    %v1401 = vunpack.c.l.b16 %v1330
    %v1402 = vunpack.c.l.b16 %v1331
    %v1403 = vunpack.c.h.b16 %v1331
    %v1404 = vunpack.c.l.b16 %v1332
    %v1405 = vunpack.c.l.b16 %v1333
    %v1406 = vunpack.c.h.b16 %v1333
    %v1407 = vunpack.c.l.b16 %v1334
    %v1408 = vunpack.c.l.b16 %v1335
    %v1409 = vunpack.c.h.b16 %v1335
    %v1410 = vunpack.c.l.b16 %v1336
    %v1411 = vunpack.c.l.b16 %v1337
    %v1412 = vunpack.c.h.b16 %v1337
    %v1413 = vunpack.c.l.b16 %v1338
    %v1414 = vunpack.c.l.b16 %v1339
    %v1415 = vunpack.c.h.b16 %v1339
    %v1416 = vunpack.c.l.b16 %v1340
    %v1417 = vunpack.c.l.b16 %v1341
    %v1418 = vunpack.c.h.b16 %v1341
    %v1419 = vunpack.c.l.b16 %v1342
    %v1420 = vunpack.c.l.b16 %v1343
    %v1421 = vunpack.c.h.b16 %v1343
    %v1422 = vunpack.c.l.b16 %v1344
    %v1423 = vunpack.c.l.b16 %v1345
    %v1424 = vunpack.c.h.b16 %v1345
    %v1425 = vunpack.c.l.b16 %v1346
    %v1426 = vunpack.c.l.b16 %v1347
    %v1427 = vunpack.c.h.b16 %v1347
    %v1428 = vunpack.c.l.b16 %v1348
    %v1429 = vunpack.c.l.b16 %v1349
    %v1430 = vunpack.c.h.b16 %v1349
    %v1431 = vunpack.c.l.b16 %v1350
    %v1432 = vunpack.c.l.b16 %v1351
    %v1433 = vunpack.c.h.b16 %v1351
    %v1434 = vunpack.c.l.b16 %v1352
    %v1435 = vunpack.c.l.b16 %v1353
    %v1436 = vunpack.c.h.b16 %v1353
    %v1437 = vunpack.c.l.b16 %v1354
    %v1438 = vpack.c.b16 %v1393, %v1390
    %v1439 = vpack.c.b16 %v1394, %v1391
    %v1440 = vpack.c.b16 %v1395, %v1392
    %v1441 = vpack.c.b16 %v1399, %v1396
    %v1442 = vpack.c.b16 %v1400, %v1397
    %v1443 = vpack.c.b16 %v1401, %v1398
    %v1444 = vpack.c.b16 %v1405, %v1402
    %v1445 = vpack.c.b16 %v1406, %v1403
    %v1446 = vpack.c.b16 %v1407, %v1404
    %v1447 = vpack.c.b16 %v1411, %v1408
    %v1448 = vpack.c.b16 %v1412, %v1409
    %v1449 = vpack.c.b16 %v1413, %v1410
    %v1450 = vpack.c.b16 %v1417, %v1414
    %v1451 = vpack.c.b16 %v1418, %v1415
    %v1452 = vpack.c.b16 %v1419, %v1416
    %v1453 = vpack.c.b16 %v1423, %v1420
    %v1454 = vpack.c.b16 %v1424, %v1421
    %v1455 = vpack.c.b16 %v1425, %v1422
    %v1456 = vpack.c.b16 %v1429, %v1426
    %v1457 = vpack.c.b16 %v1430, %v1427
    %v1458 = vpack.c.b16 %v1431, %v1428
    %v1459 = vpack.c.b16 %v1435, %v1432
    %v1460 = vpack.c.b16 %v1436, %v1433
    %v1461 = vpack.c.b16 %v1437, %v1434
    %1486 = vmatprep.subr.bf16.mxu0 %v1439
    %1487 = vmatpush1.bf16.msra.mxu0 %v1438
    %1488 = vmatprep.subr.bf16.mxu0 %v1442
    %1489 = vmatpush1.bf16.msra.mxu0 %v1441
    %1490 = vmatprep.subr.bf16.mxu0 %v1445
    %1491 = vmatpush1.bf16.msra.mxu0 %v1444
    %1492 = vmatprep.subr.bf16.mxu0 %v1448
    %1493 = vmatpush1.bf16.msra.mxu0 %v1447
    %1494 = vmatprep.subr.bf16.mxu0 %v1451
    %1495 = vmatpush1.bf16.msra.mxu0 %v1450
    %1496 = vmatprep.subr.bf16.mxu0 %v1454
    %1497 = vmatpush1.bf16.msra.mxu0 %v1453
    %1498 = vmatprep.subr.bf16.mxu0 %v1457
    %1499 = vmatpush1.bf16.msra.mxu0 %v1456
    %1500 = vmatprep.subr.bf16.mxu0 %v1460
    %1501 = vmatpush1.bf16.msra.mxu0 %v1459
    %1502 = vmatprep.subr.bf16.mxu0 0
    %1503 = vmatpush1.bf16.msra.mxu0 0
    %1504 = vmatprep.subr.bf16.mxu0 0
    %1505 = vmatpush1.bf16.msra.mxu0 0
    %1506 = vmatprep.subr.bf16.mxu0 0
    %1507 = vmatpush1.bf16.msra.mxu0 0
    %1508 = vmatprep.subr.bf16.mxu0 0
    %1509 = vmatpush1.bf16.msra.mxu0 0
    %1510 = vmatprep.subr.bf16.mxu0 0
    %1511 = vmatpush1.bf16.msra.mxu0 0
    %1512 = vmatprep.subr.bf16.mxu0 0
    %1513 = vmatpush1.bf16.msra.mxu0 0
    %1514 = vmatprep.subr.bf16.mxu0 0
    %1515 = vmatpush1.bf16.msra.mxu0 0
    %1516 = vmatprep.subr.bf16.mxu0 0
    %1517 = vmatpush1.bf16.msra.mxu0 0
    %1518 = vmatprep.mubr.bf16.mxu0 0
    %1519 = vmatmul.mubr.bf16.gmra.mrb[0].mxu0 %v1356
    %v1520 = vpop.f32.mrb[0].mxu0
    %v1521 = vadd.f32 0.0, %v1520
    %v1522 = vpop.f32.mrb[0].mxu0
    %v1523 = vadd.f32 0.0, %v1522
    %v1524 = vpop.f32.mrb[0].mxu0
    %v1525 = vpop.f32.mrb[0].mxu0
    %1526 = vdwg.mxu0
    %1527 = vmatprep.subr.bf16.mxu0 0
    %1528 = vmatpush1.bf16.msra.mxu0 %v1440
    %1529 = vmatprep.subr.bf16.mxu0 0
    %1530 = vmatpush1.bf16.msra.mxu0 %v1443
    %1531 = vmatprep.subr.bf16.mxu0 0
    %1532 = vmatpush1.bf16.msra.mxu0 %v1446
    %1533 = vmatprep.subr.bf16.mxu0 0
    %1534 = vmatpush1.bf16.msra.mxu0 %v1449
    %1535 = vmatprep.subr.bf16.mxu0 0
    %1536 = vmatpush1.bf16.msra.mxu0 %v1452
    %1537 = vmatprep.subr.bf16.mxu0 0
    %1538 = vmatpush1.bf16.msra.mxu0 %v1455
    %1539 = vmatprep.subr.bf16.mxu0 0
    %1540 = vmatpush1.bf16.msra.mxu0 %v1458
    %1541 = vmatprep.subr.bf16.mxu0 0
    %1542 = vmatpush1.bf16.msra.mxu0 %v1461
    %1543 = vmatprep.subr.bf16.mxu0 0
    %1544 = vmatpush1.bf16.msra.mxu0 0
    %1545 = vmatprep.subr.bf16.mxu0 0
    %1546 = vmatpush1.bf16.msra.mxu0 0
    %1547 = vmatprep.subr.bf16.mxu0 0
    %1548 = vmatpush1.bf16.msra.mxu0 0
    %1549 = vmatprep.subr.bf16.mxu0 0
    %1550 = vmatpush1.bf16.msra.mxu0 0
    %1551 = vmatprep.subr.bf16.mxu0 0
    %1552 = vmatpush1.bf16.msra.mxu0 0
    %1553 = vmatprep.subr.bf16.mxu0 0
    %1554 = vmatpush1.bf16.msra.mxu0 0
    %1555 = vmatprep.subr.bf16.mxu0 0
    %1556 = vmatpush1.bf16.msra.mxu0 0
    %1557 = vmatprep.subr.bf16.mxu0 0
    %1558 = vmatpush1.bf16.msra.mxu0 0
    %1559 = vmatprep.mubr.bf16.mxu0 0
    %1560 = vmatmul.mubr.bf16.gmra.mrb[0].mxu0 %v1356
    %v1561 = vpop.f32.mrb[0].mxu0
    %v1562 = vadd.f32 0.0, %v1561
    %v1563 = vpop.f32.mrb[0].mxu0
    %v1564 = vpop.f32.mrb[0].mxu0
    %v1565 = vpop.f32.mrb[0].mxu0
    %1566 = vdwg.mxu0
    %v1567 = vadd.f32 %v1276, %v1521
    %v1568 = vadd.f32 %v1278, %v1523
    %v1569 = vadd.f32 %v1317, %v1562
    %v1570 = vld [vmem:[#allocation7] sm:$0x7]
    %v1572 = vlaneseq
    %v1573 = vshrl.u32 %v1572, 7
    %v1574 = vsub.s32 0, %v1573
    %v1575 = vrot.slane %v1570, %v1574
    %v1576 = vlaneseq
    %v1577 = vshrl.u32 %v1576, 7
    %v1578 = vsub.s32 1, %v1577
    %v1579 = vrot.slane %v1570, %v1578
    %v1580 = vlaneseq
    %v1581 = vshrl.u32 %v1580, 7
    %v1582 = vsub.s32 2, %v1581
    %v1583 = vrot.slane %v1570, %v1582
    %v1587 = vadd.f32 %v1567, %v1575
    %v1588 = vadd.f32 %v1568, %v1579
    %v1589 = vadd.f32 %v1569, %v1583
    %v1590 = vxor.u32 %v1587, 2147483648
    %v1591 = vxor.u32 %v1588, 2147483648
    %v1592 = vxor.u32 %v1589, 2147483648
    %v1593 = vmul.f32 %v1590, 1.442695
    %v1594 = vpow.pop %v1593
    %v1595 = vmul.f32 %v1591, 1.442695
    %v1596 = vpow.pop %v1595
    %v1597 = vmul.f32 %v1592, 1.442695
    %v1598 = vpow.pop %v1597
    %v1599 = vadd.f32 %v1594, 1.0
    %v1600 = vadd.f32 %v1596, 1.0
    %v1601 = vadd.f32 %v1598, 1.0
    %v1602 = vrcp.pop %v1599
    %v1603 = vmul.f32 1.0, %v1602
    %v1604 = vrcp.pop %v1600
    %v1605 = vmul.f32 1.0, %v1604
    %v1606 = vrcp.pop %v1601
    %v1607 = vmul.f32 1.0, %v1606
    %v1608 = vmul.f32 %v1603, %v78
    %v1609 = vmul.f32 %v1605, %v827
    %v1610 = vadd.f32 %v1608, %v1609
    %v1612 = vrot.slane %v827, 2
    %v1614 = vmul.f32 %v1607, %v1612
    %v1615 = vadd.f32 %v1610, %v1614
    %v1616 = vld [vmem:[%s6] sm:$0xf]
    %v1617 = vld [vmem:[%s6 + $0x4] sm:$0xf]
    %v1618 = vld [vmem:[%s6 + $0x8] sm:$0xf]
    %v1619 = vld [vmem:[%s6 + $0xc] sm:$0xf]
    %v1620 = vld [vmem:[%s6 + $0x10] sm:$0xf]
    %v1621 = vld [vmem:[%s6 + $0x14] sm:$0xf]
    %v1622 = vld [vmem:[%s6 + $0x18] sm:$0xf]
    %v1623 = vld [vmem:[%s6 + $0x1c] sm:$0xf]
    %v1624 = vld [vmem:[%s6 + $0x20] sm:$0xf]
    %v1625 = vld [vmem:[%s6 + $0x24] sm:$0xf]
    %v1626 = vld [vmem:[%s6 + $0x28] sm:$0xf]
    %v1627 = vld [vmem:[%s6 + $0x2c] sm:$0xf]
    %v1628 = vld [vmem:[%s6 + $0x30] sm:$0xf]
    %v1629 = vld [vmem:[%s6 + $0x34] sm:$0xf]
    %v1630 = vld [vmem:[%s6 + $0x38] sm:$0xf]
    %v1631 = vld [vmem:[%s6 + $0x3c] sm:$0xf]
    %v1632 = vpack.c.bf16 %v1615, %v1615
    %v1633 = vld [vmem:[%s7] sm:$0x1]
    %v1635 = vlaneseq
    %v1636 = vshrl.u32 %v1635, 7
    %v1637 = vsub.s32 0, %v1636
    %v1638 = vrot.slane %v1633, %v1637
    %v1656 = vunpack.c.l.b16 %v1616
    %v1657 = vunpack.c.l.b16 %v1617
    %v1658 = vunpack.c.l.b16 %v1618
    %v1659 = vunpack.c.l.b16 %v1619
    %v1660 = vunpack.c.l.b16 %v1620
    %v1661 = vunpack.c.l.b16 %v1621
    %v1662 = vunpack.c.l.b16 %v1622
    %v1663 = vunpack.c.l.b16 %v1623
    %v1664 = vunpack.c.l.b16 %v1624
    %v1665 = vunpack.c.l.b16 %v1625
    %v1666 = vunpack.c.l.b16 %v1626
    %v1667 = vunpack.c.l.b16 %v1627
    %v1668 = vunpack.c.l.b16 %v1628
    %v1669 = vunpack.c.l.b16 %v1629
    %v1670 = vunpack.c.l.b16 %v1630
    %v1671 = vunpack.c.l.b16 %v1631
    %v1672 = vpack.c.b16 %v1657, %v1656
    %v1673 = vpack.c.b16 %v1659, %v1658
    %v1674 = vpack.c.b16 %v1661, %v1660
    %v1675 = vpack.c.b16 %v1663, %v1662
    %v1676 = vpack.c.b16 %v1665, %v1664
    %v1677 = vpack.c.b16 %v1667, %v1666
    %v1678 = vpack.c.b16 %v1669, %v1668
    %v1679 = vpack.c.b16 %v1671, %v1670
    %1688 = vmatprep.subr.bf16.mxu0 0
    %1689 = vmatpush1.bf16.msra.mxu0 %v1672
    %1690 = vmatprep.subr.bf16.mxu0 0
    %1691 = vmatpush1.bf16.msra.mxu0 %v1673
    %1692 = vmatprep.subr.bf16.mxu0 0
    %1693 = vmatpush1.bf16.msra.mxu0 %v1674
    %1694 = vmatprep.subr.bf16.mxu0 0
    %1695 = vmatpush1.bf16.msra.mxu0 %v1675
    %1696 = vmatprep.subr.bf16.mxu0 0
    %1697 = vmatpush1.bf16.msra.mxu0 %v1676
    %1698 = vmatprep.subr.bf16.mxu0 0
    %1699 = vmatpush1.bf16.msra.mxu0 %v1677
    %1700 = vmatprep.subr.bf16.mxu0 0
    %1701 = vmatpush1.bf16.msra.mxu0 %v1678
    %1702 = vmatprep.subr.bf16.mxu0 0
    %1703 = vmatpush1.bf16.msra.mxu0 %v1679
    %1704 = vmatprep.subr.bf16.mxu0 0
    %1705 = vmatpush1.bf16.msra.mxu0 0
    %1706 = vmatprep.subr.bf16.mxu0 0
    %1707 = vmatpush1.bf16.msra.mxu0 0
    %1708 = vmatprep.subr.bf16.mxu0 0
    %1709 = vmatpush1.bf16.msra.mxu0 0
    %1710 = vmatprep.subr.bf16.mxu0 0
    %1711 = vmatpush1.bf16.msra.mxu0 0
    %1712 = vmatprep.subr.bf16.mxu0 0
    %1713 = vmatpush1.bf16.msra.mxu0 0
    %1714 = vmatprep.subr.bf16.mxu0 0
    %1715 = vmatpush1.bf16.msra.mxu0 0
    %1716 = vmatprep.subr.bf16.mxu0 0
    %1717 = vmatpush1.bf16.msra.mxu0 0
    %1718 = vmatprep.subr.bf16.mxu0 0
    %1719 = vmatpush1.bf16.msra.mxu0 0
    %1720 = vmatprep.mubr.bf16.mxu0 0
    %1721 = vmatmul.mubr.bf16.gmra.mrb[0].mxu0 %v1632
    %v1722 = vpop.f32.mrb[0].mxu0
    %v1723 = vadd.f32 %v1638, %v1722
    %v1724 = vpop.f32.mrb[0].mxu0
    %v1725 = vpop.f32.mrb[0].mxu0
    %v1726 = vpop.f32.mrb[0].mxu0
    %1727 = vdwg.mxu0
    %vm1728 = vcmask 123904
    %1729 = vst.msk [vmem:[#allocation8] sm:$0x3] %vm1728, %v1723
    // Predicated region
    $region46: #{tpu_custom_call.1} parent=1 // pred_check
      _
    $region47: #{tpu_custom_call.1} parent=1 // pred_check_branch
      %1731 = sbr.rel (0) target = $region49
    $region48: #{tpu_custom_call.1} parent=1 // pred_region
      %s1733 = ssub.s32 32, 32
      %1734 = vsyncadd [#allocation4], %s1733
      %s1736 = sshll.u32 [#allocation8], 4
      %s1737 = int_to_ptr.vmem [resolvable:$true] %s1736
      %1739 = dma.vmem_to_hbm [thread:$0]  %s1737, 32, %s8, [#allocation4]
    $region49: #{tpu_custom_call.1} parent=1 // pred_fallthru
      _
    // Predicated region
    $region50: #{tpu_custom_call.1} parent=1 // pred_check
      _
    $region51: #{tpu_custom_call.1} parent=1 // pred_check_branch
      %1741 = sbr.rel (0) target = $region53
    $region52: #{tpu_custom_call.1} parent=1 // pred_region
      %1742 = dma.done [#allocation4], 32
    $region53: #{tpu_custom_call.1} parent=1 // pred_fallthru
      _
    %1743 = vsyncpa [#allocation3], 1
    %1744 = vsyncpa [#allocation6], 1
    %1745 = vsyncpa [#allocation4], 1

</llo_original>
